<compile_context>
chip_gen: v7x
topology: tpu7x:2x2x1
jax: 0.10.0
libtpu: 0.0.40
codegen_flags: <defaults>
</compile_context>

<pallas_src>
import functools
import math

import jax
import jax.numpy as jnp
from jax import lax
from jax.experimental import pallas as pl
from jax.experimental.pallas import tpu as pltpu


def _round_up(n, m):
    return ((n + m - 1) // m) * m


def _sigmoid(x):
    # sigmoid(x) = 0.5*(tanh(x/2)+1): one EUP op instead of exp + reciprocal.
    return 0.5 * (jnp.tanh(0.5 * x) + 1.0)


def _tpu_geometry():
    """(vmem_capacity_bytes, tensorcores_per_device) with safe defaults."""
    vmem_cap = 128 * 1024 * 1024
    num_tc = 1
    try:
        vmem_cap = int(pltpu.get_tpu_info().vmem_capacity_bytes)
    except Exception:
        pass
    try:
        kind = jax.devices()[0].device_kind.lower()
        # single-TC parts: v5e / v6e ("lite"); dual-TC: v4 / v5p / v7x, ...
        if not any(s in kind for s in ("lite", "v5e", "v6e")):
            num_tc = 2
    except Exception:
        pass
    return vmem_cap, num_tc


def _lstm_kernel(x_ref, wx_ref, wh_ref, b_ref, pi_ref, pf_ref, po_ref,
                 hseq_ref, cf_ref, hf_ref,
                 gx_sc, c_sc, h_sc,
                 *, hidden_pad, t_chunk, block_bs, seq_len, need_mask,
                 peephole, unroll):
    HP = hidden_pad
    chunk = pl.program_id(1)
    n_chunks = pl.num_programs(1)

    # Zero initial state once per batch tile (time is the innermost grid axis).
    @pl.when(chunk == 0)
    def _():
        c_sc[...] = jnp.zeros_like(c_sc)
        h_sc[...] = jnp.zeros_like(h_sc)

    # ---- chunk-level input projection: one big MXU matmul, f32 accumulate ---
    xm = x_ref[...].reshape(t_chunk * block_bs, x_ref.shape[-1])
    gx_sc[...] = (jnp.dot(xm, wx_ref[...], preferred_element_type=jnp.float32)
                  + b_ref[...])

    # Loop-invariant peephole vectors: broadcast once, close over the values.
    if peephole:
        p_i = jnp.broadcast_to(pi_ref[...], (block_bs, HP))
        p_f = jnp.broadcast_to(pf_ref[...], (block_bs, HP))
        p_o = jnp.broadcast_to(po_ref[...], (block_bs, HP))

    def run_chunk(apply_mask):
        def step(k, carry):
            c, h = carry
            hb = h.astype(wh_ref.dtype)
            off = pl.multiple_of(k * block_bs, block_bs)
            # One fused (block_bs, HP) @ (HP, 4*HP) recurrent matmul + one
            # f32 GX slice per step.
            gates = (gx_sc[pl.ds(off, block_bs), :]
                     + jnp.dot(hb, wh_ref[...],
                               preferred_element_type=jnp.float32))
            g0 = gates[:, 0 * HP:1 * HP]
            g1 = gates[:, 1 * HP:2 * HP]
            g2 = gates[:, 2 * HP:3 * HP]
            g3 = gates[:, 3 * HP:4 * HP]
            if peephole:
                # gate layout i, j, f, o (forget_bias folded into the bias)
                c_new = (_sigmoid(g2 + c * p_f) * c
                         + _sigmoid(g0 + c * p_i) * jnp.tanh(g1))
                h_new = _sigmoid(g3 + c_new * p_o) * jnp.tanh(c_new)
            else:
                # gate layout i, f, g, o
                c_new = _sigmoid(g1) * c + _sigmoid(g0) * jnp.tanh(g2)
                h_new = _sigmoid(g3) * jnp.tanh(c_new)
            if apply_mask:                       # padded tail: hold state
                keep = (chunk * t_chunk + k) < seq_len
                c_new = jnp.where(keep, c_new, c)
                h_new = jnp.where(keep, h_new, h)
            hseq_ref[k] = h_new.astype(hseq_ref.dtype)
            return c_new, h_new

        c, h = lax.fori_loop(0, t_chunk, step, (c_sc[...], h_sc[...]),
                             unroll=unroll)
        c_sc[...] = c
        h_sc[...] = h

    if need_mask:
        @pl.when(chunk < n_chunks - 1)
        def _():
            run_chunk(False)

        @pl.when(chunk == n_chunks - 1)
        def _():
            run_chunk(True)
    else:
        run_chunk(False)

    @pl.when(chunk == n_chunks - 1)
    def _():
        cf_ref[...] = c_sc[...].astype(cf_ref.dtype)
        hf_ref[...] = h_sc[...].astype(hf_ref.dtype)


def peephole_lstm_forward(x, W, bias, peep_i, peep_f, peep_o, *,
                          hidden_size, peephole=False, forget_bias=0.0,
                          compute_dtype=jnp.float32, t_chunk=None,
                          batch_block=None):
    """x: (seq, batch, input_size). Returns (hidden_seq, (c_t, h_t)), matching
    the PyTorch module's default (sequence_len=None, init_states=None) path."""
    # TODO(synk): the sequence_len / init_states arguments of the PyTorch
    # forward are not implemented (defaults-None path only).
    seq, bs, D = x.shape
    HS = hidden_size
    assert W.shape == (D + HS, 4 * HS)
    out_dtype = x.dtype

    cdt = jnp.dtype(compute_dtype)
    x_isz = cdt.itemsize
    w_isz = cdt.itemsize
    o_isz = jnp.dtype(out_dtype).itemsize

    HP = _round_up(HS, 128)                        # lane-aligned hidden size
    DP = _round_up(D, 128)                         # lane-aligned input size

    # --- generation-aware sizing -------------------------------------------
    vmem_cap, num_tc = _tpu_geometry()
    vmem_limit = int(min(64 << 20, max(32 << 20, int(0.8 * vmem_cap))))
    budget = vmem_limit - (4 << 20)                # headroom for compiler use

    # sublane multiple for the compute dtype (bf16 packs 16 rows per vreg)
    row_mult = {4: 8, 2: 16, 1: 32}.get(x_isz, 8)

    if batch_block is not None:
        block_bs = _round_up(max(1, min(batch_block, bs)), row_mult)
    elif num_tc >= 2 and bs >= 2 * row_mult:
        block_bs = _round_up(-(-bs // 2), row_mult)   # 2 tiles -> both TCs
    else:
        block_bs = _round_up(bs, row_mult)            # one big batch tile

    def fixed_bytes(bbs):
        return (2 * DP * 4 * HP * w_isz            # Wx (2 pipeline buffers)
                + 2 * HP * 4 * HP * w_isz          # Wh (2 pipeline buffers)
                + 2 * bbs * HP * 4                 # c/h state scratch (f32)
                + 4 * bbs * HP * o_isz             # final c/h outputs
                + 16 * 4 * HP * 4)                 # bias / peepholes / slack

    def per_step_bytes(bbs):
        return bbs * (2 * DP * x_isz               # x chunk (double buffered)
                      + 4 * HP * 4                 # GX scratch (f32)
                      + 2 * HP * o_isz)            # hidden_seq chunk

    # if even a 1-timestep chunk would not fit, tile the batch harder
    while (block_bs > row_mult
           and fixed_bytes(block_bs) + per_step_bytes(block_bs) > budget):
        block_bs = _round_up(block_bs // 2, row_mult)

    bs_pad = _round_up(bs, block_bs)
    n_btiles = bs_pad // block_bs

    # auto-size the time chunk from the VMEM budget
    target_tc = 32 if t_chunk is None else max(1, int(t_chunk))
    tc_cap = max(1, (budget - fixed_bytes(block_bs)) // per_step_bytes(block_bs))
    tc = int(max(1, min(target_tc, tc_cap, seq)))
    if seq % tc:                                   # prefer a mask-free chunking
        for d in range(tc, 0, -1):
            if seq % d == 0:
                if d >= max(1, tc // 2):
                    tc = d
                break
    seq_pad = _round_up(seq, tc)
    n_chunks = seq_pad // tc
    need_mask = seq_pad != seq

    # partial unroll when the per-step working set would blow the vreg file
    unroll_n = tc if block_bs * HP * 4 <= 32 * 1024 else min(tc, 8)

    # --- pad / layout weights ------------------------------------------------
    W = jnp.asarray(W, jnp.float32)
    b = jnp.asarray(bias, jnp.float32)
    if peephole and forget_bias != 0.0:
        # forget gate occupies [2*HS:3*HS] in the peephole gate layout
        b = b.at[2 * HS:3 * HS].add(jnp.float32(forget_bias))
    Wx = W[:D]                                     # (D, 4*HS)
    Wh = W[D:]                                     # (HS, 4*HS)

    def pad_gate_cols(m):                          # (rows, 4*HS) -> (rows, 4*HP)
        out = jnp.zeros((m.shape[0], 4 * HP), m.dtype)
        for g in range(4):
            out = out.at[:, g * HP:g * HP + HS].set(m[:, g * HS:(g + 1) * HS])
        return out

    Wx_p = (jnp.zeros((DP, 4 * HP), jnp.float32)
            .at[:D].set(pad_gate_cols(Wx)).astype(cdt))
    Wh_p = (jnp.zeros((HP, 4 * HP), jnp.float32)
            .at[:HS].set(pad_gate_cols(Wh)).astype(cdt))
    b_p = pad_gate_cols(b.reshape(1, 4 * HS))                     # (1,4HP) f32

    def pad_vec(v):
        return (jnp.zeros((1, HP), jnp.float32)
                .at[0, :HS].set(jnp.asarray(v, jnp.float32)))

    pi_p, pf_p, po_p = pad_vec(peep_i), pad_vec(peep_f), pad_vec(peep_o)

    x_p = jnp.zeros((seq_pad, bs_pad, DP), cdt)
    x_p = x_p.at[:seq, :bs, :D].set(x.astype(cdt))

    kernel = functools.partial(
        _lstm_kernel, hidden_pad=HP, t_chunk=tc, block_bs=block_bs,
        seq_len=seq, need_mask=need_mask, peephole=peephole, unroll=unroll_n)

    grid_spec = pltpu.PrefetchScalarGridSpec(
        num_scalar_prefetch=0,
        grid=(n_btiles, n_chunks),
        in_specs=[
            pl.BlockSpec((tc, block_bs, DP), lambda b_, c_: (c_, b_, 0)),
            pl.BlockSpec((DP, 4 * HP), lambda b_, c_: (0, 0)),
            pl.BlockSpec((HP, 4 * HP), lambda b_, c_: (0, 0)),
            pl.BlockSpec((1, 4 * HP), lambda b_, c_: (0, 0)),
            pl.BlockSpec((1, HP), lambda b_, c_: (0, 0)),
            pl.BlockSpec((1, HP), lambda b_, c_: (0, 0)),
            pl.BlockSpec((1, HP), lambda b_, c_: (0, 0)),
        ],
        out_specs=[
            pl.BlockSpec((tc, block_bs, HP), lambda b_, c_: (c_, b_, 0)),
            pl.BlockSpec((block_bs, HP), lambda b_, c_: (b_, 0)),
            pl.BlockSpec((block_bs, HP), lambda b_, c_: (b_, 0)),
        ],
        scratch_shapes=[
            pltpu.VMEM((tc * block_bs, 4 * HP), jnp.float32),  # GX chunk
            pltpu.VMEM((block_bs, HP), jnp.float32),           # c state
            pltpu.VMEM((block_bs, HP), jnp.float32),           # h state
        ],
    )

    hseq, cf, hf = pl.pallas_call(
        kernel,
        out_shape=(
            jax.ShapeDtypeStruct((seq_pad, bs_pad, HP), out_dtype),
            jax.ShapeDtypeStruct((bs_pad, HP), out_dtype),
            jax.ShapeDtypeStruct((bs_pad, HP), out_dtype),
        ),
        grid_spec=grid_spec,
        compiler_params=pltpu.CompilerParams(
            dimension_semantics=("parallel", "arbitrary"),
            vmem_limit_bytes=vmem_limit),
    )(x_p, Wx_p, Wh_p, b_p, pi_p, pf_p, po_p)

    hidden_seq = hseq[:seq, :bs, :HS]
    c_t = cf[:bs, :HS]
    h_t = hf[:bs, :HS]
    return hidden_seq, (c_t, h_t)


def _reference_forward(x, W, bias, peep_i, peep_f, peep_o,
                       *, hidden_size, peephole=False, forget_bias=0.0):
    """Pure-JAX reference mirroring the PyTorch loop (defaults path)."""
    seq, bs, _ = x.shape
    HS = hidden_size
    c = jnp.zeros((bs, HS), jnp.float32)
    h = jnp.zeros((bs, HS), jnp.float32)
    outs = []
    for t in range(seq):
        gates = jnp.concatenate([x[t], h], axis=1) @ W + bias
        if peephole:
            i_t = gates[:, :HS]
            j_t = gates[:, HS:2 * HS]
            f_t = gates[:, 2 * HS:3 * HS]
            o_t = gates[:, 3 * HS:]
            c = (jax.nn.sigmoid(f_t + forget_bias + c * peep_f) * c
                 + jax.nn.sigmoid(i_t + c * peep_i) * jnp.tanh(j_t))
            h = jax.nn.sigmoid(o_t + c * peep_o) * jnp.tanh(c)
        else:
            g_t = jnp.tanh(gates[:, 2 * HS:3 * HS])
            i_t = jax.nn.sigmoid(gates[:, :HS])
            f_t = jax.nn.sigmoid(gates[:, HS:2 * HS])
            o_t = jax.nn.sigmoid(gates[:, 3 * HS:])
            c = f_t * c + i_t * g_t
            h = o_t * jnp.tanh(c)
        outs.append(h[None])
    return jnp.concatenate(outs, axis=0), (c, h)


if __name__ == "__main__":
    SEQ, BS, D, HS = 8, 2, 4, 32

    key = jax.random.PRNGKey(0)
    kx, kw, kb, kpi, kpf, kpo = jax.random.split(key, 6)
    stdv = 1.0 / math.sqrt(HS)
    W = jax.random.uniform(kw, (D + HS, 4 * HS), jnp.float32, -stdv, stdv)
    bias = jax.random.uniform(kb, (4 * HS,), jnp.float32, -stdv, stdv)
    peep_i = jax.random.uniform(kpi, (HS,), jnp.float32, -stdv, stdv)
    peep_f = jax.random.uniform(kpf, (HS,), jnp.float32, -stdv, stdv)
    peep_o = jax.random.uniform(kpo, (HS,), jnp.float32, -stdv, stdv)
    x = jax.random.normal(kx, (SEQ, BS, D), jnp.float32)

    # 1) default (non-peephole) path, f32 compute: tight check vs reference.
    out, (c1, h1) = peephole_lstm_forward(
        x, W, bias, peep_i, peep_f, peep_o,
        hidden_size=HS, peephole=False, compute_dtype=jnp.float32)
    jax.block_until_ready((out, c1, h1))
    ref, (rc, rh) = _reference_forward(
        x, W, bias, peep_i, peep_f, peep_o, hidden_size=HS, peephole=False)
    assert out.shape == (SEQ, BS, HS)
    assert c1.shape == (BS, HS) and h1.shape == (BS, HS)
    assert jnp.allclose(out, ref, atol=2e-4, rtol=2e-4)
    assert jnp.allclose(c1, rc, atol=2e-4, rtol=2e-4)
    assert jnp.allclose(h1, rh, atol=2e-4, rtol=2e-4)

    # 2) peephole path with forget_bias, f32 compute.
    out_p, (cp, hp_) = peephole_lstm_forward(
        x, W, bias, peep_i, peep_f, peep_o,
        hidden_size=HS, peephole=True, forget_bias=1.0,
        compute_dtype=jnp.float32)
    ref_p, (rcp, rhp) = _reference_forward(
        x, W, bias, peep_i, peep_f, peep_o,
        hidden_size=HS, peephole=True, forget_bias=1.0)
    assert jnp.allclose(out_p, ref_p, atol=2e-4, rtol=2e-4)
    assert jnp.allclose(cp, rcp, atol=2e-4, rtol=2e-4)
    assert jnp.allclose(hp_, rhp, atol=2e-4, rtol=2e-4)

    # 3) bf16 fast path (MXU-native x / weights) vs the f32 reference.
    out_b, (cb, hbv) = peephole_lstm_forward(
        x, W, bias, peep_i, peep_f, peep_o,
        hidden_size=HS, peephole=False, compute_dtype=jnp.bfloat16)
    jax.block_until_ready((out_b, cb, hbv))
    assert jnp.allclose(out_b, ref, atol=5e-2)
    assert jnp.allclose(cb, rc, atol=5e-2)
    assert jnp.allclose(hbv, rh, atol=5e-2)

    print("KERNEL_OK")
</pallas_src>

<mosaic_0001>
module attributes {stable_mosaic.version = 11 : i64} {
  func.func @_lstm_kernel(%arg0: i32, %arg1: i32, %arg2: memref<8x8x128xf32, #tpu.memory_space<vmem>>, %arg3: memref<128x512xf32, #tpu.memory_space<vmem>>, %arg4: memref<128x512xf32, #tpu.memory_space<vmem>>, %arg5: memref<1x512xf32, #tpu.memory_space<vmem>>, %arg6: memref<1x128xf32, #tpu.memory_space<vmem>>, %arg7: memref<1x128xf32, #tpu.memory_space<vmem>>, %arg8: memref<1x128xf32, #tpu.memory_space<vmem>>, %arg9: memref<8x8x128xf32, #tpu.memory_space<vmem>>, %arg10: memref<8x128xf32, #tpu.memory_space<vmem>>, %arg11: memref<8x128xf32, #tpu.memory_space<vmem>>, %arg12: memref<64x512xf32, #tpu.memory_space<vmem>>, %arg13: memref<8x128xf32, #tpu.memory_space<vmem>>, %arg14: memref<8x128xf32, #tpu.memory_space<vmem>>) attributes {dimension_semantics = [#tpu.dimension_semantics<parallel>, #tpu.dimension_semantics<arbitrary>], iteration_bounds = array<i64: 1, 1>, scalar_prefetch = 0 : i64, scratch_operands = 3 : i64, tpu.core_type = #tpu.core_type<tc>, window_params = [{transform_indices = @transform_0, window_bounds = array<i64: 8, 8, 128>}, {pipeline_mode = #tpu.pipeline_mode<synchronous>, transform_indices = @transform_1, window_bounds = array<i64: 128, 512>}, {pipeline_mode = #tpu.pipeline_mode<synchronous>, transform_indices = @transform_2, window_bounds = array<i64: 128, 512>}, {pipeline_mode = #tpu.pipeline_mode<synchronous>, transform_indices = @transform_3, window_bounds = array<i64: 1, 512>}, {pipeline_mode = #tpu.pipeline_mode<synchronous>, transform_indices = @transform_4, window_bounds = array<i64: 1, 128>}, {pipeline_mode = #tpu.pipeline_mode<synchronous>, transform_indices = @transform_5, window_bounds = array<i64: 1, 128>}, {pipeline_mode = #tpu.pipeline_mode<synchronous>, transform_indices = @transform_6, window_bounds = array<i64: 1, 128>}, {transform_indices = @transform_7, window_bounds = array<i64: 8, 8, 128>}, {transform_indices = @transform_8, window_bounds = array<i64: 8, 128>}, {transform_indices = @transform_9, window_bounds = array<i64: 8, 128>}]} {
    %c0_i32 = arith.constant 0 : i32
    %0 = arith.cmpi eq, %arg1, %c0_i32 : i32
    %1 = arith.extui %0 : i1 to i32
    %c0_i32_0 = arith.constant 0 : i32
    %2 = arith.cmpi ne, %1, %c0_i32_0 : i32
    scf.if %2 {
      %cst_148 = arith.constant 0.000000e+00 : f32
      %354 = vector.broadcast %cst_148 : f32 to vector<8x128xf32>
      %c0_149 = arith.constant 0 : index
      %c0_150 = arith.constant 0 : index
      %355 = vector.load %arg13[%c0_149, %c0_150] : memref<8x128xf32, #tpu.memory_space<vmem>>, vector<8x128xf32>
      tpu.vector_store %arg13[%c0_149, %c0_150], %354 {strides = array<i32>} : memref<8x128xf32, #tpu.memory_space<vmem>>, vector<8x128xf32>,
      %cst_151 = arith.constant 0.000000e+00 : f32
      %356 = vector.broadcast %cst_151 : f32 to vector<8x128xf32>
      %c0_152 = arith.constant 0 : index
      %c0_153 = arith.constant 0 : index
      %357 = vector.load %arg14[%c0_152, %c0_153] : memref<8x128xf32, #tpu.memory_space<vmem>>, vector<8x128xf32>
      tpu.vector_store %arg14[%c0_152, %c0_153], %356 {strides = array<i32>} : memref<8x128xf32, #tpu.memory_space<vmem>>, vector<8x128xf32>,
    } else {
    }
    %c0 = arith.constant 0 : index
    %c0_1 = arith.constant 0 : index
    %c0_2 = arith.constant 0 : index
    %3 = vector.load %arg2[%c0, %c0_1, %c0_2] : memref<8x8x128xf32, #tpu.memory_space<vmem>>, vector<8x8x128xf32>
    %4 = vector.shape_cast %3 : vector<8x8x128xf32> to vector<64x128xf32>
    %c0_3 = arith.constant 0 : index
    %c0_4 = arith.constant 0 : index
    %5 = vector.load %arg3[%c0_3, %c0_4] : memref<128x512xf32, #tpu.memory_space<vmem>>, vector<128x512xf32>
    %cst = arith.constant dense<0.000000e+00> : vector<64x512xf32>
    %6 = tpu.matmul %4, %5, %cst {dimension_numbers = #tpu.dot_dimension_numbers<[1], [0], [0], [1], [0, 0, 1, 1], [], []>} : vector<64x128xf32>, vector<128x512xf32>, vector<64x512xf32> -> vector<64x512xf32>
    %c0_5 = arith.constant 0 : index
    %c0_6 = arith.constant 0 : index
    %7 = vector.load %arg5[%c0_5, %c0_6] : memref<1x512xf32, #tpu.memory_space<vmem>>, vector<1x512xf32>
    %8 = vector.broadcast %7 : vector<1x512xf32> to vector<64x512xf32>
    %9 = arith.addf %6, %8 : vector<64x512xf32>
    %c0_7 = arith.constant 0 : index
    %c0_8 = arith.constant 0 : index
    %10 = vector.load %arg12[%c0_7, %c0_8] : memref<64x512xf32, #tpu.memory_space<vmem>>, vector<64x512xf32>
    tpu.vector_store %arg12[%c0_7, %c0_8], %9 {strides = array<i32>} : memref<64x512xf32, #tpu.memory_space<vmem>>, vector<64x512xf32>,
    %c0_9 = arith.constant 0 : index
    %c0_10 = arith.constant 0 : index
    %11 = vector.load %arg13[%c0_9, %c0_10] : memref<8x128xf32, #tpu.memory_space<vmem>>, vector<8x128xf32>
    %c0_11 = arith.constant 0 : index
    %c0_12 = arith.constant 0 : index
    %12 = vector.load %arg14[%c0_11, %c0_12] : memref<8x128xf32, #tpu.memory_space<vmem>>, vector<8x128xf32>
    %c0_i32_13 = arith.constant 0 : i32
    %c8_i32 = arith.constant 8 : i32
    %13 = arith.muli %c0_i32_13, %c8_i32 : i32
    %14 = tpu.assume_multiple %13, 8 : i32
    %15 = arith.index_cast %14 : i32 to index
    %c0_14 = arith.constant 0 : index
    %16 = vector.load %arg12[%15, %c0_14] : memref<64x512xf32, #tpu.memory_space<vmem>>, vector<8x512xf32>
    %c0_15 = arith.constant 0 : index
    %c0_16 = arith.constant 0 : index
    %17 = vector.load %arg4[%c0_15, %c0_16] : memref<128x512xf32, #tpu.memory_space<vmem>>, vector<128x512xf32>
    %cst_17 = arith.constant dense<0.000000e+00> : vector<8x512xf32>
    %18 = tpu.matmul %12, %17, %cst_17 {dimension_numbers = #tpu.dot_dimension_numbers<[1], [0], [0], [1], [0, 0, 1, 1], [], []>} : vector<8x128xf32>, vector<128x512xf32>, vector<8x512xf32> -> vector<8x512xf32>
    %19 = arith.addf %16, %18 : vector<8x512xf32>
    %20 = vector.extract_strided_slice %19 {offsets = [0, 0], sizes = [8, 128], strides = [1, 1]} : vector<8x512xf32> to vector<8x128xf32>
    %21 = vector.extract_strided_slice %19 {offsets = [0, 128], sizes = [8, 128], strides = [1, 1]} : vector<8x512xf32> to vector<8x128xf32>
    %22 = vector.extract_strided_slice %19 {offsets = [0, 256], sizes = [8, 128], strides = [1, 1]} : vector<8x512xf32> to vector<8x128xf32>
    %23 = vector.extract_strided_slice %19 {offsets = [0, 384], sizes = [8, 128], strides = [1, 1]} : vector<8x512xf32> to vector<8x128xf32>
    %cst_18 = arith.constant 5.000000e-01 : f32
    %24 = vector.broadcast %cst_18 : f32 to vector<8x128xf32>
    %25 = arith.mulf %24, %21 : vector<8x128xf32>
    %26 = math.tanh %25 : vector<8x128xf32>
    %cst_19 = arith.constant 1.000000e+00 : f32
    %27 = vector.broadcast %cst_19 : f32 to vector<8x128xf32>
    %28 = arith.addf %26, %27 : vector<8x128xf32>
    %cst_20 = arith.constant 5.000000e-01 : f32
    %29 = vector.broadcast %cst_20 : f32 to vector<8x128xf32>
    %30 = arith.mulf %29, %28 : vector<8x128xf32>
    %31 = arith.mulf %30, %11 : vector<8x128xf32>
    %cst_21 = arith.constant 5.000000e-01 : f32
    %32 = vector.broadcast %cst_21 : f32 to vector<8x128xf32>
    %33 = arith.mulf %32, %20 : vector<8x128xf32>
    %34 = math.tanh %33 : vector<8x128xf32>
    %cst_22 = arith.constant 1.000000e+00 : f32
    %35 = vector.broadcast %cst_22 : f32 to vector<8x128xf32>
    %36 = arith.addf %34, %35 : vector<8x128xf32>
    %cst_23 = arith.constant 5.000000e-01 : f32
    %37 = vector.broadcast %cst_23 : f32 to vector<8x128xf32>
    %38 = arith.mulf %37, %36 : vector<8x128xf32>
    %39 = math.tanh %22 : vector<8x128xf32>
    %40 = arith.mulf %38, %39 : vector<8x128xf32>
    %41 = arith.addf %31, %40 : vector<8x128xf32>
    %cst_24 = arith.constant 5.000000e-01 : f32
    %42 = vector.broadcast %cst_24 : f32 to vector<8x128xf32>
    %43 = arith.mulf %42, %23 : vector<8x128xf32>
    %44 = math.tanh %43 : vector<8x128xf32>
    %cst_25 = arith.constant 1.000000e+00 : f32
    %45 = vector.broadcast %cst_25 : f32 to vector<8x128xf32>
    %46 = arith.addf %44, %45 : vector<8x128xf32>
    %cst_26 = arith.constant 5.000000e-01 : f32
    %47 = vector.broadcast %cst_26 : f32 to vector<8x128xf32>
    %48 = arith.mulf %47, %46 : vector<8x128xf32>
    %49 = math.tanh %41 : vector<8x128xf32>
    %50 = arith.mulf %48, %49 : vector<8x128xf32>
    %51 = arith.index_cast %c0_i32_13 : i32 to index
    %c0_27 = arith.constant 0 : index
    %c0_28 = arith.constant 0 : index
    %52 = vector.load %arg9[%51, %c0_27, %c0_28] : memref<8x8x128xf32, #tpu.memory_space<vmem>>, vector<1x8x128xf32>
    %53 = vector.shape_cast %52 : vector<1x8x128xf32> to vector<8x128xf32>
    %54 = vector.shape_cast %50 : vector<8x128xf32> to vector<1x8x128xf32>
    tpu.vector_store %arg9[%51, %c0_27, %c0_28], %54 {strides = array<i32>} : memref<8x8x128xf32, #tpu.memory_space<vmem>>, vector<1x8x128xf32>,
    %c1_i32 = arith.constant 1 : i32
    %c8_i32_29 = arith.constant 8 : i32
    %55 = arith.muli %c1_i32, %c8_i32_29 : i32
    %56 = tpu.assume_multiple %55, 8 : i32
    %57 = arith.index_cast %56 : i32 to index
    %c0_30 = arith.constant 0 : index
    %58 = vector.load %arg12[%57, %c0_30] : memref<64x512xf32, #tpu.memory_space<vmem>>, vector<8x512xf32>
    %c0_31 = arith.constant 0 : index
    %c0_32 = arith.constant 0 : index
    %59 = vector.load %arg4[%c0_31, %c0_32] : memref<128x512xf32, #tpu.memory_space<vmem>>, vector<128x512xf32>
    %cst_33 = arith.constant dense<0.000000e+00> : vector<8x512xf32>
    %60 = tpu.matmul %50, %59, %cst_33 {dimension_numbers = #tpu.dot_dimension_numbers<[1], [0], [0], [1], [0, 0, 1, 1], [], []>} : vector<8x128xf32>, vector<128x512xf32>, vector<8x512xf32> -> vector<8x512xf32>
    %61 = arith.addf %58, %60 : vector<8x512xf32>
    %62 = vector.extract_strided_slice %61 {offsets = [0, 0], sizes = [8, 128], strides = [1, 1]} : vector<8x512xf32> to vector<8x128xf32>
    %63 = vector.extract_strided_slice %61 {offsets = [0, 128], sizes = [8, 128], strides = [1, 1]} : vector<8x512xf32> to vector<8x128xf32>
    %64 = vector.extract_strided_slice %61 {offsets = [0, 256], sizes = [8, 128], strides = [1, 1]} : vector<8x512xf32> to vector<8x128xf32>
    %65 = vector.extract_strided_slice %61 {offsets = [0, 384], sizes = [8, 128], strides = [1, 1]} : vector<8x512xf32> to vector<8x128xf32>
    %cst_34 = arith.constant 5.000000e-01 : f32
    %66 = vector.broadcast %cst_34 : f32 to vector<8x128xf32>
    %67 = arith.mulf %66, %63 : vector<8x128xf32>
    %68 = math.tanh %67 : vector<8x128xf32>
    %cst_35 = arith.constant 1.000000e+00 : f32
    %69 = vector.broadcast %cst_35 : f32 to vector<8x128xf32>
    %70 = arith.addf %68, %69 : vector<8x128xf32>
    %cst_36 = arith.constant 5.000000e-01 : f32
    %71 = vector.broadcast %cst_36 : f32 to vector<8x128xf32>
    %72 = arith.mulf %71, %70 : vector<8x128xf32>
    %73 = arith.mulf %72, %41 : vector<8x128xf32>
    %cst_37 = arith.constant 5.000000e-01 : f32
    %74 = vector.broadcast %cst_37 : f32 to vector<8x128xf32>
    %75 = arith.mulf %74, %62 : vector<8x128xf32>
    %76 = math.tanh %75 : vector<8x128xf32>
    %cst_38 = arith.constant 1.000000e+00 : f32
    %77 = vector.broadcast %cst_38 : f32 to vector<8x128xf32>
    %78 = arith.addf %76, %77 : vector<8x128xf32>
    %cst_39 = arith.constant 5.000000e-01 : f32
    %79 = vector.broadcast %cst_39 : f32 to vector<8x128xf32>
    %80 = arith.mulf %79, %78 : vector<8x128xf32>
    %81 = math.tanh %64 : vector<8x128xf32>
    %82 = arith.mulf %80, %81 : vector<8x128xf32>
    %83 = arith.addf %73, %82 : vector<8x128xf32>
    %cst_40 = arith.constant 5.000000e-01 : f32
    %84 = vector.broadcast %cst_40 : f32 to vector<8x128xf32>
    %85 = arith.mulf %84, %65 : vector<8x128xf32>
    %86 = math.tanh %85 : vector<8x128xf32>
    %cst_41 = arith.constant 1.000000e+00 : f32
    %87 = vector.broadcast %cst_41 : f32 to vector<8x128xf32>
    %88 = arith.addf %86, %87 : vector<8x128xf32>
    %cst_42 = arith.constant 5.000000e-01 : f32
    %89 = vector.broadcast %cst_42 : f32 to vector<8x128xf32>
    %90 = arith.mulf %89, %88 : vector<8x128xf32>
    %91 = math.tanh %83 : vector<8x128xf32>
    %92 = arith.mulf %90, %91 : vector<8x128xf32>
    %93 = arith.index_cast %c1_i32 : i32 to index
    %c0_43 = arith.constant 0 : index
    %c0_44 = arith.constant 0 : index
    %94 = vector.load %arg9[%93, %c0_43, %c0_44] : memref<8x8x128xf32, #tpu.memory_space<vmem>>, vector<1x8x128xf32>
    %95 = vector.shape_cast %94 : vector<1x8x128xf32> to vector<8x128xf32>
    %96 = vector.shape_cast %92 : vector<8x128xf32> to vector<1x8x128xf32>
    tpu.vector_store %arg9[%93, %c0_43, %c0_44], %96 {strides = array<i32>} : memref<8x8x128xf32, #tpu.memory_space<vmem>>, vector<1x8x128xf32>,
    %c2_i32 = arith.constant 2 : i32
    %c8_i32_45 = arith.constant 8 : i32
    %97 = arith.muli %c2_i32, %c8_i32_45 : i32
    %98 = tpu.assume_multiple %97, 8 : i32
    %99 = arith.index_cast %98 : i32 to index
    %c0_46 = arith.constant 0 : index
    %100 = vector.load %arg12[%99, %c0_46] : memref<64x512xf32, #tpu.memory_space<vmem>>, vector<8x512xf32>
    %c0_47 = arith.constant 0 : index
    %c0_48 = arith.constant 0 : index
    %101 = vector.load %arg4[%c0_47, %c0_48] : memref<128x512xf32, #tpu.memory_space<vmem>>, vector<128x512xf32>
    %cst_49 = arith.constant dense<0.000000e+00> : vector<8x512xf32>
    %102 = tpu.matmul %92, %101, %cst_49 {dimension_numbers = #tpu.dot_dimension_numbers<[1], [0], [0], [1], [0, 0, 1, 1], [], []>} : vector<8x128xf32>, vector<128x512xf32>, vector<8x512xf32> -> vector<8x512xf32>
    %103 = arith.addf %100, %102 : vector<8x512xf32>
    %104 = vector.extract_strided_slice %103 {offsets = [0, 0], sizes = [8, 128], strides = [1, 1]} : vector<8x512xf32> to vector<8x128xf32>
    %105 = vector.extract_strided_slice %103 {offsets = [0, 128], sizes = [8, 128], strides = [1, 1]} : vector<8x512xf32> to vector<8x128xf32>
    %106 = vector.extract_strided_slice %103 {offsets = [0, 256], sizes = [8, 128], strides = [1, 1]} : vector<8x512xf32> to vector<8x128xf32>
    %107 = vector.extract_strided_slice %103 {offsets = [0, 384], sizes = [8, 128], strides = [1, 1]} : vector<8x512xf32> to vector<8x128xf32>
    %cst_50 = arith.constant 5.000000e-01 : f32
    %108 = vector.broadcast %cst_50 : f32 to vector<8x128xf32>
    %109 = arith.mulf %108, %105 : vector<8x128xf32>
    %110 = math.tanh %109 : vector<8x128xf32>
    %cst_51 = arith.constant 1.000000e+00 : f32
    %111 = vector.broadcast %cst_51 : f32 to vector<8x128xf32>
    %112 = arith.addf %110, %111 : vector<8x128xf32>
    %cst_52 = arith.constant 5.000000e-01 : f32
    %113 = vector.broadcast %cst_52 : f32 to vector<8x128xf32>
    %114 = arith.mulf %113, %112 : vector<8x128xf32>
    %115 = arith.mulf %114, %83 : vector<8x128xf32>
    %cst_53 = arith.constant 5.000000e-01 : f32
    %116 = vector.broadcast %cst_53 : f32 to vector<8x128xf32>
    %117 = arith.mulf %116, %104 : vector<8x128xf32>
    %118 = math.tanh %117 : vector<8x128xf32>
    %cst_54 = arith.constant 1.000000e+00 : f32
    %119 = vector.broadcast %cst_54 : f32 to vector<8x128xf32>
    %120 = arith.addf %118, %119 : vector<8x128xf32>
    %cst_55 = arith.constant 5.000000e-01 : f32
    %121 = vector.broadcast %cst_55 : f32 to vector<8x128xf32>
    %122 = arith.mulf %121, %120 : vector<8x128xf32>
    %123 = math.tanh %106 : vector<8x128xf32>
    %124 = arith.mulf %122, %123 : vector<8x128xf32>
    %125 = arith.addf %115, %124 : vector<8x128xf32>
    %cst_56 = arith.constant 5.000000e-01 : f32
    %126 = vector.broadcast %cst_56 : f32 to vector<8x128xf32>
    %127 = arith.mulf %126, %107 : vector<8x128xf32>
    %128 = math.tanh %127 : vector<8x128xf32>
    %cst_57 = arith.constant 1.000000e+00 : f32
    %129 = vector.broadcast %cst_57 : f32 to vector<8x128xf32>
    %130 = arith.addf %128, %129 : vector<8x128xf32>
    %cst_58 = arith.constant 5.000000e-01 : f32
    %131 = vector.broadcast %cst_58 : f32 to vector<8x128xf32>
    %132 = arith.mulf %131, %130 : vector<8x128xf32>
    %133 = math.tanh %125 : vector<8x128xf32>
    %134 = arith.mulf %132, %133 : vector<8x128xf32>
    %135 = arith.index_cast %c2_i32 : i32 to index
    %c0_59 = arith.constant 0 : index
    %c0_60 = arith.constant 0 : index
    %136 = vector.load %arg9[%135, %c0_59, %c0_60] : memref<8x8x128xf32, #tpu.memory_space<vmem>>, vector<1x8x128xf32>
    %137 = vector.shape_cast %136 : vector<1x8x128xf32> to vector<8x128xf32>
    %138 = vector.shape_cast %134 : vector<8x128xf32> to vector<1x8x128xf32>
    tpu.vector_store %arg9[%135, %c0_59, %c0_60], %138 {strides = array<i32>} : memref<8x8x128xf32, #tpu.memory_space<vmem>>, vector<1x8x128xf32>,
    %c3_i32 = arith.constant 3 : i32
    %c8_i32_61 = arith.constant 8 : i32
    %139 = arith.muli %c3_i32, %c8_i32_61 : i32
    %140 = tpu.assume_multiple %139, 8 : i32
    %141 = arith.index_cast %140 : i32 to index
    %c0_62 = arith.constant 0 : index
    %142 = vector.load %arg12[%141, %c0_62] : memref<64x512xf32, #tpu.memory_space<vmem>>, vector<8x512xf32>
    %c0_63 = arith.constant 0 : index
    %c0_64 = arith.constant 0 : index
    %143 = vector.load %arg4[%c0_63, %c0_64] : memref<128x512xf32, #tpu.memory_space<vmem>>, vector<128x512xf32>
    %cst_65 = arith.constant dense<0.000000e+00> : vector<8x512xf32>
    %144 = tpu.matmul %134, %143, %cst_65 {dimension_numbers = #tpu.dot_dimension_numbers<[1], [0], [0], [1], [0, 0, 1, 1], [], []>} : vector<8x128xf32>, vector<128x512xf32>, vector<8x512xf32> -> vector<8x512xf32>
    %145 = arith.addf %142, %144 : vector<8x512xf32>
    %146 = vector.extract_strided_slice %145 {offsets = [0, 0], sizes = [8, 128], strides = [1, 1]} : vector<8x512xf32> to vector<8x128xf32>
    %147 = vector.extract_strided_slice %145 {offsets = [0, 128], sizes = [8, 128], strides = [1, 1]} : vector<8x512xf32> to vector<8x128xf32>
    %148 = vector.extract_strided_slice %145 {offsets = [0, 256], sizes = [8, 128], strides = [1, 1]} : vector<8x512xf32> to vector<8x128xf32>
    %149 = vector.extract_strided_slice %145 {offsets = [0, 384], sizes = [8, 128], strides = [1, 1]} : vector<8x512xf32> to vector<8x128xf32>
    %cst_66 = arith.constant 5.000000e-01 : f32
    %150 = vector.broadcast %cst_66 : f32 to vector<8x128xf32>
    %151 = arith.mulf %150, %147 : vector<8x128xf32>
    %152 = math.tanh %151 : vector<8x128xf32>
    %cst_67 = arith.constant 1.000000e+00 : f32
    %153 = vector.broadcast %cst_67 : f32 to vector<8x128xf32>
    %154 = arith.addf %152, %153 : vector<8x128xf32>
    %cst_68 = arith.constant 5.000000e-01 : f32
    %155 = vector.broadcast %cst_68 : f32 to vector<8x128xf32>
    %156 = arith.mulf %155, %154 : vector<8x128xf32>
    %157 = arith.mulf %156, %125 : vector<8x128xf32>
    %cst_69 = arith.constant 5.000000e-01 : f32
    %158 = vector.broadcast %cst_69 : f32 to vector<8x128xf32>
    %159 = arith.mulf %158, %146 : vector<8x128xf32>
    %160 = math.tanh %159 : vector<8x128xf32>
    %cst_70 = arith.constant 1.000000e+00 : f32
    %161 = vector.broadcast %cst_70 : f32 to vector<8x128xf32>
    %162 = arith.addf %160, %161 : vector<8x128xf32>
    %cst_71 = arith.constant 5.000000e-01 : f32
    %163 = vector.broadcast %cst_71 : f32 to vector<8x128xf32>
    %164 = arith.mulf %163, %162 : vector<8x128xf32>
    %165 = math.tanh %148 : vector<8x128xf32>
    %166 = arith.mulf %164, %165 : vector<8x128xf32>
    %167 = arith.addf %157, %166 : vector<8x128xf32>
    %cst_72 = arith.constant 5.000000e-01 : f32
    %168 = vector.broadcast %cst_72 : f32 to vector<8x128xf32>
    %169 = arith.mulf %168, %149 : vector<8x128xf32>
    %170 = math.tanh %169 : vector<8x128xf32>
    %cst_73 = arith.constant 1.000000e+00 : f32
    %171 = vector.broadcast %cst_73 : f32 to vector<8x128xf32>
    %172 = arith.addf %170, %171 : vector<8x128xf32>
    %cst_74 = arith.constant 5.000000e-01 : f32
    %173 = vector.broadcast %cst_74 : f32 to vector<8x128xf32>
    %174 = arith.mulf %173, %172 : vector<8x128xf32>
    %175 = math.tanh %167 : vector<8x128xf32>
    %176 = arith.mulf %174, %175 : vector<8x128xf32>
    %177 = arith.index_cast %c3_i32 : i32 to index
    %c0_75 = arith.constant 0 : index
    %c0_76 = arith.constant 0 : index
    %178 = vector.load %arg9[%177, %c0_75, %c0_76] : memref<8x8x128xf32, #tpu.memory_space<vmem>>, vector<1x8x128xf32>
    %179 = vector.shape_cast %178 : vector<1x8x128xf32> to vector<8x128xf32>
    %180 = vector.shape_cast %176 : vector<8x128xf32> to vector<1x8x128xf32>
    tpu.vector_store %arg9[%177, %c0_75, %c0_76], %180 {strides = array<i32>} : memref<8x8x128xf32, #tpu.memory_space<vmem>>, vector<1x8x128xf32>,
    %c4_i32 = arith.constant 4 : i32
    %c8_i32_77 = arith.constant 8 : i32
    %181 = arith.muli %c4_i32, %c8_i32_77 : i32
    %182 = tpu.assume_multiple %181, 8 : i32
    %183 = arith.index_cast %182 : i32 to index
    %c0_78 = arith.constant 0 : index
    %184 = vector.load %arg12[%183, %c0_78] : memref<64x512xf32, #tpu.memory_space<vmem>>, vector<8x512xf32>
    %c0_79 = arith.constant 0 : index
    %c0_80 = arith.constant 0 : index
    %185 = vector.load %arg4[%c0_79, %c0_80] : memref<128x512xf32, #tpu.memory_space<vmem>>, vector<128x512xf32>
    %cst_81 = arith.constant dense<0.000000e+00> : vector<8x512xf32>
    %186 = tpu.matmul %176, %185, %cst_81 {dimension_numbers = #tpu.dot_dimension_numbers<[1], [0], [0], [1], [0, 0, 1, 1], [], []>} : vector<8x128xf32>, vector<128x512xf32>, vector<8x512xf32> -> vector<8x512xf32>
    %187 = arith.addf %184, %186 : vector<8x512xf32>
    %188 = vector.extract_strided_slice %187 {offsets = [0, 0], sizes = [8, 128], strides = [1, 1]} : vector<8x512xf32> to vector<8x128xf32>
    %189 = vector.extract_strided_slice %187 {offsets = [0, 128], sizes = [8, 128], strides = [1, 1]} : vector<8x512xf32> to vector<8x128xf32>
    %190 = vector.extract_strided_slice %187 {offsets = [0, 256], sizes = [8, 128], strides = [1, 1]} : vector<8x512xf32> to vector<8x128xf32>
    %191 = vector.extract_strided_slice %187 {offsets = [0, 384], sizes = [8, 128], strides = [1, 1]} : vector<8x512xf32> to vector<8x128xf32>
    %cst_82 = arith.constant 5.000000e-01 : f32
    %192 = vector.broadcast %cst_82 : f32 to vector<8x128xf32>
    %193 = arith.mulf %192, %189 : vector<8x128xf32>
    %194 = math.tanh %193 : vector<8x128xf32>
    %cst_83 = arith.constant 1.000000e+00 : f32
    %195 = vector.broadcast %cst_83 : f32 to vector<8x128xf32>
    %196 = arith.addf %194, %195 : vector<8x128xf32>
    %cst_84 = arith.constant 5.000000e-01 : f32
    %197 = vector.broadcast %cst_84 : f32 to vector<8x128xf32>
    %198 = arith.mulf %197, %196 : vector<8x128xf32>
    %199 = arith.mulf %198, %167 : vector<8x128xf32>
    %cst_85 = arith.constant 5.000000e-01 : f32
    %200 = vector.broadcast %cst_85 : f32 to vector<8x128xf32>
    %201 = arith.mulf %200, %188 : vector<8x128xf32>
    %202 = math.tanh %201 : vector<8x128xf32>
    %cst_86 = arith.constant 1.000000e+00 : f32
    %203 = vector.broadcast %cst_86 : f32 to vector<8x128xf32>
    %204 = arith.addf %202, %203 : vector<8x128xf32>
    %cst_87 = arith.constant 5.000000e-01 : f32
    %205 = vector.broadcast %cst_87 : f32 to vector<8x128xf32>
    %206 = arith.mulf %205, %204 : vector<8x128xf32>
    %207 = math.tanh %190 : vector<8x128xf32>
    %208 = arith.mulf %206, %207 : vector<8x128xf32>
    %209 = arith.addf %199, %208 : vector<8x128xf32>
    %cst_88 = arith.constant 5.000000e-01 : f32
    %210 = vector.broadcast %cst_88 : f32 to vector<8x128xf32>
    %211 = arith.mulf %210, %191 : vector<8x128xf32>
    %212 = math.tanh %211 : vector<8x128xf32>
    %cst_89 = arith.constant 1.000000e+00 : f32
    %213 = vector.broadcast %cst_89 : f32 to vector<8x128xf32>
    %214 = arith.addf %212, %213 : vector<8x128xf32>
    %cst_90 = arith.constant 5.000000e-01 : f32
    %215 = vector.broadcast %cst_90 : f32 to vector<8x128xf32>
    %216 = arith.mulf %215, %214 : vector<8x128xf32>
    %217 = math.tanh %209 : vector<8x128xf32>
    %218 = arith.mulf %216, %217 : vector<8x128xf32>
    %219 = arith.index_cast %c4_i32 : i32 to index
    %c0_91 = arith.constant 0 : index
    %c0_92 = arith.constant 0 : index
    %220 = vector.load %arg9[%219, %c0_91, %c0_92] : memref<8x8x128xf32, #tpu.memory_space<vmem>>, vector<1x8x128xf32>
    %221 = vector.shape_cast %220 : vector<1x8x128xf32> to vector<8x128xf32>
    %222 = vector.shape_cast %218 : vector<8x128xf32> to vector<1x8x128xf32>
    tpu.vector_store %arg9[%219, %c0_91, %c0_92], %222 {strides = array<i32>} : memref<8x8x128xf32, #tpu.memory_space<vmem>>, vector<1x8x128xf32>,
    %c5_i32 = arith.constant 5 : i32
    %c8_i32_93 = arith.constant 8 : i32
    %223 = arith.muli %c5_i32, %c8_i32_93 : i32
    %224 = tpu.assume_multiple %223, 8 : i32
    %225 = arith.index_cast %224 : i32 to index
    %c0_94 = arith.constant 0 : index
    %226 = vector.load %arg12[%225, %c0_94] : memref<64x512xf32, #tpu.memory_space<vmem>>, vector<8x512xf32>
    %c0_95 = arith.constant 0 : index
    %c0_96 = arith.constant 0 : index
    %227 = vector.load %arg4[%c0_95, %c0_96] : memref<128x512xf32, #tpu.memory_space<vmem>>, vector<128x512xf32>
    %cst_97 = arith.constant dense<0.000000e+00> : vector<8x512xf32>
    %228 = tpu.matmul %218, %227, %cst_97 {dimension_numbers = #tpu.dot_dimension_numbers<[1], [0], [0], [1], [0, 0, 1, 1], [], []>} : vector<8x128xf32>, vector<128x512xf32>, vector<8x512xf32> -> vector<8x512xf32>
    %229 = arith.addf %226, %228 : vector<8x512xf32>
    %230 = vector.extract_strided_slice %229 {offsets = [0, 0], sizes = [8, 128], strides = [1, 1]} : vector<8x512xf32> to vector<8x128xf32>
    %231 = vector.extract_strided_slice %229 {offsets = [0, 128], sizes = [8, 128], strides = [1, 1]} : vector<8x512xf32> to vector<8x128xf32>
    %232 = vector.extract_strided_slice %229 {offsets = [0, 256], sizes = [8, 128], strides = [1, 1]} : vector<8x512xf32> to vector<8x128xf32>
    %233 = vector.extract_strided_slice %229 {offsets = [0, 384], sizes = [8, 128], strides = [1, 1]} : vector<8x512xf32> to vector<8x128xf32>
    %cst_98 = arith.constant 5.000000e-01 : f32
    %234 = vector.broadcast %cst_98 : f32 to vector<8x128xf32>
    %235 = arith.mulf %234, %231 : vector<8x128xf32>
    %236 = math.tanh %235 : vector<8x128xf32>
    %cst_99 = arith.constant 1.000000e+00 : f32
    %237 = vector.broadcast %cst_99 : f32 to vector<8x128xf32>
    %238 = arith.addf %236, %237 : vector<8x128xf32>
    %cst_100 = arith.constant 5.000000e-01 : f32
    %239 = vector.broadcast %cst_100 : f32 to vector<8x128xf32>
    %240 = arith.mulf %239, %238 : vector<8x128xf32>
    %241 = arith.mulf %240, %209 : vector<8x128xf32>
    %cst_101 = arith.constant 5.000000e-01 : f32
    %242 = vector.broadcast %cst_101 : f32 to vector<8x128xf32>
    %243 = arith.mulf %242, %230 : vector<8x128xf32>
    %244 = math.tanh %243 : vector<8x128xf32>
    %cst_102 = arith.constant 1.000000e+00 : f32
    %245 = vector.broadcast %cst_102 : f32 to vector<8x128xf32>
    %246 = arith.addf %244, %245 : vector<8x128xf32>
    %cst_103 = arith.constant 5.000000e-01 : f32
    %247 = vector.broadcast %cst_103 : f32 to vector<8x128xf32>
    %248 = arith.mulf %247, %246 : vector<8x128xf32>
    %249 = math.tanh %232 : vector<8x128xf32>
    %250 = arith.mulf %248, %249 : vector<8x128xf32>
    %251 = arith.addf %241, %250 : vector<8x128xf32>
    %cst_104 = arith.constant 5.000000e-01 : f32
    %252 = vector.broadcast %cst_104 : f32 to vector<8x128xf32>
    %253 = arith.mulf %252, %233 : vector<8x128xf32>
    %254 = math.tanh %253 : vector<8x128xf32>
    %cst_105 = arith.constant 1.000000e+00 : f32
    %255 = vector.broadcast %cst_105 : f32 to vector<8x128xf32>
    %256 = arith.addf %254, %255 : vector<8x128xf32>
    %cst_106 = arith.constant 5.000000e-01 : f32
    %257 = vector.broadcast %cst_106 : f32 to vector<8x128xf32>
    %258 = arith.mulf %257, %256 : vector<8x128xf32>
    %259 = math.tanh %251 : vector<8x128xf32>
    %260 = arith.mulf %258, %259 : vector<8x128xf32>
    %261 = arith.index_cast %c5_i32 : i32 to index
    %c0_107 = arith.constant 0 : index
    %c0_108 = arith.constant 0 : index
    %262 = vector.load %arg9[%261, %c0_107, %c0_108] : memref<8x8x128xf32, #tpu.memory_space<vmem>>, vector<1x8x128xf32>
    %263 = vector.shape_cast %262 : vector<1x8x128xf32> to vector<8x128xf32>
    %264 = vector.shape_cast %260 : vector<8x128xf32> to vector<1x8x128xf32>
    tpu.vector_store %arg9[%261, %c0_107, %c0_108], %264 {strides = array<i32>} : memref<8x8x128xf32, #tpu.memory_space<vmem>>, vector<1x8x128xf32>,
    %c6_i32 = arith.constant 6 : i32
    %c8_i32_109 = arith.constant 8 : i32
    %265 = arith.muli %c6_i32, %c8_i32_109 : i32
    %266 = tpu.assume_multiple %265, 8 : i32
    %267 = arith.index_cast %266 : i32 to index
    %c0_110 = arith.constant 0 : index
    %268 = vector.load %arg12[%267, %c0_110] : memref<64x512xf32, #tpu.memory_space<vmem>>, vector<8x512xf32>
    %c0_111 = arith.constant 0 : index
    %c0_112 = arith.constant 0 : index
    %269 = vector.load %arg4[%c0_111, %c0_112] : memref<128x512xf32, #tpu.memory_space<vmem>>, vector<128x512xf32>
    %cst_113 = arith.constant dense<0.000000e+00> : vector<8x512xf32>
    %270 = tpu.matmul %260, %269, %cst_113 {dimension_numbers = #tpu.dot_dimension_numbers<[1], [0], [0], [1], [0, 0, 1, 1], [], []>} : vector<8x128xf32>, vector<128x512xf32>, vector<8x512xf32> -> vector<8x512xf32>
    %271 = arith.addf %268, %270 : vector<8x512xf32>
    %272 = vector.extract_strided_slice %271 {offsets = [0, 0], sizes = [8, 128], strides = [1, 1]} : vector<8x512xf32> to vector<8x128xf32>
    %273 = vector.extract_strided_slice %271 {offsets = [0, 128], sizes = [8, 128], strides = [1, 1]} : vector<8x512xf32> to vector<8x128xf32>
    %274 = vector.extract_strided_slice %271 {offsets = [0, 256], sizes = [8, 128], strides = [1, 1]} : vector<8x512xf32> to vector<8x128xf32>
    %275 = vector.extract_strided_slice %271 {offsets = [0, 384], sizes = [8, 128], strides = [1, 1]} : vector<8x512xf32> to vector<8x128xf32>
    %cst_114 = arith.constant 5.000000e-01 : f32
    %276 = vector.broadcast %cst_114 : f32 to vector<8x128xf32>
    %277 = arith.mulf %276, %273 : vector<8x128xf32>
    %278 = math.tanh %277 : vector<8x128xf32>
    %cst_115 = arith.constant 1.000000e+00 : f32
    %279 = vector.broadcast %cst_115 : f32 to vector<8x128xf32>
    %280 = arith.addf %278, %279 : vector<8x128xf32>
    %cst_116 = arith.constant 5.000000e-01 : f32
    %281 = vector.broadcast %cst_116 : f32 to vector<8x128xf32>
    %282 = arith.mulf %281, %280 : vector<8x128xf32>
    %283 = arith.mulf %282, %251 : vector<8x128xf32>
    %cst_117 = arith.constant 5.000000e-01 : f32
    %284 = vector.broadcast %cst_117 : f32 to vector<8x128xf32>
    %285 = arith.mulf %284, %272 : vector<8x128xf32>
    %286 = math.tanh %285 : vector<8x128xf32>
    %cst_118 = arith.constant 1.000000e+00 : f32
    %287 = vector.broadcast %cst_118 : f32 to vector<8x128xf32>
    %288 = arith.addf %286, %287 : vector<8x128xf32>
    %cst_119 = arith.constant 5.000000e-01 : f32
    %289 = vector.broadcast %cst_119 : f32 to vector<8x128xf32>
    %290 = arith.mulf %289, %288 : vector<8x128xf32>
    %291 = math.tanh %274 : vector<8x128xf32>
    %292 = arith.mulf %290, %291 : vector<8x128xf32>
    %293 = arith.addf %283, %292 : vector<8x128xf32>
    %cst_120 = arith.constant 5.000000e-01 : f32
    %294 = vector.broadcast %cst_120 : f32 to vector<8x128xf32>
    %295 = arith.mulf %294, %275 : vector<8x128xf32>
    %296 = math.tanh %295 : vector<8x128xf32>
    %cst_121 = arith.constant 1.000000e+00 : f32
    %297 = vector.broadcast %cst_121 : f32 to vector<8x128xf32>
    %298 = arith.addf %296, %297 : vector<8x128xf32>
    %cst_122 = arith.constant 5.000000e-01 : f32
    %299 = vector.broadcast %cst_122 : f32 to vector<8x128xf32>
    %300 = arith.mulf %299, %298 : vector<8x128xf32>
    %301 = math.tanh %293 : vector<8x128xf32>
    %302 = arith.mulf %300, %301 : vector<8x128xf32>
    %303 = arith.index_cast %c6_i32 : i32 to index
    %c0_123 = arith.constant 0 : index
    %c0_124 = arith.constant 0 : index
    %304 = vector.load %arg9[%303, %c0_123, %c0_124] : memref<8x8x128xf32, #tpu.memory_space<vmem>>, vector<1x8x128xf32>
    %305 = vector.shape_cast %304 : vector<1x8x128xf32> to vector<8x128xf32>
    %306 = vector.shape_cast %302 : vector<8x128xf32> to vector<1x8x128xf32>
    tpu.vector_store %arg9[%303, %c0_123, %c0_124], %306 {strides = array<i32>} : memref<8x8x128xf32, #tpu.memory_space<vmem>>, vector<1x8x128xf32>,
    %c7_i32 = arith.constant 7 : i32
    %c8_i32_125 = arith.constant 8 : i32
    %307 = arith.muli %c7_i32, %c8_i32_125 : i32
    %308 = tpu.assume_multiple %307, 8 : i32
    %309 = arith.index_cast %308 : i32 to index
    %c0_126 = arith.constant 0 : index
    %310 = vector.load %arg12[%309, %c0_126] : memref<64x512xf32, #tpu.memory_space<vmem>>, vector<8x512xf32>
    %c0_127 = arith.constant 0 : index
    %c0_128 = arith.constant 0 : index
    %311 = vector.load %arg4[%c0_127, %c0_128] : memref<128x512xf32, #tpu.memory_space<vmem>>, vector<128x512xf32>
    %cst_129 = arith.constant dense<0.000000e+00> : vector<8x512xf32>
    %312 = tpu.matmul %302, %311, %cst_129 {dimension_numbers = #tpu.dot_dimension_numbers<[1], [0], [0], [1], [0, 0, 1, 1], [], []>} : vector<8x128xf32>, vector<128x512xf32>, vector<8x512xf32> -> vector<8x512xf32>
    %313 = arith.addf %310, %312 : vector<8x512xf32>
    %314 = vector.extract_strided_slice %313 {offsets = [0, 0], sizes = [8, 128], strides = [1, 1]} : vector<8x512xf32> to vector<8x128xf32>
    %315 = vector.extract_strided_slice %313 {offsets = [0, 128], sizes = [8, 128], strides = [1, 1]} : vector<8x512xf32> to vector<8x128xf32>
    %316 = vector.extract_strided_slice %313 {offsets = [0, 256], sizes = [8, 128], strides = [1, 1]} : vector<8x512xf32> to vector<8x128xf32>
    %317 = vector.extract_strided_slice %313 {offsets = [0, 384], sizes = [8, 128], strides = [1, 1]} : vector<8x512xf32> to vector<8x128xf32>
    %cst_130 = arith.constant 5.000000e-01 : f32
    %318 = vector.broadcast %cst_130 : f32 to vector<8x128xf32>
    %319 = arith.mulf %318, %315 : vector<8x128xf32>
    %320 = math.tanh %319 : vector<8x128xf32>
    %cst_131 = arith.constant 1.000000e+00 : f32
    %321 = vector.broadcast %cst_131 : f32 to vector<8x128xf32>
    %322 = arith.addf %320, %321 : vector<8x128xf32>
    %cst_132 = arith.constant 5.000000e-01 : f32
    %323 = vector.broadcast %cst_132 : f32 to vector<8x128xf32>
    %324 = arith.mulf %323, %322 : vector<8x128xf32>
    %325 = arith.mulf %324, %293 : vector<8x128xf32>
    %cst_133 = arith.constant 5.000000e-01 : f32
    %326 = vector.broadcast %cst_133 : f32 to vector<8x128xf32>
    %327 = arith.mulf %326, %314 : vector<8x128xf32>
    %328 = math.tanh %327 : vector<8x128xf32>
    %cst_134 = arith.constant 1.000000e+00 : f32
    %329 = vector.broadcast %cst_134 : f32 to vector<8x128xf32>
    %330 = arith.addf %328, %329 : vector<8x128xf32>
    %cst_135 = arith.constant 5.000000e-01 : f32
    %331 = vector.broadcast %cst_135 : f32 to vector<8x128xf32>
    %332 = arith.mulf %331, %330 : vector<8x128xf32>
    %333 = math.tanh %316 : vector<8x128xf32>
    %334 = arith.mulf %332, %333 : vector<8x128xf32>
    %335 = arith.addf %325, %334 : vector<8x128xf32>
    %cst_136 = arith.constant 5.000000e-01 : f32
    %336 = vector.broadcast %cst_136 : f32 to vector<8x128xf32>
    %337 = arith.mulf %336, %317 : vector<8x128xf32>
    %338 = math.tanh %337 : vector<8x128xf32>
    %cst_137 = arith.constant 1.000000e+00 : f32
    %339 = vector.broadcast %cst_137 : f32 to vector<8x128xf32>
    %340 = arith.addf %338, %339 : vector<8x128xf32>
    %cst_138 = arith.constant 5.000000e-01 : f32
    %341 = vector.broadcast %cst_138 : f32 to vector<8x128xf32>
    %342 = arith.mulf %341, %340 : vector<8x128xf32>
    %343 = math.tanh %335 : vector<8x128xf32>
    %344 = arith.mulf %342, %343 : vector<8x128xf32>
    %345 = arith.index_cast %c7_i32 : i32 to index
    %c0_139 = arith.constant 0 : index
    %c0_140 = arith.constant 0 : index
    %346 = vector.load %arg9[%345, %c0_139, %c0_140] : memref<8x8x128xf32, #tpu.memory_space<vmem>>, vector<1x8x128xf32>
    %347 = vector.shape_cast %346 : vector<1x8x128xf32> to vector<8x128xf32>
    %348 = vector.shape_cast %344 : vector<8x128xf32> to vector<1x8x128xf32>
    tpu.vector_store %arg9[%345, %c0_139, %c0_140], %348 {strides = array<i32>} : memref<8x8x128xf32, #tpu.memory_space<vmem>>, vector<1x8x128xf32>,
    %c8_i32_141 = arith.constant 8 : i32
    %c0_142 = arith.constant 0 : index
    %c0_143 = arith.constant 0 : index
    %349 = vector.load %arg13[%c0_142, %c0_143] : memref<8x128xf32, #tpu.memory_space<vmem>>, vector<8x128xf32>
    tpu.vector_store %arg13[%c0_142, %c0_143], %335 {strides = array<i32>} : memref<8x128xf32, #tpu.memory_space<vmem>>, vector<8x128xf32>,
    %c0_144 = arith.constant 0 : index
    %c0_145 = arith.constant 0 : index
    %350 = vector.load %arg14[%c0_144, %c0_145] : memref<8x128xf32, #tpu.memory_space<vmem>>, vector<8x128xf32>
    tpu.vector_store %arg14[%c0_144, %c0_145], %344 {strides = array<i32>} : memref<8x128xf32, #tpu.memory_space<vmem>>, vector<8x128xf32>,
    %c0_i32_146 = arith.constant 0 : i32
    %351 = arith.cmpi eq, %arg1, %c0_i32_146 : i32
    %352 = arith.extui %351 : i1 to i32
    %c0_i32_147 = arith.constant 0 : i32
    %353 = arith.cmpi ne, %352, %c0_i32_147 : i32
    scf.if %353 {
      %c0_148 = arith.constant 0 : index
      %c0_149 = arith.constant 0 : index
      %354 = vector.load %arg13[%c0_148, %c0_149] : memref<8x128xf32, #tpu.memory_space<vmem>>, vector<8x128xf32>
      %c0_150 = arith.constant 0 : index
      %c0_151 = arith.constant 0 : index
      %355 = vector.load %arg10[%c0_150, %c0_151] : memref<8x128xf32, #tpu.memory_space<vmem>>, vector<8x128xf32>
      tpu.vector_store %arg10[%c0_150, %c0_151], %354 {strides = array<i32>} : memref<8x128xf32, #tpu.memory_space<vmem>>, vector<8x128xf32>,
      %c0_152 = arith.constant 0 : index
      %c0_153 = arith.constant 0 : index
      %356 = vector.load %arg14[%c0_152, %c0_153] : memref<8x128xf32, #tpu.memory_space<vmem>>, vector<8x128xf32>
      %c0_154 = arith.constant 0 : index
      %c0_155 = arith.constant 0 : index
      %357 = vector.load %arg11[%c0_154, %c0_155] : memref<8x128xf32, #tpu.memory_space<vmem>>, vector<8x128xf32>
      tpu.vector_store %arg11[%c0_154, %c0_155], %356 {strides = array<i32>} : memref<8x128xf32, #tpu.memory_space<vmem>>, vector<8x128xf32>,
    } else {
    }
    return
  }
  func.func @transform_0(%arg0: i32, %arg1: i32) -> (i32, i32, i32) {
    %c0_i32 = arith.constant 0 : i32
    %c0_i32_0 = arith.constant 0 : i32
    return %arg1, %arg0, %c0_i32 : i32, i32, i32
  }
  func.func @transform_1(%arg0: i32, %arg1: i32) -> (i32, i32) {
    %c0_i32 = arith.constant 0 : i32
    %c0_i32_0 = arith.constant 0 : i32
    %c0_i32_1 = arith.constant 0 : i32
    return %c0_i32, %c0_i32_0 : i32, i32
  }
  func.func @transform_2(%arg0: i32, %arg1: i32) -> (i32, i32) {
    %c0_i32 = arith.constant 0 : i32
    %c0_i32_0 = arith.constant 0 : i32
    %c0_i32_1 = arith.constant 0 : i32
    return %c0_i32, %c0_i32_0 : i32, i32
  }
  func.func @transform_3(%arg0: i32, %arg1: i32) -> (i32, i32) {
    %c0_i32 = arith.constant 0 : i32
    %c0_i32_0 = arith.constant 0 : i32
    %c0_i32_1 = arith.constant 0 : i32
    return %c0_i32, %c0_i32_0 : i32, i32
  }
  func.func @transform_4(%arg0: i32, %arg1: i32) -> (i32, i32) {
    %c0_i32 = arith.constant 0 : i32
    %c0_i32_0 = arith.constant 0 : i32
    %c0_i32_1 = arith.constant 0 : i32
    return %c0_i32, %c0_i32_0 : i32, i32
  }
  func.func @transform_5(%arg0: i32, %arg1: i32) -> (i32, i32) {
    %c0_i32 = arith.constant 0 : i32
    %c0_i32_0 = arith.constant 0 : i32
    %c0_i32_1 = arith.constant 0 : i32
    return %c0_i32, %c0_i32_0 : i32, i32
  }
  func.func @transform_6(%arg0: i32, %arg1: i32) -> (i32, i32) {
    %c0_i32 = arith.constant 0 : i32
    %c0_i32_0 = arith.constant 0 : i32
    %c0_i32_1 = arith.constant 0 : i32
    return %c0_i32, %c0_i32_0 : i32, i32
  }
  func.func @transform_7(%arg0: i32, %arg1: i32) -> (i32, i32, i32) {
    %c0_i32 = arith.constant 0 : i32
    %c0_i32_0 = arith.constant 0 : i32
    return %arg1, %arg0, %c0_i32 : i32, i32, i32
  }
  func.func @transform_8(%arg0: i32, %arg1: i32) -> (i32, i32) {
    %c0_i32 = arith.constant 0 : i32
    %c0_i32_0 = arith.constant 0 : i32
    return %arg0, %c0_i32 : i32, i32
  }
  func.func @transform_9(%arg0: i32, %arg1: i32) -> (i32, i32) {
    %c0_i32 = arith.constant 0 : i32
    %c0_i32_0 = arith.constant 0 : i32
    return %arg0, %c0_i32 : i32, i32
  }
}

</mosaic_0001>

<llo_original>
// kernel: tpu_custom_call.1
$region0: #{tpu_custom_call.1}
  #allocation0 [shape = 'u32[]', space=smem, size = 0x4, offset = 0x4, fixed_abs, tag = 'smem constant byte address 0x4 - core index']
  #allocation1 [shape = 'u32[144,128]{1,0:T(1,128)}', space=vmem, size = 0x12000, scoped, tag = 'internal scratch']
  #allocation2 [shape = 'f32[64,512]{1,0:T(8,128)}', space=vmem, size = 0x20000, scoped, tag = 'scratch operand']
  #allocation3 [shape = 'f32[8,128]{1,0:T(8,128)}', space=vmem, size = 0x1000, scoped, tag = 'scratch operand']
  #allocation4 [shape = 'f32[8,128]{1,0:T(8,128)}', space=vmem, size = 0x1000, scoped, tag = 'scratch operand']
  %s0 = inlined_call_operand.hbm [shape: f32[8,8,128], index: 0, kind: input, shape index: {}]
  %s1 = inlined_call_operand.hbm [shape: f32[128,512], index: 1, kind: input, shape index: {}]
  %s2 = inlined_call_operand.hbm [shape: f32[128,512], index: 2, kind: input, shape index: {}]
  %s3 = inlined_call_operand.hbm [shape: f32[1,512], index: 3, kind: input, shape index: {}]
  %s4 = inlined_call_operand.hbm [shape: f32[1,128], index: 4, kind: input, shape index: {}]
  %s5 = inlined_call_operand.hbm [shape: f32[1,128], index: 5, kind: input, shape index: {}]
  %s6 = inlined_call_operand.hbm [shape: f32[1,128], index: 6, kind: input, shape index: {}]
  %s7 = inlined_call_operand.hbm [shape: f32[8,8,128], index: 7, kind: output, shape index: {0}]
  %s8 = inlined_call_operand.hbm [shape: f32[8,128], index: 8, kind: output, shape index: {1}]
  %s9 = inlined_call_operand.hbm [shape: f32[8,128], index: 9, kind: output, shape index: {2}]
  %10 = xla_tuple %s7, %s8, %s9
  %s11 = sld [smem:[#allocation0]]
  $region90: #{tpu_custom_call.1} parent=0
    _
  %s13 = ssub.s32 1, %s11
  %s14 = scalar_select 0, %s13, %s11
  $region1: #{tpu_custom_call.1} parent=0
    #allocation5 [shape = 'u8[32768]{0}', space=vmem, size = 0x8000, scoped, tag = 'input window, operand 0, single buffered']
    #allocation6 [shape = 's32[1]{0}', space=sflag, size = 0x4, scoped, tag = 'scoped memory for tpu_custom_call.1']
    #allocation7 [shape = 's32[1]{0}', space=sflag, size = 0x4, scoped, tag = 'scoped memory for tpu_custom_call.1']
    #allocation8 [shape = 'u8[262144]{0}', space=vmem, size = 0x40000, scoped, tag = 'input window, operand 1, single buffered']
    #allocation9 [shape = 's32[1]{0}', space=sflag, size = 0x4, scoped, tag = 'scoped memory for tpu_custom_call.1']
    #allocation10 [shape = 'u8[262144]{0}', space=vmem, size = 0x40000, scoped, tag = 'input window, operand 2, single buffered']
    #allocation11 [shape = 'u8[2048]{0}', space=vmem, size = 0x800, scoped, tag = 'input window, operand 3, single buffered']
    #allocation12 [shape = 's32[1]{0}', space=sflag, size = 0x4, scoped, tag = 'scoped memory for tpu_custom_call.1']
    #allocation13 [shape = 'u8[512]{0}', space=vmem, size = 0x400, scoped, tag = 'input window, operand 4, single buffered']
    #allocation14 [shape = 'u8[512]{0}', space=vmem, size = 0x400, scoped, tag = 'input window, operand 5, single buffered']
    #allocation15 [shape = 's32[1]{0}', space=sflag, size = 0x4, scoped, tag = 'scoped memory for tpu_custom_call.1']
    #allocation16 [shape = 'u8[512]{0}', space=vmem, size = 0x400, scoped, tag = 'input window, operand 6, single buffered']
    #allocation17 [shape = 'u8[32768]{0}', space=vmem, size = 0x8000, scoped, tag = 'output window, operand 0, single buffered']
    #allocation18 [shape = 'u8[4096]{0}', space=vmem, size = 0x1000, scoped, tag = 'output window, operand 1, single buffered']
    #allocation19 [shape = 's32[1]{0}', space=sflag, size = 0x4, scoped, tag = 'scoped memory for tpu_custom_call.1']
    #allocation20 [shape = 'u8[4096]{0}', space=vmem, size = 0x1000, scoped, tag = 'output window, operand 2, single buffered']
    %15 = vsyncpa [#allocation6], 0
    %16 = vsyncpa [#allocation9], 0
    %17 = vsyncpa [#allocation12], 0
    %18 = vsyncpa [#allocation15], 0
    %19 = vsyncpa [#allocation7], 0
    %20 = vsyncpa [#allocation19], 0
    // Predicated region
    $region2: #{tpu_custom_call.1} parent=1 // pred_check
      _
    $region3: #{tpu_custom_call.1} parent=1 // pred_check_branch
      %22 = sbr.rel (0) target = $region5
    $region4: #{tpu_custom_call.1} parent=1 // pred_region
      %s24 = ssub.s32 1024, 1024
      %25 = vsyncadd [#allocation6], %s24
      %s26 = sshll.u32 [#allocation5], 4
      %s27 = int_to_ptr.vmem [resolvable:$true] %s26
      %32 = dma.hbm_to_vmem [thread:$0]  %s0, 1024, %s27, [#allocation6], 128, 128, 8
    $region5: #{tpu_custom_call.1} parent=1 // pred_fallthru
      _
    // Predicated region
    $region6: #{tpu_custom_call.1} parent=1 // pred_check
      _
    $region7: #{tpu_custom_call.1} parent=1 // pred_check_branch
      %34 = sbr.rel (0) target = $region9
    $region8: #{tpu_custom_call.1} parent=1 // pred_region
      %s36 = ssub.s32 8192, 8192
      %37 = vsyncadd [#allocation9], %s36
      %s38 = sshll.u32 [#allocation8], 4
      %s39 = int_to_ptr.vmem [resolvable:$true] %s38
      %44 = dma.hbm_to_vmem [thread:$0]  %s1, 8192, %s39, [#allocation9], 512, 512, 32
    $region9: #{tpu_custom_call.1} parent=1 // pred_fallthru
      _
    // Predicated region
    $region10: #{tpu_custom_call.1} parent=1 // pred_check
      _
    $region11: #{tpu_custom_call.1} parent=1 // pred_check_branch
      %46 = sbr.rel (0) target = $region13
    $region12: #{tpu_custom_call.1} parent=1 // pred_region
      %s48 = ssub.s32 8192, 8192
      %49 = vsyncadd [#allocation9], %s48
      %s50 = sshll.u32 [#allocation10], 4
      %s51 = int_to_ptr.vmem [resolvable:$true] %s50
      %56 = dma.hbm_to_vmem [thread:$0]  %s2, 8192, %s51, [#allocation9], 512, 512, 32
    $region13: #{tpu_custom_call.1} parent=1 // pred_fallthru
      _
    // Predicated region
    $region14: #{tpu_custom_call.1} parent=1 // pred_check
      _
    $region15: #{tpu_custom_call.1} parent=1 // pred_check_branch
      %58 = sbr.rel (0) target = $region17
    $region16: #{tpu_custom_call.1} parent=1 // pred_region
      %s60 = ssub.s32 64, 64
      %61 = vsyncadd [#allocation12], %s60
      %s63 = sshll.u32 [#allocation11], 4
      %s64 = int_to_ptr.vmem [resolvable:$true] %s63
      %66 = dma.hbm_to_vmem [thread:$0]  %s3, 64, %s64, [#allocation12]
    $region17: #{tpu_custom_call.1} parent=1 // pred_fallthru
      _
    // Predicated region
    $region18: #{tpu_custom_call.1} parent=1 // pred_check
      _
    $region19: #{tpu_custom_call.1} parent=1 // pred_check_branch
      %68 = sbr.rel (0) target = $region21
    $region20: #{tpu_custom_call.1} parent=1 // pred_region
      %s70 = ssub.s32 16, 16
      %71 = vsyncadd [#allocation12], %s70
      %s73 = sshll.u32 [#allocation13], 4
      %s74 = int_to_ptr.vmem [resolvable:$true] %s73
      %76 = dma.hbm_to_vmem [thread:$0]  %s4, 16, %s74, [#allocation12]
    $region21: #{tpu_custom_call.1} parent=1 // pred_fallthru
      _
    // Predicated region
    $region22: #{tpu_custom_call.1} parent=1 // pred_check
      _
    $region23: #{tpu_custom_call.1} parent=1 // pred_check_branch
      %78 = sbr.rel (0) target = $region25
    $region24: #{tpu_custom_call.1} parent=1 // pred_region
      %s80 = ssub.s32 16, 16
      %81 = vsyncadd [#allocation15], %s80
      %s83 = sshll.u32 [#allocation14], 4
      %s84 = int_to_ptr.vmem [resolvable:$true] %s83
      %86 = dma.hbm_to_vmem [thread:$0]  %s5, 16, %s84, [#allocation15]
    $region25: #{tpu_custom_call.1} parent=1 // pred_fallthru
      _
    // Predicated region
    $region26: #{tpu_custom_call.1} parent=1 // pred_check
      _
    $region27: #{tpu_custom_call.1} parent=1 // pred_check_branch
      %88 = sbr.rel (0) target = $region29
    $region28: #{tpu_custom_call.1} parent=1 // pred_region
      %s90 = ssub.s32 16, 16
      %91 = vsyncadd [#allocation15], %s90
      %s93 = sshll.u32 [#allocation16], 4
      %s94 = int_to_ptr.vmem [resolvable:$true] %s93
      %96 = dma.hbm_to_vmem [thread:$0]  %s6, 16, %s94, [#allocation15]
    $region29: #{tpu_custom_call.1} parent=1 // pred_fallthru
      _
    // Predicated region
    $region30: #{tpu_custom_call.1} parent=1 // pred_check
      _
    $region31: #{tpu_custom_call.1} parent=1 // pred_check_branch
      %98 = sbr.rel (0) target = $region33
    $region32: #{tpu_custom_call.1} parent=1 // pred_region
      %99 = dma.done [#allocation6], 1024
    $region33: #{tpu_custom_call.1} parent=1 // pred_fallthru
      _
    // Predicated region
    $region34: #{tpu_custom_call.1} parent=1 // pred_check
      _
    $region35: #{tpu_custom_call.1} parent=1 // pred_check_branch
      %101 = sbr.rel (0) target = $region37
    $region36: #{tpu_custom_call.1} parent=1 // pred_region
      %102 = dma.done [#allocation9], 8192
    $region37: #{tpu_custom_call.1} parent=1 // pred_fallthru
      _
    // Predicated region
    $region38: #{tpu_custom_call.1} parent=1 // pred_check
      _
    $region39: #{tpu_custom_call.1} parent=1 // pred_check_branch
      %104 = sbr.rel (0) target = $region41
    $region40: #{tpu_custom_call.1} parent=1 // pred_region
      %105 = dma.done [#allocation9], 8192
    $region41: #{tpu_custom_call.1} parent=1 // pred_fallthru
      _
    // Predicated region
    $region42: #{tpu_custom_call.1} parent=1 // pred_check
      _
    $region43: #{tpu_custom_call.1} parent=1 // pred_check_branch
      %107 = sbr.rel (0) target = $region45
    $region44: #{tpu_custom_call.1} parent=1 // pred_region
      %108 = dma.done [#allocation12], 64
    $region45: #{tpu_custom_call.1} parent=1 // pred_fallthru
      _
    // Predicated region
    $region46: #{tpu_custom_call.1} parent=1 // pred_check
      _
    $region47: #{tpu_custom_call.1} parent=1 // pred_check_branch
      %110 = sbr.rel (0) target = $region49
    $region48: #{tpu_custom_call.1} parent=1 // pred_region
      %111 = dma.done [#allocation12], 16
    $region49: #{tpu_custom_call.1} parent=1 // pred_fallthru
      _
    // Predicated region
    $region50: #{tpu_custom_call.1} parent=1 // pred_check
      _
    $region51: #{tpu_custom_call.1} parent=1 // pred_check_branch
      %113 = sbr.rel (0) target = $region53
    $region52: #{tpu_custom_call.1} parent=1 // pred_region
      %114 = dma.done [#allocation15], 16
    $region53: #{tpu_custom_call.1} parent=1 // pred_fallthru
      _
    // Predicated region
    $region54: #{tpu_custom_call.1} parent=1 // pred_check
      _
    $region55: #{tpu_custom_call.1} parent=1 // pred_check_branch
      %116 = sbr.rel (0) target = $region57
    $region56: #{tpu_custom_call.1} parent=1 // pred_region
      %117 = dma.done [#allocation15], 16
    $region57: #{tpu_custom_call.1} parent=1 // pred_fallthru
      _
    %p118 = scmp.eq.s32.totalorder 0, 0
    // Predicated region
    $region58: #{tpu_custom_call.1} parent=1 // pred_check
      %p119 = pneg %p118
    $region59: #{tpu_custom_call.1} parent=1 // pred_check_branch
      %121 = sbr.rel (%p119) target = $region61
    $region60: #{tpu_custom_call.1} parent=1 // pred_region
      %122 = vst [vmem:[#allocation3] sm:$0xff] 0.0
      %123 = vst [vmem:[#allocation4] sm:$0xff] 0.0
    $region61: #{tpu_custom_call.1} parent=1 // pred_fallthru
      _
    %v124 = vld [vmem:[#allocation5] sm:$0xff]
    %v125 = vld [vmem:[#allocation5 + $0x8] sm:$0xff]
    %v126 = vld [vmem:[#allocation5 + $0x10] sm:$0xff]
    %v127 = vld [vmem:[#allocation5 + $0x18] sm:$0xff]
    %v128 = vld [vmem:[#allocation5 + $0x20] sm:$0xff]
    %v129 = vld [vmem:[#allocation5 + $0x28] sm:$0xff]
    %v130 = vld [vmem:[#allocation5 + $0x30] sm:$0xff]
    %v131 = vld [vmem:[#allocation5 + $0x38] sm:$0xff]
    %v132 = vld [vmem:[#allocation8] sm:$0xff]
    %v133 = vld [vmem:[#allocation8 + $0x8] sm:$0xff]
    %v134 = vld [vmem:[#allocation8 + $0x10] sm:$0xff]
    %v135 = vld [vmem:[#allocation8 + $0x18] sm:$0xff]
    %v136 = vld [vmem:[#allocation8 + $0x20] sm:$0xff]
    %v137 = vld [vmem:[#allocation8 + $0x28] sm:$0xff]
    %v138 = vld [vmem:[#allocation8 + $0x30] sm:$0xff]
    %v139 = vld [vmem:[#allocation8 + $0x38] sm:$0xff]
    %v140 = vld [vmem:[#allocation8 + $0x40] sm:$0xff]
    %v141 = vld [vmem:[#allocation8 + $0x48] sm:$0xff]
    %v142 = vld [vmem:[#allocation8 + $0x50] sm:$0xff]
    %v143 = vld [vmem:[#allocation8 + $0x58] sm:$0xff]
    %v144 = vld [vmem:[#allocation8 + $0x60] sm:$0xff]
    %v145 = vld [vmem:[#allocation8 + $0x68] sm:$0xff]
    %v146 = vld [vmem:[#allocation8 + $0x70] sm:$0xff]
    %v147 = vld [vmem:[#allocation8 + $0x78] sm:$0xff]
    %v148 = vld [vmem:[#allocation8 + $0x80] sm:$0xff]
    %v149 = vld [vmem:[#allocation8 + $0x88] sm:$0xff]
    %v150 = vld [vmem:[#allocation8 + $0x90] sm:$0xff]
    %v151 = vld [vmem:[#allocation8 + $0x98] sm:$0xff]
    %v152 = vld [vmem:[#allocation8 + $0xa0] sm:$0xff]
    %v153 = vld [vmem:[#allocation8 + $0xa8] sm:$0xff]
    %v154 = vld [vmem:[#allocation8 + $0xb0] sm:$0xff]
    %v155 = vld [vmem:[#allocation8 + $0xb8] sm:$0xff]
    %v156 = vld [vmem:[#allocation8 + $0xc0] sm:$0xff]
    %v157 = vld [vmem:[#allocation8 + $0xc8] sm:$0xff]
    %v158 = vld [vmem:[#allocation8 + $0xd0] sm:$0xff]
    %v159 = vld [vmem:[#allocation8 + $0xd8] sm:$0xff]
    %v160 = vld [vmem:[#allocation8 + $0xe0] sm:$0xff]
    %v161 = vld [vmem:[#allocation8 + $0xe8] sm:$0xff]
    %v162 = vld [vmem:[#allocation8 + $0xf0] sm:$0xff]
    %v163 = vld [vmem:[#allocation8 + $0xf8] sm:$0xff]
    %v164 = vld [vmem:[#allocation8 + $0x100] sm:$0xff]
    %v165 = vld [vmem:[#allocation8 + $0x108] sm:$0xff]
    %v166 = vld [vmem:[#allocation8 + $0x110] sm:$0xff]
    %v167 = vld [vmem:[#allocation8 + $0x118] sm:$0xff]
    %v168 = vld [vmem:[#allocation8 + $0x120] sm:$0xff]
    %v169 = vld [vmem:[#allocation8 + $0x128] sm:$0xff]
    %v170 = vld [vmem:[#allocation8 + $0x130] sm:$0xff]
    %v171 = vld [vmem:[#allocation8 + $0x138] sm:$0xff]
    %v172 = vld [vmem:[#allocation8 + $0x140] sm:$0xff]
    %v173 = vld [vmem:[#allocation8 + $0x148] sm:$0xff]
    %v174 = vld [vmem:[#allocation8 + $0x150] sm:$0xff]
    %v175 = vld [vmem:[#allocation8 + $0x158] sm:$0xff]
    %v176 = vld [vmem:[#allocation8 + $0x160] sm:$0xff]
    %v177 = vld [vmem:[#allocation8 + $0x168] sm:$0xff]
    %v178 = vld [vmem:[#allocation8 + $0x170] sm:$0xff]
    %v179 = vld [vmem:[#allocation8 + $0x178] sm:$0xff]
    %v180 = vld [vmem:[#allocation8 + $0x180] sm:$0xff]
    %v181 = vld [vmem:[#allocation8 + $0x188] sm:$0xff]
    %v182 = vld [vmem:[#allocation8 + $0x190] sm:$0xff]
    %v183 = vld [vmem:[#allocation8 + $0x198] sm:$0xff]
    %v184 = vld [vmem:[#allocation8 + $0x1a0] sm:$0xff]
    %v185 = vld [vmem:[#allocation8 + $0x1a8] sm:$0xff]
    %v186 = vld [vmem:[#allocation8 + $0x1b0] sm:$0xff]
    %v187 = vld [vmem:[#allocation8 + $0x1b8] sm:$0xff]
    %v188 = vld [vmem:[#allocation8 + $0x1c0] sm:$0xff]
    %v189 = vld [vmem:[#allocation8 + $0x1c8] sm:$0xff]
    %v190 = vld [vmem:[#allocation8 + $0x1d0] sm:$0xff]
    %v191 = vld [vmem:[#allocation8 + $0x1d8] sm:$0xff]
    %v192 = vld [vmem:[#allocation8 + $0x1e0] sm:$0xff]
    %v193 = vld [vmem:[#allocation8 + $0x1e8] sm:$0xff]
    %v194 = vld [vmem:[#allocation8 + $0x1f0] sm:$0xff]
    %v195 = vld [vmem:[#allocation8 + $0x1f8] sm:$0xff]
    %v196 = vld [vmem:[#allocation11] sm:$0xf]
    %v198 = vlaneseq
    %v199 = vshrl.u32 %v198, 7
    %v200 = vsub.s32 0, %v199
    %v201 = vrot.slane %v196, %v200
    %v202 = vlaneseq
    %v203 = vshrl.u32 %v202, 7
    %v204 = vsub.s32 1, %v203
    %v205 = vrot.slane %v196, %v204
    %v206 = vlaneseq
    %v207 = vshrl.u32 %v206, 7
    %v208 = vsub.s32 2, %v207
    %v209 = vrot.slane %v196, %v208
    %v210 = vlaneseq
    %v211 = vshrl.u32 %v210, 7
    %v212 = vsub.s32 3, %v211
    %v213 = vrot.slane %v196, %v212
    %218 = vmatprep.subr.mxu0 %v133
    %219 = vmatpush1.msra.mxu0 %v132
    %220 = vmatprep.subr.mxu0 %v137
    %221 = vmatpush1.msra.mxu0 %v136
    %222 = vmatprep.subr.mxu0 %v141
    %223 = vmatpush1.msra.mxu0 %v140
    %224 = vmatprep.subr.mxu0 %v145
    %225 = vmatpush1.msra.mxu0 %v144
    %226 = vmatprep.subr.mxu0 %v149
    %227 = vmatpush1.msra.mxu0 %v148
    %228 = vmatprep.subr.mxu0 %v153
    %229 = vmatpush1.msra.mxu0 %v152
    %230 = vmatprep.subr.mxu0 %v157
    %231 = vmatpush1.msra.mxu0 %v156
    %232 = vmatprep.subr.mxu0 %v161
    %233 = vmatpush1.msra.mxu0 %v160
    %234 = vmatprep.subr.mxu0 %v165
    %235 = vmatpush1.msra.mxu0 %v164
    %236 = vmatprep.subr.mxu0 %v169
    %237 = vmatpush1.msra.mxu0 %v168
    %238 = vmatprep.subr.mxu0 %v173
    %239 = vmatpush1.msra.mxu0 %v172
    %240 = vmatprep.subr.mxu0 %v177
    %241 = vmatpush1.msra.mxu0 %v176
    %242 = vmatprep.subr.mxu0 %v181
    %243 = vmatpush1.msra.mxu0 %v180
    %244 = vmatprep.subr.mxu0 %v185
    %245 = vmatpush1.msra.mxu0 %v184
    %246 = vmatprep.subr.mxu0 %v189
    %247 = vmatpush1.msra.mxu0 %v188
    %248 = vmatprep.subr.mxu0 %v193
    %249 = vmatpush1.msra.mxu0 %v192
    %250 = vmatprep.subr.mxu0 0.0
    %251 = vmatpush1.msra.mxu0 0.0
    %252 = vmatprep.subr.mxu0 0.0
    %253 = vmatpush1.msra.mxu0 0.0
    %254 = vmatprep.subr.mxu0 0.0
    %255 = vmatpush1.msra.mxu0 0.0
    %256 = vmatprep.subr.mxu0 0.0
    %257 = vmatpush1.msra.mxu0 0.0
    %258 = vmatprep.subr.mxu0 0.0
    %259 = vmatpush1.msra.mxu0 0.0
    %260 = vmatprep.subr.mxu0 0.0
    %261 = vmatpush1.msra.mxu0 0.0
    %262 = vmatprep.subr.mxu0 0.0
    %263 = vmatpush1.msra.mxu0 0.0
    %264 = vmatprep.subr.mxu0 0.0
    %265 = vmatpush1.msra.mxu0 0.0
    %266 = vmatprep.subr.mxu0 0.0
    %267 = vmatpush1.msra.mxu0 0.0
    %268 = vmatprep.subr.mxu0 0.0
    %269 = vmatpush1.msra.mxu0 0.0
    %270 = vmatprep.subr.mxu0 0.0
    %271 = vmatpush1.msra.mxu0 0.0
    %272 = vmatprep.subr.mxu0 0.0
    %273 = vmatpush1.msra.mxu0 0.0
    %274 = vmatprep.subr.mxu0 0.0
    %275 = vmatpush1.msra.mxu0 0.0
    %276 = vmatprep.subr.mxu0 0.0
    %277 = vmatpush1.msra.mxu0 0.0
    %278 = vmatprep.subr.mxu0 0.0
    %279 = vmatpush1.msra.mxu0 0.0
    %280 = vmatprep.subr.mxu0 0.0
    %281 = vmatpush1.msra.mxu0 0.0
    %282 = vmatprep.mubr.f32.mxu0 0.0
    %283 = vmatmul.mubr.f32.gmra.mrb[0].mxu0 %v124
    %v284 = vpop.f32.mrb[0].mxu0
    %v285 = vadd.f32 %v201, %v284
    %v286 = vpop.f32.mrb[0].mxu0
    %v287 = vadd.f32 %v205, %v286
    %288 = vmatprep.mubr.f32.mxu0 0.0
    %289 = vmatmul.mubr.f32.gmra.mrb[0].mxu0 %v125
    %v290 = vpop.f32.mrb[0].mxu0
    %v291 = vadd.f32 %v201, %v290
    %v292 = vpop.f32.mrb[0].mxu0
    %v293 = vadd.f32 %v205, %v292
    %294 = vmatprep.mubr.f32.mxu0 0.0
    %295 = vmatmul.mubr.f32.gmra.mrb[0].mxu0 %v126
    %v296 = vpop.f32.mrb[0].mxu0
    %v297 = vadd.f32 %v201, %v296
    %v298 = vpop.f32.mrb[0].mxu0
    %v299 = vadd.f32 %v205, %v298
    %300 = vmatprep.mubr.f32.mxu0 0.0
    %301 = vmatmul.mubr.f32.gmra.mrb[0].mxu0 %v127
    %v302 = vpop.f32.mrb[0].mxu0
    %v303 = vadd.f32 %v201, %v302
    %v304 = vpop.f32.mrb[0].mxu0
    %v305 = vadd.f32 %v205, %v304
    %306 = vmatprep.mubr.f32.mxu0 0.0
    %307 = vmatmul.mubr.f32.gmra.mrb[0].mxu0 %v128
    %v308 = vpop.f32.mrb[0].mxu0
    %v309 = vadd.f32 %v201, %v308
    %v310 = vpop.f32.mrb[0].mxu0
    %v311 = vadd.f32 %v205, %v310
    %312 = vmatprep.mubr.f32.mxu0 0.0
    %313 = vmatmul.mubr.f32.gmra.mrb[0].mxu0 %v129
    %v314 = vpop.f32.mrb[0].mxu0
    %v315 = vadd.f32 %v201, %v314
    %v316 = vpop.f32.mrb[0].mxu0
    %v317 = vadd.f32 %v205, %v316
    %318 = vmatprep.mubr.f32.mxu0 0.0
    %319 = vmatmul.mubr.f32.gmra.mrb[0].mxu0 %v130
    %v320 = vpop.f32.mrb[0].mxu0
    %v321 = vadd.f32 %v201, %v320
    %v322 = vpop.f32.mrb[0].mxu0
    %v323 = vadd.f32 %v205, %v322
    %324 = vmatprep.mubr.f32.mxu0 0.0
    %325 = vmatmul.mubr.f32.gmra.mrb[0].mxu0 %v131
    %v326 = vpop.f32.mrb[0].mxu0
    %v327 = vadd.f32 %v201, %v326
    %v328 = vpop.f32.mrb[0].mxu0
    %v329 = vadd.f32 %v205, %v328
    %330 = vdwg.mxu0
    %331 = vmatprep.subr.mxu0 %v135
    %332 = vmatpush1.msra.mxu0 %v134
    %333 = vmatprep.subr.mxu0 %v139
    %334 = vmatpush1.msra.mxu0 %v138
    %335 = vmatprep.subr.mxu0 %v143
    %336 = vmatpush1.msra.mxu0 %v142
    %337 = vmatprep.subr.mxu0 %v147
    %338 = vmatpush1.msra.mxu0 %v146
    %339 = vmatprep.subr.mxu0 %v151
    %340 = vmatpush1.msra.mxu0 %v150
    %341 = vmatprep.subr.mxu0 %v155
    %342 = vmatpush1.msra.mxu0 %v154
    %343 = vmatprep.subr.mxu0 %v159
    %344 = vmatpush1.msra.mxu0 %v158
    %345 = vmatprep.subr.mxu0 %v163
    %346 = vmatpush1.msra.mxu0 %v162
    %347 = vmatprep.subr.mxu0 %v167
    %348 = vmatpush1.msra.mxu0 %v166
    %349 = vmatprep.subr.mxu0 %v171
    %350 = vmatpush1.msra.mxu0 %v170
    %351 = vmatprep.subr.mxu0 %v175
    %352 = vmatpush1.msra.mxu0 %v174
    %353 = vmatprep.subr.mxu0 %v179
    %354 = vmatpush1.msra.mxu0 %v178
    %355 = vmatprep.subr.mxu0 %v183
    %356 = vmatpush1.msra.mxu0 %v182
    %357 = vmatprep.subr.mxu0 %v187
    %358 = vmatpush1.msra.mxu0 %v186
    %359 = vmatprep.subr.mxu0 %v191
    %360 = vmatpush1.msra.mxu0 %v190
    %361 = vmatprep.subr.mxu0 %v195
    %362 = vmatpush1.msra.mxu0 %v194
    %363 = vmatprep.subr.mxu0 0.0
    %364 = vmatpush1.msra.mxu0 0.0
    %365 = vmatprep.subr.mxu0 0.0
    %366 = vmatpush1.msra.mxu0 0.0
    %367 = vmatprep.subr.mxu0 0.0
    %368 = vmatpush1.msra.mxu0 0.0
    %369 = vmatprep.subr.mxu0 0.0
    %370 = vmatpush1.msra.mxu0 0.0
    %371 = vmatprep.subr.mxu0 0.0
    %372 = vmatpush1.msra.mxu0 0.0
    %373 = vmatprep.subr.mxu0 0.0
    %374 = vmatpush1.msra.mxu0 0.0
    %375 = vmatprep.subr.mxu0 0.0
    %376 = vmatpush1.msra.mxu0 0.0
    %377 = vmatprep.subr.mxu0 0.0
    %378 = vmatpush1.msra.mxu0 0.0
    %379 = vmatprep.subr.mxu0 0.0
    %380 = vmatpush1.msra.mxu0 0.0
    %381 = vmatprep.subr.mxu0 0.0
    %382 = vmatpush1.msra.mxu0 0.0
    %383 = vmatprep.subr.mxu0 0.0
    %384 = vmatpush1.msra.mxu0 0.0
    %385 = vmatprep.subr.mxu0 0.0
    %386 = vmatpush1.msra.mxu0 0.0
    %387 = vmatprep.subr.mxu0 0.0
    %388 = vmatpush1.msra.mxu0 0.0
    %389 = vmatprep.subr.mxu0 0.0
    %390 = vmatpush1.msra.mxu0 0.0
    %391 = vmatprep.subr.mxu0 0.0
    %392 = vmatpush1.msra.mxu0 0.0
    %393 = vmatprep.subr.mxu0 0.0
    %394 = vmatpush1.msra.mxu0 0.0
    %395 = vmatprep.mubr.f32.mxu0 0.0
    %396 = vmatmul.mubr.f32.gmra.mrb[0].mxu0 %v124
    %v397 = vpop.f32.mrb[0].mxu0
    %v398 = vadd.f32 %v209, %v397
    %v399 = vpop.f32.mrb[0].mxu0
    %v400 = vadd.f32 %v213, %v399
    %401 = vmatprep.mubr.f32.mxu0 0.0
    %402 = vmatmul.mubr.f32.gmra.mrb[0].mxu0 %v125
    %v403 = vpop.f32.mrb[0].mxu0
    %v404 = vadd.f32 %v209, %v403
    %v405 = vpop.f32.mrb[0].mxu0
    %v406 = vadd.f32 %v213, %v405
    %407 = vmatprep.mubr.f32.mxu0 0.0
    %408 = vmatmul.mubr.f32.gmra.mrb[0].mxu0 %v126
    %v409 = vpop.f32.mrb[0].mxu0
    %v410 = vadd.f32 %v209, %v409
    %v411 = vpop.f32.mrb[0].mxu0
    %v412 = vadd.f32 %v213, %v411
    %413 = vmatprep.mubr.f32.mxu0 0.0
    %414 = vmatmul.mubr.f32.gmra.mrb[0].mxu0 %v127
    %v415 = vpop.f32.mrb[0].mxu0
    %v416 = vadd.f32 %v209, %v415
    %v417 = vpop.f32.mrb[0].mxu0
    %v418 = vadd.f32 %v213, %v417
    %419 = vmatprep.mubr.f32.mxu0 0.0
    %420 = vmatmul.mubr.f32.gmra.mrb[0].mxu0 %v128
    %v421 = vpop.f32.mrb[0].mxu0
    %v422 = vadd.f32 %v209, %v421
    %v423 = vpop.f32.mrb[0].mxu0
    %v424 = vadd.f32 %v213, %v423
    %425 = vmatprep.mubr.f32.mxu0 0.0
    %426 = vmatmul.mubr.f32.gmra.mrb[0].mxu0 %v129
    %v427 = vpop.f32.mrb[0].mxu0
    %v428 = vadd.f32 %v209, %v427
    %v429 = vpop.f32.mrb[0].mxu0
    %v430 = vadd.f32 %v213, %v429
    %431 = vmatprep.mubr.f32.mxu0 0.0
    %432 = vmatmul.mubr.f32.gmra.mrb[0].mxu0 %v130
    %v433 = vpop.f32.mrb[0].mxu0
    %v434 = vadd.f32 %v209, %v433
    %v435 = vpop.f32.mrb[0].mxu0
    %v436 = vadd.f32 %v213, %v435
    %437 = vmatprep.mubr.f32.mxu0 0.0
    %438 = vmatmul.mubr.f32.gmra.mrb[0].mxu0 %v131
    %v439 = vpop.f32.mrb[0].mxu0
    %v440 = vadd.f32 %v209, %v439
    %v441 = vpop.f32.mrb[0].mxu0
    %v442 = vadd.f32 %v213, %v441
    %443 = vdwg.mxu0
    %444 = vst [vmem:[#allocation2] sm:$0xff] %v285
    %445 = vst [vmem:[#allocation2 + $0x8] sm:$0xff] %v287
    %446 = vst [vmem:[#allocation2 + $0x10] sm:$0xff] %v398
    %447 = vst [vmem:[#allocation2 + $0x18] sm:$0xff] %v400
    %448 = vst [vmem:[#allocation2 + $0x20] sm:$0xff] %v291
    %449 = vst [vmem:[#allocation2 + $0x28] sm:$0xff] %v293
    %450 = vst [vmem:[#allocation2 + $0x30] sm:$0xff] %v404
    %451 = vst [vmem:[#allocation2 + $0x38] sm:$0xff] %v406
    %452 = vst [vmem:[#allocation2 + $0x40] sm:$0xff] %v297
    %453 = vst [vmem:[#allocation2 + $0x48] sm:$0xff] %v299
    %454 = vst [vmem:[#allocation2 + $0x50] sm:$0xff] %v410
    %455 = vst [vmem:[#allocation2 + $0x58] sm:$0xff] %v412
    %456 = vst [vmem:[#allocation2 + $0x60] sm:$0xff] %v303
    %457 = vst [vmem:[#allocation2 + $0x68] sm:$0xff] %v305
    %458 = vst [vmem:[#allocation2 + $0x70] sm:$0xff] %v416
    %459 = vst [vmem:[#allocation2 + $0x78] sm:$0xff] %v418
    %460 = vst [vmem:[#allocation2 + $0x80] sm:$0xff] %v309
    %461 = vst [vmem:[#allocation2 + $0x88] sm:$0xff] %v311
    %462 = vst [vmem:[#allocation2 + $0x90] sm:$0xff] %v422
    %463 = vst [vmem:[#allocation2 + $0x98] sm:$0xff] %v424
    %464 = vst [vmem:[#allocation2 + $0xa0] sm:$0xff] %v315
    %465 = vst [vmem:[#allocation2 + $0xa8] sm:$0xff] %v317
    %466 = vst [vmem:[#allocation2 + $0xb0] sm:$0xff] %v428
    %467 = vst [vmem:[#allocation2 + $0xb8] sm:$0xff] %v430
    %468 = vst [vmem:[#allocation2 + $0xc0] sm:$0xff] %v321
    %469 = vst [vmem:[#allocation2 + $0xc8] sm:$0xff] %v323
    %470 = vst [vmem:[#allocation2 + $0xd0] sm:$0xff] %v434
    %471 = vst [vmem:[#allocation2 + $0xd8] sm:$0xff] %v436
    %472 = vst [vmem:[#allocation2 + $0xe0] sm:$0xff] %v327
    %473 = vst [vmem:[#allocation2 + $0xe8] sm:$0xff] %v329
    %474 = vst [vmem:[#allocation2 + $0xf0] sm:$0xff] %v440
    %475 = vst [vmem:[#allocation2 + $0xf8] sm:$0xff] %v442
    %v476 = vld [vmem:[#allocation3] sm:$0xff]
    %v477 = vld [vmem:[#allocation4] sm:$0xff]
    %s478 = smul.u32 0, 4
    %s479 = smul.addr %s478, 8
    %s480 = scalar_lea.vmem [#allocation2], %s479
    %v481 = vld [vmem:[%s480] sm:$0xff]
    %v482 = vld [vmem:[%s480 + $0x8] sm:$0xff]
    %v483 = vld [vmem:[%s480 + $0x10] sm:$0xff]
    %v484 = vld [vmem:[%s480 + $0x18] sm:$0xff]
    %v485 = vld [vmem:[#allocation10] sm:$0xff]
    %v486 = vld [vmem:[#allocation10 + $0x8] sm:$0xff]
    %v487 = vld [vmem:[#allocation10 + $0x10] sm:$0xff]
    %v488 = vld [vmem:[#allocation10 + $0x18] sm:$0xff]
    %v489 = vld [vmem:[#allocation10 + $0x20] sm:$0xff]
    %v490 = vld [vmem:[#allocation10 + $0x28] sm:$0xff]
    %v491 = vld [vmem:[#allocation10 + $0x30] sm:$0xff]
    %v492 = vld [vmem:[#allocation10 + $0x38] sm:$0xff]
    %v493 = vld [vmem:[#allocation10 + $0x40] sm:$0xff]
    %v494 = vld [vmem:[#allocation10 + $0x48] sm:$0xff]
    %v495 = vld [vmem:[#allocation10 + $0x50] sm:$0xff]
    %v496 = vld [vmem:[#allocation10 + $0x58] sm:$0xff]
    %v497 = vld [vmem:[#allocation10 + $0x60] sm:$0xff]
    %v498 = vld [vmem:[#allocation10 + $0x68] sm:$0xff]
    %v499 = vld [vmem:[#allocation10 + $0x70] sm:$0xff]
    %v500 = vld [vmem:[#allocation10 + $0x78] sm:$0xff]
    %v501 = vld [vmem:[#allocation10 + $0x80] sm:$0xff]
    %v502 = vld [vmem:[#allocation10 + $0x88] sm:$0xff]
    %v503 = vld [vmem:[#allocation10 + $0x90] sm:$0xff]
    %v504 = vld [vmem:[#allocation10 + $0x98] sm:$0xff]
    %v505 = vld [vmem:[#allocation10 + $0xa0] sm:$0xff]
    %v506 = vld [vmem:[#allocation10 + $0xa8] sm:$0xff]
    %v507 = vld [vmem:[#allocation10 + $0xb0] sm:$0xff]
    %v508 = vld [vmem:[#allocation10 + $0xb8] sm:$0xff]
    %v509 = vld [vmem:[#allocation10 + $0xc0] sm:$0xff]
    %v510 = vld [vmem:[#allocation10 + $0xc8] sm:$0xff]
    %v511 = vld [vmem:[#allocation10 + $0xd0] sm:$0xff]
    %v512 = vld [vmem:[#allocation10 + $0xd8] sm:$0xff]
    %v513 = vld [vmem:[#allocation10 + $0xe0] sm:$0xff]
    %v514 = vld [vmem:[#allocation10 + $0xe8] sm:$0xff]
    %v515 = vld [vmem:[#allocation10 + $0xf0] sm:$0xff]
    %v516 = vld [vmem:[#allocation10 + $0xf8] sm:$0xff]
    %v517 = vld [vmem:[#allocation10 + $0x100] sm:$0xff]
    %v518 = vld [vmem:[#allocation10 + $0x108] sm:$0xff]
    %v519 = vld [vmem:[#allocation10 + $0x110] sm:$0xff]
    %v520 = vld [vmem:[#allocation10 + $0x118] sm:$0xff]
    %v521 = vld [vmem:[#allocation10 + $0x120] sm:$0xff]
    %v522 = vld [vmem:[#allocation10 + $0x128] sm:$0xff]
    %v523 = vld [vmem:[#allocation10 + $0x130] sm:$0xff]
    %v524 = vld [vmem:[#allocation10 + $0x138] sm:$0xff]
    %v525 = vld [vmem:[#allocation10 + $0x140] sm:$0xff]
    %v526 = vld [vmem:[#allocation10 + $0x148] sm:$0xff]
    %v527 = vld [vmem:[#allocation10 + $0x150] sm:$0xff]
    %v528 = vld [vmem:[#allocation10 + $0x158] sm:$0xff]
    %v529 = vld [vmem:[#allocation10 + $0x160] sm:$0xff]
    %v530 = vld [vmem:[#allocation10 + $0x168] sm:$0xff]
    %v531 = vld [vmem:[#allocation10 + $0x170] sm:$0xff]
    %v532 = vld [vmem:[#allocation10 + $0x178] sm:$0xff]
    %v533 = vld [vmem:[#allocation10 + $0x180] sm:$0xff]
    %v534 = vld [vmem:[#allocation10 + $0x188] sm:$0xff]
    %v535 = vld [vmem:[#allocation10 + $0x190] sm:$0xff]
    %v536 = vld [vmem:[#allocation10 + $0x198] sm:$0xff]
    %v537 = vld [vmem:[#allocation10 + $0x1a0] sm:$0xff]
    %v538 = vld [vmem:[#allocation10 + $0x1a8] sm:$0xff]
    %v539 = vld [vmem:[#allocation10 + $0x1b0] sm:$0xff]
    %v540 = vld [vmem:[#allocation10 + $0x1b8] sm:$0xff]
    %v541 = vld [vmem:[#allocation10 + $0x1c0] sm:$0xff]
    %v542 = vld [vmem:[#allocation10 + $0x1c8] sm:$0xff]
    %v543 = vld [vmem:[#allocation10 + $0x1d0] sm:$0xff]
    %v544 = vld [vmem:[#allocation10 + $0x1d8] sm:$0xff]
    %v545 = vld [vmem:[#allocation10 + $0x1e0] sm:$0xff]
    %v546 = vld [vmem:[#allocation10 + $0x1e8] sm:$0xff]
    %v547 = vld [vmem:[#allocation10 + $0x1f0] sm:$0xff]
    %v548 = vld [vmem:[#allocation10 + $0x1f8] sm:$0xff]
    %549 = vmatprep.subr.mxu0 %v486
    %550 = vmatpush1.msra.mxu0 %v485
    %551 = vmatprep.subr.mxu0 %v490
    %552 = vmatpush1.msra.mxu0 %v489
    %553 = vmatprep.subr.mxu0 %v494
    %554 = vmatpush1.msra.mxu0 %v493
    %555 = vmatprep.subr.mxu0 %v498
    %556 = vmatpush1.msra.mxu0 %v497
    %557 = vmatprep.subr.mxu0 %v502
    %558 = vmatpush1.msra.mxu0 %v501
    %559 = vmatprep.subr.mxu0 %v506
    %560 = vmatpush1.msra.mxu0 %v505
    %561 = vmatprep.subr.mxu0 %v510
    %562 = vmatpush1.msra.mxu0 %v509
    %563 = vmatprep.subr.mxu0 %v514
    %564 = vmatpush1.msra.mxu0 %v513
    %565 = vmatprep.subr.mxu0 %v518
    %566 = vmatpush1.msra.mxu0 %v517
    %567 = vmatprep.subr.mxu0 %v522
    %568 = vmatpush1.msra.mxu0 %v521
    %569 = vmatprep.subr.mxu0 %v526
    %570 = vmatpush1.msra.mxu0 %v525
    %571 = vmatprep.subr.mxu0 %v530
    %572 = vmatpush1.msra.mxu0 %v529
    %573 = vmatprep.subr.mxu0 %v534
    %574 = vmatpush1.msra.mxu0 %v533
    %575 = vmatprep.subr.mxu0 %v538
    %576 = vmatpush1.msra.mxu0 %v537
    %577 = vmatprep.subr.mxu0 %v542
    %578 = vmatpush1.msra.mxu0 %v541
    %579 = vmatprep.subr.mxu0 %v546
    %580 = vmatpush1.msra.mxu0 %v545
    %581 = vmatprep.subr.mxu0 0.0
    %582 = vmatpush1.msra.mxu0 0.0
    %583 = vmatprep.subr.mxu0 0.0
    %584 = vmatpush1.msra.mxu0 0.0
    %585 = vmatprep.subr.mxu0 0.0
    %586 = vmatpush1.msra.mxu0 0.0
    %587 = vmatprep.subr.mxu0 0.0
    %588 = vmatpush1.msra.mxu0 0.0
    %589 = vmatprep.subr.mxu0 0.0
    %590 = vmatpush1.msra.mxu0 0.0
    %591 = vmatprep.subr.mxu0 0.0
    %592 = vmatpush1.msra.mxu0 0.0
    %593 = vmatprep.subr.mxu0 0.0
    %594 = vmatpush1.msra.mxu0 0.0
    %595 = vmatprep.subr.mxu0 0.0
    %596 = vmatpush1.msra.mxu0 0.0
    %597 = vmatprep.subr.mxu0 0.0
    %598 = vmatpush1.msra.mxu0 0.0
    %599 = vmatprep.subr.mxu0 0.0
    %600 = vmatpush1.msra.mxu0 0.0
    %601 = vmatprep.subr.mxu0 0.0
    %602 = vmatpush1.msra.mxu0 0.0
    %603 = vmatprep.subr.mxu0 0.0
    %604 = vmatpush1.msra.mxu0 0.0
    %605 = vmatprep.subr.mxu0 0.0
    %606 = vmatpush1.msra.mxu0 0.0
    %607 = vmatprep.subr.mxu0 0.0
    %608 = vmatpush1.msra.mxu0 0.0
    %609 = vmatprep.subr.mxu0 0.0
    %610 = vmatpush1.msra.mxu0 0.0
    %611 = vmatprep.subr.mxu0 0.0
    %612 = vmatpush1.msra.mxu0 0.0
    %613 = vmatprep.mubr.f32.mxu0 0.0
    %614 = vmatmul.mubr.f32.gmra.mrb[0].mxu0 %v477
    %v615 = vpop.f32.mrb[0].mxu0
    %v616 = vadd.f32 0.0, %v615
    %v617 = vpop.f32.mrb[0].mxu0
    %v618 = vadd.f32 0.0, %v617
    %619 = vdwg.mxu0
    %620 = vmatprep.subr.mxu0 %v488
    %621 = vmatpush1.msra.mxu0 %v487
    %622 = vmatprep.subr.mxu0 %v492
    %623 = vmatpush1.msra.mxu0 %v491
    %624 = vmatprep.subr.mxu0 %v496
    %625 = vmatpush1.msra.mxu0 %v495
    %626 = vmatprep.subr.mxu0 %v500
    %627 = vmatpush1.msra.mxu0 %v499
    %628 = vmatprep.subr.mxu0 %v504
    %629 = vmatpush1.msra.mxu0 %v503
    %630 = vmatprep.subr.mxu0 %v508
    %631 = vmatpush1.msra.mxu0 %v507
    %632 = vmatprep.subr.mxu0 %v512
    %633 = vmatpush1.msra.mxu0 %v511
    %634 = vmatprep.subr.mxu0 %v516
    %635 = vmatpush1.msra.mxu0 %v515
    %636 = vmatprep.subr.mxu0 %v520
    %637 = vmatpush1.msra.mxu0 %v519
    %638 = vmatprep.subr.mxu0 %v524
    %639 = vmatpush1.msra.mxu0 %v523
    %640 = vmatprep.subr.mxu0 %v528
    %641 = vmatpush1.msra.mxu0 %v527
    %642 = vmatprep.subr.mxu0 %v532
    %643 = vmatpush1.msra.mxu0 %v531
    %644 = vmatprep.subr.mxu0 %v536
    %645 = vmatpush1.msra.mxu0 %v535
    %646 = vmatprep.subr.mxu0 %v540
    %647 = vmatpush1.msra.mxu0 %v539
    %648 = vmatprep.subr.mxu0 %v544
    %649 = vmatpush1.msra.mxu0 %v543
    %650 = vmatprep.subr.mxu0 %v548
    %651 = vmatpush1.msra.mxu0 %v547
    %652 = vmatprep.subr.mxu0 0.0
    %653 = vmatpush1.msra.mxu0 0.0
    %654 = vmatprep.subr.mxu0 0.0
    %655 = vmatpush1.msra.mxu0 0.0
    %656 = vmatprep.subr.mxu0 0.0
    %657 = vmatpush1.msra.mxu0 0.0
    %658 = vmatprep.subr.mxu0 0.0
    %659 = vmatpush1.msra.mxu0 0.0
    %660 = vmatprep.subr.mxu0 0.0
    %661 = vmatpush1.msra.mxu0 0.0
    %662 = vmatprep.subr.mxu0 0.0
    %663 = vmatpush1.msra.mxu0 0.0
    %664 = vmatprep.subr.mxu0 0.0
    %665 = vmatpush1.msra.mxu0 0.0
    %666 = vmatprep.subr.mxu0 0.0
    %667 = vmatpush1.msra.mxu0 0.0
    %668 = vmatprep.subr.mxu0 0.0
    %669 = vmatpush1.msra.mxu0 0.0
    %670 = vmatprep.subr.mxu0 0.0
    %671 = vmatpush1.msra.mxu0 0.0
    %672 = vmatprep.subr.mxu0 0.0
    %673 = vmatpush1.msra.mxu0 0.0
    %674 = vmatprep.subr.mxu0 0.0
    %675 = vmatpush1.msra.mxu0 0.0
    %676 = vmatprep.subr.mxu0 0.0
    %677 = vmatpush1.msra.mxu0 0.0
    %678 = vmatprep.subr.mxu0 0.0
    %679 = vmatpush1.msra.mxu0 0.0
    %680 = vmatprep.subr.mxu0 0.0
    %681 = vmatpush1.msra.mxu0 0.0
    %682 = vmatprep.subr.mxu0 0.0
    %683 = vmatpush1.msra.mxu0 0.0
    %684 = vmatprep.mubr.f32.mxu0 0.0
    %685 = vmatmul.mubr.f32.gmra.mrb[0].mxu0 %v477
    %v686 = vpop.f32.mrb[0].mxu0
    %v687 = vadd.f32 0.0, %v686
    %v688 = vpop.f32.mrb[0].mxu0
    %v689 = vadd.f32 0.0, %v688
    %690 = vdwg.mxu0
    %v691 = vadd.f32 %v481, %v616
    %v692 = vadd.f32 %v482, %v618
    %v693 = vadd.f32 %v483, %v687
    %v694 = vadd.f32 %v484, %v689
    %v695 = vmul.f32 %v692, 0.5
    %v696 = vtanh.pop %v695
    %v697 = vadd.f32 %v696, 1.0
    %v698 = vmul.f32 %v697, 0.5
    %v699 = vmul.f32 %v698, %v476
    %v700 = vmul.f32 %v691, 0.5
    %v701 = vtanh.pop %v700
    %v702 = vadd.f32 %v701, 1.0
    %v703 = vmul.f32 %v702, 0.5
    %v704 = vtanh.pop %v693
    %v705 = vmul.f32 %v703, %v704
    %v706 = vadd.f32 %v699, %v705
    %v707 = vmul.f32 %v694, 0.5
    %v708 = vtanh.pop %v707
    %v709 = vadd.f32 %v708, 1.0
    %v710 = vmul.f32 %v709, 0.5
    %v711 = vtanh.pop %v706
    %v712 = vmul.f32 %v710, %v711
    %713 = vst [vmem:[#allocation17] sm:$0xff] %v712
    %s714 = smul.u32 1, 4
    %s715 = smul.addr %s714, 8
    %s716 = scalar_lea.vmem [#allocation2], %s715
    %v717 = vld [vmem:[%s716] sm:$0xff]
    %v718 = vld [vmem:[%s716 + $0x8] sm:$0xff]
    %v719 = vld [vmem:[%s716 + $0x10] sm:$0xff]
    %v720 = vld [vmem:[%s716 + $0x18] sm:$0xff]
    %v721 = vld [vmem:[#allocation10] sm:$0xff]
    %v722 = vld [vmem:[#allocation10 + $0x8] sm:$0xff]
    %v723 = vld [vmem:[#allocation10 + $0x10] sm:$0xff]
    %v724 = vld [vmem:[#allocation10 + $0x18] sm:$0xff]
    %v725 = vld [vmem:[#allocation10 + $0x20] sm:$0xff]
    %v726 = vld [vmem:[#allocation10 + $0x28] sm:$0xff]
    %v727 = vld [vmem:[#allocation10 + $0x30] sm:$0xff]
    %v728 = vld [vmem:[#allocation10 + $0x38] sm:$0xff]
    %v729 = vld [vmem:[#allocation10 + $0x40] sm:$0xff]
    %v730 = vld [vmem:[#allocation10 + $0x48] sm:$0xff]
    %v731 = vld [vmem:[#allocation10 + $0x50] sm:$0xff]
    %v732 = vld [vmem:[#allocation10 + $0x58] sm:$0xff]
    %v733 = vld [vmem:[#allocation10 + $0x60] sm:$0xff]
    %v734 = vld [vmem:[#allocation10 + $0x68] sm:$0xff]
    %v735 = vld [vmem:[#allocation10 + $0x70] sm:$0xff]
    %v736 = vld [vmem:[#allocation10 + $0x78] sm:$0xff]
    %v737 = vld [vmem:[#allocation10 + $0x80] sm:$0xff]
    %v738 = vld [vmem:[#allocation10 + $0x88] sm:$0xff]
    %v739 = vld [vmem:[#allocation10 + $0x90] sm:$0xff]
    %v740 = vld [vmem:[#allocation10 + $0x98] sm:$0xff]
    %v741 = vld [vmem:[#allocation10 + $0xa0] sm:$0xff]
    %v742 = vld [vmem:[#allocation10 + $0xa8] sm:$0xff]
    %v743 = vld [vmem:[#allocation10 + $0xb0] sm:$0xff]
    %v744 = vld [vmem:[#allocation10 + $0xb8] sm:$0xff]
    %v745 = vld [vmem:[#allocation10 + $0xc0] sm:$0xff]
    %v746 = vld [vmem:[#allocation10 + $0xc8] sm:$0xff]
    %v747 = vld [vmem:[#allocation10 + $0xd0] sm:$0xff]
    %v748 = vld [vmem:[#allocation10 + $0xd8] sm:$0xff]
    %v749 = vld [vmem:[#allocation10 + $0xe0] sm:$0xff]
    %v750 = vld [vmem:[#allocation10 + $0xe8] sm:$0xff]
    %v751 = vld [vmem:[#allocation10 + $0xf0] sm:$0xff]
    %v752 = vld [vmem:[#allocation10 + $0xf8] sm:$0xff]
    %v753 = vld [vmem:[#allocation10 + $0x100] sm:$0xff]
    %v754 = vld [vmem:[#allocation10 + $0x108] sm:$0xff]
    %v755 = vld [vmem:[#allocation10 + $0x110] sm:$0xff]
    %v756 = vld [vmem:[#allocation10 + $0x118] sm:$0xff]
    %v757 = vld [vmem:[#allocation10 + $0x120] sm:$0xff]
    %v758 = vld [vmem:[#allocation10 + $0x128] sm:$0xff]
    %v759 = vld [vmem:[#allocation10 + $0x130] sm:$0xff]
    %v760 = vld [vmem:[#allocation10 + $0x138] sm:$0xff]
    %v761 = vld [vmem:[#allocation10 + $0x140] sm:$0xff]
    %v762 = vld [vmem:[#allocation10 + $0x148] sm:$0xff]
    %v763 = vld [vmem:[#allocation10 + $0x150] sm:$0xff]
    %v764 = vld [vmem:[#allocation10 + $0x158] sm:$0xff]
    %v765 = vld [vmem:[#allocation10 + $0x160] sm:$0xff]
    %v766 = vld [vmem:[#allocation10 + $0x168] sm:$0xff]
    %v767 = vld [vmem:[#allocation10 + $0x170] sm:$0xff]
    %v768 = vld [vmem:[#allocation10 + $0x178] sm:$0xff]
    %v769 = vld [vmem:[#allocation10 + $0x180] sm:$0xff]
    %v770 = vld [vmem:[#allocation10 + $0x188] sm:$0xff]
    %v771 = vld [vmem:[#allocation10 + $0x190] sm:$0xff]
    %v772 = vld [vmem:[#allocation10 + $0x198] sm:$0xff]
    %v773 = vld [vmem:[#allocation10 + $0x1a0] sm:$0xff]
    %v774 = vld [vmem:[#allocation10 + $0x1a8] sm:$0xff]
    %v775 = vld [vmem:[#allocation10 + $0x1b0] sm:$0xff]
    %v776 = vld [vmem:[#allocation10 + $0x1b8] sm:$0xff]
    %v777 = vld [vmem:[#allocation10 + $0x1c0] sm:$0xff]
    %v778 = vld [vmem:[#allocation10 + $0x1c8] sm:$0xff]
    %v779 = vld [vmem:[#allocation10 + $0x1d0] sm:$0xff]
    %v780 = vld [vmem:[#allocation10 + $0x1d8] sm:$0xff]
    %v781 = vld [vmem:[#allocation10 + $0x1e0] sm:$0xff]
    %v782 = vld [vmem:[#allocation10 + $0x1e8] sm:$0xff]
    %v783 = vld [vmem:[#allocation10 + $0x1f0] sm:$0xff]
    %v784 = vld [vmem:[#allocation10 + $0x1f8] sm:$0xff]
    %785 = vmatprep.subr.mxu0 %v722
    %786 = vmatpush1.msra.mxu0 %v721
    %787 = vmatprep.subr.mxu0 %v726
    %788 = vmatpush1.msra.mxu0 %v725
    %789 = vmatprep.subr.mxu0 %v730
    %790 = vmatpush1.msra.mxu0 %v729
    %791 = vmatprep.subr.mxu0 %v734
    %792 = vmatpush1.msra.mxu0 %v733
    %793 = vmatprep.subr.mxu0 %v738
    %794 = vmatpush1.msra.mxu0 %v737
    %795 = vmatprep.subr.mxu0 %v742
    %796 = vmatpush1.msra.mxu0 %v741
    %797 = vmatprep.subr.mxu0 %v746
    %798 = vmatpush1.msra.mxu0 %v745
    %799 = vmatprep.subr.mxu0 %v750
    %800 = vmatpush1.msra.mxu0 %v749
    %801 = vmatprep.subr.mxu0 %v754
    %802 = vmatpush1.msra.mxu0 %v753
    %803 = vmatprep.subr.mxu0 %v758
    %804 = vmatpush1.msra.mxu0 %v757
    %805 = vmatprep.subr.mxu0 %v762
    %806 = vmatpush1.msra.mxu0 %v761
    %807 = vmatprep.subr.mxu0 %v766
    %808 = vmatpush1.msra.mxu0 %v765
    %809 = vmatprep.subr.mxu0 %v770
    %810 = vmatpush1.msra.mxu0 %v769
    %811 = vmatprep.subr.mxu0 %v774
    %812 = vmatpush1.msra.mxu0 %v773
    %813 = vmatprep.subr.mxu0 %v778
    %814 = vmatpush1.msra.mxu0 %v777
    %815 = vmatprep.subr.mxu0 %v782
    %816 = vmatpush1.msra.mxu0 %v781
    %817 = vmatprep.subr.mxu0 0.0
    %818 = vmatpush1.msra.mxu0 0.0
    %819 = vmatprep.subr.mxu0 0.0
    %820 = vmatpush1.msra.mxu0 0.0
    %821 = vmatprep.subr.mxu0 0.0
    %822 = vmatpush1.msra.mxu0 0.0
    %823 = vmatprep.subr.mxu0 0.0
    %824 = vmatpush1.msra.mxu0 0.0
    %825 = vmatprep.subr.mxu0 0.0
    %826 = vmatpush1.msra.mxu0 0.0
    %827 = vmatprep.subr.mxu0 0.0
    %828 = vmatpush1.msra.mxu0 0.0
    %829 = vmatprep.subr.mxu0 0.0
    %830 = vmatpush1.msra.mxu0 0.0
    %831 = vmatprep.subr.mxu0 0.0
    %832 = vmatpush1.msra.mxu0 0.0
    %833 = vmatprep.subr.mxu0 0.0
    %834 = vmatpush1.msra.mxu0 0.0
    %835 = vmatprep.subr.mxu0 0.0
    %836 = vmatpush1.msra.mxu0 0.0
    %837 = vmatprep.subr.mxu0 0.0
    %838 = vmatpush1.msra.mxu0 0.0
    %839 = vmatprep.subr.mxu0 0.0
    %840 = vmatpush1.msra.mxu0 0.0
    %841 = vmatprep.subr.mxu0 0.0
    %842 = vmatpush1.msra.mxu0 0.0
    %843 = vmatprep.subr.mxu0 0.0
    %844 = vmatpush1.msra.mxu0 0.0
    %845 = vmatprep.subr.mxu0 0.0
    %846 = vmatpush1.msra.mxu0 0.0
    %847 = vmatprep.subr.mxu0 0.0
    %848 = vmatpush1.msra.mxu0 0.0
    %849 = vmatprep.mubr.f32.mxu0 0.0
    %850 = vmatmul.mubr.f32.gmra.mrb[0].mxu0 %v712
    %v851 = vpop.f32.mrb[0].mxu0
    %v852 = vadd.f32 0.0, %v851
    %v853 = vpop.f32.mrb[0].mxu0
    %v854 = vadd.f32 0.0, %v853
    %855 = vdwg.mxu0
    %856 = vmatprep.subr.mxu0 %v724
    %857 = vmatpush1.msra.mxu0 %v723
    %858 = vmatprep.subr.mxu0 %v728
    %859 = vmatpush1.msra.mxu0 %v727
    %860 = vmatprep.subr.mxu0 %v732
    %861 = vmatpush1.msra.mxu0 %v731
    %862 = vmatprep.subr.mxu0 %v736
    %863 = vmatpush1.msra.mxu0 %v735
    %864 = vmatprep.subr.mxu0 %v740
    %865 = vmatpush1.msra.mxu0 %v739
    %866 = vmatprep.subr.mxu0 %v744
    %867 = vmatpush1.msra.mxu0 %v743
    %868 = vmatprep.subr.mxu0 %v748
    %869 = vmatpush1.msra.mxu0 %v747
    %870 = vmatprep.subr.mxu0 %v752
    %871 = vmatpush1.msra.mxu0 %v751
    %872 = vmatprep.subr.mxu0 %v756
    %873 = vmatpush1.msra.mxu0 %v755
    %874 = vmatprep.subr.mxu0 %v760
    %875 = vmatpush1.msra.mxu0 %v759
    %876 = vmatprep.subr.mxu0 %v764
    %877 = vmatpush1.msra.mxu0 %v763
    %878 = vmatprep.subr.mxu0 %v768
    %879 = vmatpush1.msra.mxu0 %v767
    %880 = vmatprep.subr.mxu0 %v772
    %881 = vmatpush1.msra.mxu0 %v771
    %882 = vmatprep.subr.mxu0 %v776
    %883 = vmatpush1.msra.mxu0 %v775
    %884 = vmatprep.subr.mxu0 %v780
    %885 = vmatpush1.msra.mxu0 %v779
    %886 = vmatprep.subr.mxu0 %v784
    %887 = vmatpush1.msra.mxu0 %v783
    %888 = vmatprep.subr.mxu0 0.0
    %889 = vmatpush1.msra.mxu0 0.0
    %890 = vmatprep.subr.mxu0 0.0
    %891 = vmatpush1.msra.mxu0 0.0
    %892 = vmatprep.subr.mxu0 0.0
    %893 = vmatpush1.msra.mxu0 0.0
    %894 = vmatprep.subr.mxu0 0.0
    %895 = vmatpush1.msra.mxu0 0.0
    %896 = vmatprep.subr.mxu0 0.0
    %897 = vmatpush1.msra.mxu0 0.0
    %898 = vmatprep.subr.mxu0 0.0
    %899 = vmatpush1.msra.mxu0 0.0
    %900 = vmatprep.subr.mxu0 0.0
    %901 = vmatpush1.msra.mxu0 0.0
    %902 = vmatprep.subr.mxu0 0.0
    %903 = vmatpush1.msra.mxu0 0.0
    %904 = vmatprep.subr.mxu0 0.0
    %905 = vmatpush1.msra.mxu0 0.0
    %906 = vmatprep.subr.mxu0 0.0
    %907 = vmatpush1.msra.mxu0 0.0
    %908 = vmatprep.subr.mxu0 0.0
    %909 = vmatpush1.msra.mxu0 0.0
    %910 = vmatprep.subr.mxu0 0.0
    %911 = vmatpush1.msra.mxu0 0.0
    %912 = vmatprep.subr.mxu0 0.0
    %913 = vmatpush1.msra.mxu0 0.0
    %914 = vmatprep.subr.mxu0 0.0
    %915 = vmatpush1.msra.mxu0 0.0
    %916 = vmatprep.subr.mxu0 0.0
    %917 = vmatpush1.msra.mxu0 0.0
    %918 = vmatprep.subr.mxu0 0.0
    %919 = vmatpush1.msra.mxu0 0.0
    %920 = vmatprep.mubr.f32.mxu0 0.0
    %921 = vmatmul.mubr.f32.gmra.mrb[0].mxu0 %v712
    %v922 = vpop.f32.mrb[0].mxu0
    %v923 = vadd.f32 0.0, %v922
    %v924 = vpop.f32.mrb[0].mxu0
    %v925 = vadd.f32 0.0, %v924
    %926 = vdwg.mxu0
    %v927 = vadd.f32 %v717, %v852
    %v928 = vadd.f32 %v718, %v854
    %v929 = vadd.f32 %v719, %v923
    %v930 = vadd.f32 %v720, %v925
    %v931 = vmul.f32 %v928, 0.5
    %v932 = vtanh.pop %v931
    %v933 = vadd.f32 %v932, 1.0
    %v934 = vmul.f32 %v933, 0.5
    %v935 = vmul.f32 %v934, %v706
    %v936 = vmul.f32 %v927, 0.5
    %v937 = vtanh.pop %v936
    %v938 = vadd.f32 %v937, 1.0
    %v939 = vmul.f32 %v938, 0.5
    %v940 = vtanh.pop %v929
    %v941 = vmul.f32 %v939, %v940
    %v942 = vadd.f32 %v935, %v941
    %v943 = vmul.f32 %v930, 0.5
    %v944 = vtanh.pop %v943
    %v945 = vadd.f32 %v944, 1.0
    %v946 = vmul.f32 %v945, 0.5
    %v947 = vtanh.pop %v942
    %v948 = vmul.f32 %v946, %v947
    %s949 = scalar_lea.vmem [#allocation17], 8
    %950 = vst [vmem:[%s949] sm:$0xff] %v948
    %s951 = smul.u32 2, 4
    %s952 = smul.addr %s951, 8
    %s953 = scalar_lea.vmem [#allocation2], %s952
    %v954 = vld [vmem:[%s953] sm:$0xff]
    %v955 = vld [vmem:[%s953 + $0x8] sm:$0xff]
    %v956 = vld [vmem:[%s953 + $0x10] sm:$0xff]
    %v957 = vld [vmem:[%s953 + $0x18] sm:$0xff]
    %v958 = vld [vmem:[#allocation10] sm:$0xff]
    %v959 = vld [vmem:[#allocation10 + $0x8] sm:$0xff]
    %v960 = vld [vmem:[#allocation10 + $0x10] sm:$0xff]
    %v961 = vld [vmem:[#allocation10 + $0x18] sm:$0xff]
    %v962 = vld [vmem:[#allocation10 + $0x20] sm:$0xff]
    %v963 = vld [vmem:[#allocation10 + $0x28] sm:$0xff]
    %v964 = vld [vmem:[#allocation10 + $0x30] sm:$0xff]
    %v965 = vld [vmem:[#allocation10 + $0x38] sm:$0xff]
    %v966 = vld [vmem:[#allocation10 + $0x40] sm:$0xff]
    %v967 = vld [vmem:[#allocation10 + $0x48] sm:$0xff]
    %v968 = vld [vmem:[#allocation10 + $0x50] sm:$0xff]
    %v969 = vld [vmem:[#allocation10 + $0x58] sm:$0xff]
    %v970 = vld [vmem:[#allocation10 + $0x60] sm:$0xff]
    %v971 = vld [vmem:[#allocation10 + $0x68] sm:$0xff]
    %v972 = vld [vmem:[#allocation10 + $0x70] sm:$0xff]
    %v973 = vld [vmem:[#allocation10 + $0x78] sm:$0xff]
    %v974 = vld [vmem:[#allocation10 + $0x80] sm:$0xff]
    %v975 = vld [vmem:[#allocation10 + $0x88] sm:$0xff]
    %v976 = vld [vmem:[#allocation10 + $0x90] sm:$0xff]
    %v977 = vld [vmem:[#allocation10 + $0x98] sm:$0xff]
    %v978 = vld [vmem:[#allocation10 + $0xa0] sm:$0xff]
    %v979 = vld [vmem:[#allocation10 + $0xa8] sm:$0xff]
    %v980 = vld [vmem:[#allocation10 + $0xb0] sm:$0xff]
    %v981 = vld [vmem:[#allocation10 + $0xb8] sm:$0xff]
    %v982 = vld [vmem:[#allocation10 + $0xc0] sm:$0xff]
    %v983 = vld [vmem:[#allocation10 + $0xc8] sm:$0xff]
    %v984 = vld [vmem:[#allocation10 + $0xd0] sm:$0xff]
    %v985 = vld [vmem:[#allocation10 + $0xd8] sm:$0xff]
    %v986 = vld [vmem:[#allocation10 + $0xe0] sm:$0xff]
    %v987 = vld [vmem:[#allocation10 + $0xe8] sm:$0xff]
    %v988 = vld [vmem:[#allocation10 + $0xf0] sm:$0xff]
    %v989 = vld [vmem:[#allocation10 + $0xf8] sm:$0xff]
    %v990 = vld [vmem:[#allocation10 + $0x100] sm:$0xff]
    %v991 = vld [vmem:[#allocation10 + $0x108] sm:$0xff]
    %v992 = vld [vmem:[#allocation10 + $0x110] sm:$0xff]
    %v993 = vld [vmem:[#allocation10 + $0x118] sm:$0xff]
    %v994 = vld [vmem:[#allocation10 + $0x120] sm:$0xff]
    %v995 = vld [vmem:[#allocation10 + $0x128] sm:$0xff]
    %v996 = vld [vmem:[#allocation10 + $0x130] sm:$0xff]
    %v997 = vld [vmem:[#allocation10 + $0x138] sm:$0xff]
    %v998 = vld [vmem:[#allocation10 + $0x140] sm:$0xff]
    %v999 = vld [vmem:[#allocation10 + $0x148] sm:$0xff]
    %v1000 = vld [vmem:[#allocation10 + $0x150] sm:$0xff]
    %v1001 = vld [vmem:[#allocation10 + $0x158] sm:$0xff]
    %v1002 = vld [vmem:[#allocation10 + $0x160] sm:$0xff]
    %v1003 = vld [vmem:[#allocation10 + $0x168] sm:$0xff]
    %v1004 = vld [vmem:[#allocation10 + $0x170] sm:$0xff]
    %v1005 = vld [vmem:[#allocation10 + $0x178] sm:$0xff]
    %v1006 = vld [vmem:[#allocation10 + $0x180] sm:$0xff]
    %v1007 = vld [vmem:[#allocation10 + $0x188] sm:$0xff]
    %v1008 = vld [vmem:[#allocation10 + $0x190] sm:$0xff]
    %v1009 = vld [vmem:[#allocation10 + $0x198] sm:$0xff]
    %v1010 = vld [vmem:[#allocation10 + $0x1a0] sm:$0xff]
    %v1011 = vld [vmem:[#allocation10 + $0x1a8] sm:$0xff]
    %v1012 = vld [vmem:[#allocation10 + $0x1b0] sm:$0xff]
    %v1013 = vld [vmem:[#allocation10 + $0x1b8] sm:$0xff]
    %v1014 = vld [vmem:[#allocation10 + $0x1c0] sm:$0xff]
    %v1015 = vld [vmem:[#allocation10 + $0x1c8] sm:$0xff]
    %v1016 = vld [vmem:[#allocation10 + $0x1d0] sm:$0xff]
    %v1017 = vld [vmem:[#allocation10 + $0x1d8] sm:$0xff]
    %v1018 = vld [vmem:[#allocation10 + $0x1e0] sm:$0xff]
    %v1019 = vld [vmem:[#allocation10 + $0x1e8] sm:$0xff]
    %v1020 = vld [vmem:[#allocation10 + $0x1f0] sm:$0xff]
    %v1021 = vld [vmem:[#allocation10 + $0x1f8] sm:$0xff]
    %1022 = vmatprep.subr.mxu0 %v959
    %1023 = vmatpush1.msra.mxu0 %v958
    %1024 = vmatprep.subr.mxu0 %v963
    %1025 = vmatpush1.msra.mxu0 %v962
    %1026 = vmatprep.subr.mxu0 %v967
    %1027 = vmatpush1.msra.mxu0 %v966
    %1028 = vmatprep.subr.mxu0 %v971
    %1029 = vmatpush1.msra.mxu0 %v970
    %1030 = vmatprep.subr.mxu0 %v975
    %1031 = vmatpush1.msra.mxu0 %v974
    %1032 = vmatprep.subr.mxu0 %v979
    %1033 = vmatpush1.msra.mxu0 %v978
    %1034 = vmatprep.subr.mxu0 %v983
    %1035 = vmatpush1.msra.mxu0 %v982
    %1036 = vmatprep.subr.mxu0 %v987
    %1037 = vmatpush1.msra.mxu0 %v986
    %1038 = vmatprep.subr.mxu0 %v991
    %1039 = vmatpush1.msra.mxu0 %v990
    %1040 = vmatprep.subr.mxu0 %v995
    %1041 = vmatpush1.msra.mxu0 %v994
    %1042 = vmatprep.subr.mxu0 %v999
    %1043 = vmatpush1.msra.mxu0 %v998
    %1044 = vmatprep.subr.mxu0 %v1003
    %1045 = vmatpush1.msra.mxu0 %v1002
    %1046 = vmatprep.subr.mxu0 %v1007
    %1047 = vmatpush1.msra.mxu0 %v1006
    %1048 = vmatprep.subr.mxu0 %v1011
    %1049 = vmatpush1.msra.mxu0 %v1010
    %1050 = vmatprep.subr.mxu0 %v1015
    %1051 = vmatpush1.msra.mxu0 %v1014
    %1052 = vmatprep.subr.mxu0 %v1019
    %1053 = vmatpush1.msra.mxu0 %v1018
    %1054 = vmatprep.subr.mxu0 0.0
    %1055 = vmatpush1.msra.mxu0 0.0
    %1056 = vmatprep.subr.mxu0 0.0
    %1057 = vmatpush1.msra.mxu0 0.0
    %1058 = vmatprep.subr.mxu0 0.0
    %1059 = vmatpush1.msra.mxu0 0.0
    %1060 = vmatprep.subr.mxu0 0.0
    %1061 = vmatpush1.msra.mxu0 0.0
    %1062 = vmatprep.subr.mxu0 0.0
    %1063 = vmatpush1.msra.mxu0 0.0
    %1064 = vmatprep.subr.mxu0 0.0
    %1065 = vmatpush1.msra.mxu0 0.0
    %1066 = vmatprep.subr.mxu0 0.0
    %1067 = vmatpush1.msra.mxu0 0.0
    %1068 = vmatprep.subr.mxu0 0.0
    %1069 = vmatpush1.msra.mxu0 0.0
    %1070 = vmatprep.subr.mxu0 0.0
    %1071 = vmatpush1.msra.mxu0 0.0
    %1072 = vmatprep.subr.mxu0 0.0
    %1073 = vmatpush1.msra.mxu0 0.0
    %1074 = vmatprep.subr.mxu0 0.0
    %1075 = vmatpush1.msra.mxu0 0.0
    %1076 = vmatprep.subr.mxu0 0.0
    %1077 = vmatpush1.msra.mxu0 0.0
    %1078 = vmatprep.subr.mxu0 0.0
    %1079 = vmatpush1.msra.mxu0 0.0
    %1080 = vmatprep.subr.mxu0 0.0
    %1081 = vmatpush1.msra.mxu0 0.0
    %1082 = vmatprep.subr.mxu0 0.0
    %1083 = vmatpush1.msra.mxu0 0.0
    %1084 = vmatprep.subr.mxu0 0.0
    %1085 = vmatpush1.msra.mxu0 0.0
    %1086 = vmatprep.mubr.f32.mxu0 0.0
    %1087 = vmatmul.mubr.f32.gmra.mrb[0].mxu0 %v948
    %v1088 = vpop.f32.mrb[0].mxu0
    %v1089 = vadd.f32 0.0, %v1088
    %v1090 = vpop.f32.mrb[0].mxu0
    %v1091 = vadd.f32 0.0, %v1090
    %1092 = vdwg.mxu0
    %1093 = vmatprep.subr.mxu0 %v961
    %1094 = vmatpush1.msra.mxu0 %v960
    %1095 = vmatprep.subr.mxu0 %v965
    %1096 = vmatpush1.msra.mxu0 %v964
    %1097 = vmatprep.subr.mxu0 %v969
    %1098 = vmatpush1.msra.mxu0 %v968
    %1099 = vmatprep.subr.mxu0 %v973
    %1100 = vmatpush1.msra.mxu0 %v972
    %1101 = vmatprep.subr.mxu0 %v977
    %1102 = vmatpush1.msra.mxu0 %v976
    %1103 = vmatprep.subr.mxu0 %v981
    %1104 = vmatpush1.msra.mxu0 %v980
    %1105 = vmatprep.subr.mxu0 %v985
    %1106 = vmatpush1.msra.mxu0 %v984
    %1107 = vmatprep.subr.mxu0 %v989
    %1108 = vmatpush1.msra.mxu0 %v988
    %1109 = vmatprep.subr.mxu0 %v993
    %1110 = vmatpush1.msra.mxu0 %v992
    %1111 = vmatprep.subr.mxu0 %v997
    %1112 = vmatpush1.msra.mxu0 %v996
    %1113 = vmatprep.subr.mxu0 %v1001
    %1114 = vmatpush1.msra.mxu0 %v1000
    %1115 = vmatprep.subr.mxu0 %v1005
    %1116 = vmatpush1.msra.mxu0 %v1004
    %1117 = vmatprep.subr.mxu0 %v1009
    %1118 = vmatpush1.msra.mxu0 %v1008
    %1119 = vmatprep.subr.mxu0 %v1013
    %1120 = vmatpush1.msra.mxu0 %v1012
    %1121 = vmatprep.subr.mxu0 %v1017
    %1122 = vmatpush1.msra.mxu0 %v1016
    %1123 = vmatprep.subr.mxu0 %v1021
    %1124 = vmatpush1.msra.mxu0 %v1020
    %1125 = vmatprep.subr.mxu0 0.0
    %1126 = vmatpush1.msra.mxu0 0.0
    %1127 = vmatprep.subr.mxu0 0.0
    %1128 = vmatpush1.msra.mxu0 0.0
    %1129 = vmatprep.subr.mxu0 0.0
    %1130 = vmatpush1.msra.mxu0 0.0
    %1131 = vmatprep.subr.mxu0 0.0
    %1132 = vmatpush1.msra.mxu0 0.0
    %1133 = vmatprep.subr.mxu0 0.0
    %1134 = vmatpush1.msra.mxu0 0.0
    %1135 = vmatprep.subr.mxu0 0.0
    %1136 = vmatpush1.msra.mxu0 0.0
    %1137 = vmatprep.subr.mxu0 0.0
    %1138 = vmatpush1.msra.mxu0 0.0
    %1139 = vmatprep.subr.mxu0 0.0
    %1140 = vmatpush1.msra.mxu0 0.0
    %1141 = vmatprep.subr.mxu0 0.0
    %1142 = vmatpush1.msra.mxu0 0.0
    %1143 = vmatprep.subr.mxu0 0.0
    %1144 = vmatpush1.msra.mxu0 0.0
    %1145 = vmatprep.subr.mxu0 0.0
    %1146 = vmatpush1.msra.mxu0 0.0
    %1147 = vmatprep.subr.mxu0 0.0
    %1148 = vmatpush1.msra.mxu0 0.0
    %1149 = vmatprep.subr.mxu0 0.0
    %1150 = vmatpush1.msra.mxu0 0.0
    %1151 = vmatprep.subr.mxu0 0.0
    %1152 = vmatpush1.msra.mxu0 0.0
    %1153 = vmatprep.subr.mxu0 0.0
    %1154 = vmatpush1.msra.mxu0 0.0
    %1155 = vmatprep.subr.mxu0 0.0
    %1156 = vmatpush1.msra.mxu0 0.0
    %1157 = vmatprep.mubr.f32.mxu0 0.0
    %1158 = vmatmul.mubr.f32.gmra.mrb[0].mxu0 %v948
    %v1159 = vpop.f32.mrb[0].mxu0
    %v1160 = vadd.f32 0.0, %v1159
    %v1161 = vpop.f32.mrb[0].mxu0
    %v1162 = vadd.f32 0.0, %v1161
    %1163 = vdwg.mxu0
    %v1164 = vadd.f32 %v954, %v1089
    %v1165 = vadd.f32 %v955, %v1091
    %v1166 = vadd.f32 %v956, %v1160
    %v1167 = vadd.f32 %v957, %v1162
    %v1168 = vmul.f32 %v1165, 0.5
    %v1169 = vtanh.pop %v1168
    %v1170 = vadd.f32 %v1169, 1.0
    %v1171 = vmul.f32 %v1170, 0.5
    %v1172 = vmul.f32 %v1171, %v942
    %v1173 = vmul.f32 %v1164, 0.5
    %v1174 = vtanh.pop %v1173
    %v1175 = vadd.f32 %v1174, 1.0
    %v1176 = vmul.f32 %v1175, 0.5
    %v1177 = vtanh.pop %v1166
    %v1178 = vmul.f32 %v1176, %v1177
    %v1179 = vadd.f32 %v1172, %v1178
    %v1180 = vmul.f32 %v1167, 0.5
    %v1181 = vtanh.pop %v1180
    %v1182 = vadd.f32 %v1181, 1.0
    %v1183 = vmul.f32 %v1182, 0.5
    %v1184 = vtanh.pop %v1179
    %v1185 = vmul.f32 %v1183, %v1184
    %s1186 = scalar_lea.vmem [#allocation17], 16
    %1187 = vst [vmem:[%s1186] sm:$0xff] %v1185
    %s1188 = smul.u32 3, 4
    %s1189 = smul.addr %s1188, 8
    %s1190 = scalar_lea.vmem [#allocation2], %s1189
    %v1191 = vld [vmem:[%s1190] sm:$0xff]
    %v1192 = vld [vmem:[%s1190 + $0x8] sm:$0xff]
    %v1193 = vld [vmem:[%s1190 + $0x10] sm:$0xff]
    %v1194 = vld [vmem:[%s1190 + $0x18] sm:$0xff]
    %v1195 = vld [vmem:[#allocation10] sm:$0xff]
    %v1196 = vld [vmem:[#allocation10 + $0x8] sm:$0xff]
    %v1197 = vld [vmem:[#allocation10 + $0x10] sm:$0xff]
    %v1198 = vld [vmem:[#allocation10 + $0x18] sm:$0xff]
    %v1199 = vld [vmem:[#allocation10 + $0x20] sm:$0xff]
    %v1200 = vld [vmem:[#allocation10 + $0x28] sm:$0xff]
    %v1201 = vld [vmem:[#allocation10 + $0x30] sm:$0xff]
    %v1202 = vld [vmem:[#allocation10 + $0x38] sm:$0xff]
    %v1203 = vld [vmem:[#allocation10 + $0x40] sm:$0xff]
    %v1204 = vld [vmem:[#allocation10 + $0x48] sm:$0xff]
    %v1205 = vld [vmem:[#allocation10 + $0x50] sm:$0xff]
    %v1206 = vld [vmem:[#allocation10 + $0x58] sm:$0xff]
    %v1207 = vld [vmem:[#allocation10 + $0x60] sm:$0xff]
    %v1208 = vld [vmem:[#allocation10 + $0x68] sm:$0xff]
    %v1209 = vld [vmem:[#allocation10 + $0x70] sm:$0xff]
    %v1210 = vld [vmem:[#allocation10 + $0x78] sm:$0xff]
    %v1211 = vld [vmem:[#allocation10 + $0x80] sm:$0xff]
    %v1212 = vld [vmem:[#allocation10 + $0x88] sm:$0xff]
    %v1213 = vld [vmem:[#allocation10 + $0x90] sm:$0xff]
    %v1214 = vld [vmem:[#allocation10 + $0x98] sm:$0xff]
    %v1215 = vld [vmem:[#allocation10 + $0xa0] sm:$0xff]
    %v1216 = vld [vmem:[#allocation10 + $0xa8] sm:$0xff]
    %v1217 = vld [vmem:[#allocation10 + $0xb0] sm:$0xff]
    %v1218 = vld [vmem:[#allocation10 + $0xb8] sm:$0xff]
    %v1219 = vld [vmem:[#allocation10 + $0xc0] sm:$0xff]
    %v1220 = vld [vmem:[#allocation10 + $0xc8] sm:$0xff]
    %v1221 = vld [vmem:[#allocation10 + $0xd0] sm:$0xff]
    %v1222 = vld [vmem:[#allocation10 + $0xd8] sm:$0xff]
    %v1223 = vld [vmem:[#allocation10 + $0xe0] sm:$0xff]
    %v1224 = vld [vmem:[#allocation10 + $0xe8] sm:$0xff]
    %v1225 = vld [vmem:[#allocation10 + $0xf0] sm:$0xff]
    %v1226 = vld [vmem:[#allocation10 + $0xf8] sm:$0xff]
    %v1227 = vld [vmem:[#allocation10 + $0x100] sm:$0xff]
    %v1228 = vld [vmem:[#allocation10 + $0x108] sm:$0xff]
    %v1229 = vld [vmem:[#allocation10 + $0x110] sm:$0xff]
    %v1230 = vld [vmem:[#allocation10 + $0x118] sm:$0xff]
    %v1231 = vld [vmem:[#allocation10 + $0x120] sm:$0xff]
    %v1232 = vld [vmem:[#allocation10 + $0x128] sm:$0xff]
    %v1233 = vld [vmem:[#allocation10 + $0x130] sm:$0xff]
    %v1234 = vld [vmem:[#allocation10 + $0x138] sm:$0xff]
    %v1235 = vld [vmem:[#allocation10 + $0x140] sm:$0xff]
    %v1236 = vld [vmem:[#allocation10 + $0x148] sm:$0xff]
    %v1237 = vld [vmem:[#allocation10 + $0x150] sm:$0xff]
    %v1238 = vld [vmem:[#allocation10 + $0x158] sm:$0xff]
    %v1239 = vld [vmem:[#allocation10 + $0x160] sm:$0xff]
    %v1240 = vld [vmem:[#allocation10 + $0x168] sm:$0xff]
    %v1241 = vld [vmem:[#allocation10 + $0x170] sm:$0xff]
    %v1242 = vld [vmem:[#allocation10 + $0x178] sm:$0xff]
    %v1243 = vld [vmem:[#allocation10 + $0x180] sm:$0xff]
    %v1244 = vld [vmem:[#allocation10 + $0x188] sm:$0xff]
    %v1245 = vld [vmem:[#allocation10 + $0x190] sm:$0xff]
    %v1246 = vld [vmem:[#allocation10 + $0x198] sm:$0xff]
    %v1247 = vld [vmem:[#allocation10 + $0x1a0] sm:$0xff]
    %v1248 = vld [vmem:[#allocation10 + $0x1a8] sm:$0xff]
    %v1249 = vld [vmem:[#allocation10 + $0x1b0] sm:$0xff]
    %v1250 = vld [vmem:[#allocation10 + $0x1b8] sm:$0xff]
    %v1251 = vld [vmem:[#allocation10 + $0x1c0] sm:$0xff]
    %v1252 = vld [vmem:[#allocation10 + $0x1c8] sm:$0xff]
    %v1253 = vld [vmem:[#allocation10 + $0x1d0] sm:$0xff]
    %v1254 = vld [vmem:[#allocation10 + $0x1d8] sm:$0xff]
    %v1255 = vld [vmem:[#allocation10 + $0x1e0] sm:$0xff]
    %v1256 = vld [vmem:[#allocation10 + $0x1e8] sm:$0xff]
    %v1257 = vld [vmem:[#allocation10 + $0x1f0] sm:$0xff]
    %v1258 = vld [vmem:[#allocation10 + $0x1f8] sm:$0xff]
    %1259 = vmatprep.subr.mxu0 %v1196
    %1260 = vmatpush1.msra.mxu0 %v1195
    %1261 = vmatprep.subr.mxu0 %v1200
    %1262 = vmatpush1.msra.mxu0 %v1199
    %1263 = vmatprep.subr.mxu0 %v1204
    %1264 = vmatpush1.msra.mxu0 %v1203
    %1265 = vmatprep.subr.mxu0 %v1208
    %1266 = vmatpush1.msra.mxu0 %v1207
    %1267 = vmatprep.subr.mxu0 %v1212
    %1268 = vmatpush1.msra.mxu0 %v1211
    %1269 = vmatprep.subr.mxu0 %v1216
    %1270 = vmatpush1.msra.mxu0 %v1215
    %1271 = vmatprep.subr.mxu0 %v1220
    %1272 = vmatpush1.msra.mxu0 %v1219
    %1273 = vmatprep.subr.mxu0 %v1224
    %1274 = vmatpush1.msra.mxu0 %v1223
    %1275 = vmatprep.subr.mxu0 %v1228
    %1276 = vmatpush1.msra.mxu0 %v1227
    %1277 = vmatprep.subr.mxu0 %v1232
    %1278 = vmatpush1.msra.mxu0 %v1231
    %1279 = vmatprep.subr.mxu0 %v1236
    %1280 = vmatpush1.msra.mxu0 %v1235
    %1281 = vmatprep.subr.mxu0 %v1240
    %1282 = vmatpush1.msra.mxu0 %v1239
    %1283 = vmatprep.subr.mxu0 %v1244
    %1284 = vmatpush1.msra.mxu0 %v1243
    %1285 = vmatprep.subr.mxu0 %v1248
    %1286 = vmatpush1.msra.mxu0 %v1247
    %1287 = vmatprep.subr.mxu0 %v1252
    %1288 = vmatpush1.msra.mxu0 %v1251
    %1289 = vmatprep.subr.mxu0 %v1256
    %1290 = vmatpush1.msra.mxu0 %v1255
    %1291 = vmatprep.subr.mxu0 0.0
    %1292 = vmatpush1.msra.mxu0 0.0
    %1293 = vmatprep.subr.mxu0 0.0
    %1294 = vmatpush1.msra.mxu0 0.0
    %1295 = vmatprep.subr.mxu0 0.0
    %1296 = vmatpush1.msra.mxu0 0.0
    %1297 = vmatprep.subr.mxu0 0.0
    %1298 = vmatpush1.msra.mxu0 0.0
    %1299 = vmatprep.subr.mxu0 0.0
    %1300 = vmatpush1.msra.mxu0 0.0
    %1301 = vmatprep.subr.mxu0 0.0
    %1302 = vmatpush1.msra.mxu0 0.0
    %1303 = vmatprep.subr.mxu0 0.0
    %1304 = vmatpush1.msra.mxu0 0.0
    %1305 = vmatprep.subr.mxu0 0.0
    %1306 = vmatpush1.msra.mxu0 0.0
    %1307 = vmatprep.subr.mxu0 0.0
    %1308 = vmatpush1.msra.mxu0 0.0
    %1309 = vmatprep.subr.mxu0 0.0
    %1310 = vmatpush1.msra.mxu0 0.0
    %1311 = vmatprep.subr.mxu0 0.0
    %1312 = vmatpush1.msra.mxu0 0.0
    %1313 = vmatprep.subr.mxu0 0.0
    %1314 = vmatpush1.msra.mxu0 0.0
    %1315 = vmatprep.subr.mxu0 0.0
    %1316 = vmatpush1.msra.mxu0 0.0
    %1317 = vmatprep.subr.mxu0 0.0
    %1318 = vmatpush1.msra.mxu0 0.0
    %1319 = vmatprep.subr.mxu0 0.0
    %1320 = vmatpush1.msra.mxu0 0.0
    %1321 = vmatprep.subr.mxu0 0.0
    %1322 = vmatpush1.msra.mxu0 0.0
    %1323 = vmatprep.mubr.f32.mxu0 0.0
    %1324 = vmatmul.mubr.f32.gmra.mrb[0].mxu0 %v1185
    %v1325 = vpop.f32.mrb[0].mxu0
    %v1326 = vadd.f32 0.0, %v1325
    %v1327 = vpop.f32.mrb[0].mxu0
    %v1328 = vadd.f32 0.0, %v1327
    %1329 = vdwg.mxu0
    %1330 = vmatprep.subr.mxu0 %v1198
    %1331 = vmatpush1.msra.mxu0 %v1197
    %1332 = vmatprep.subr.mxu0 %v1202
    %1333 = vmatpush1.msra.mxu0 %v1201
    %1334 = vmatprep.subr.mxu0 %v1206
    %1335 = vmatpush1.msra.mxu0 %v1205
    %1336 = vmatprep.subr.mxu0 %v1210
    %1337 = vmatpush1.msra.mxu0 %v1209
    %1338 = vmatprep.subr.mxu0 %v1214
    %1339 = vmatpush1.msra.mxu0 %v1213
    %1340 = vmatprep.subr.mxu0 %v1218
    %1341 = vmatpush1.msra.mxu0 %v1217
    %1342 = vmatprep.subr.mxu0 %v1222
    %1343 = vmatpush1.msra.mxu0 %v1221
    %1344 = vmatprep.subr.mxu0 %v1226
    %1345 = vmatpush1.msra.mxu0 %v1225
    %1346 = vmatprep.subr.mxu0 %v1230
    %1347 = vmatpush1.msra.mxu0 %v1229
    %1348 = vmatprep.subr.mxu0 %v1234
    %1349 = vmatpush1.msra.mxu0 %v1233
    %1350 = vmatprep.subr.mxu0 %v1238
    %1351 = vmatpush1.msra.mxu0 %v1237
    %1352 = vmatprep.subr.mxu0 %v1242
    %1353 = vmatpush1.msra.mxu0 %v1241
    %1354 = vmatprep.subr.mxu0 %v1246
    %1355 = vmatpush1.msra.mxu0 %v1245
    %1356 = vmatprep.subr.mxu0 %v1250
    %1357 = vmatpush1.msra.mxu0 %v1249
    %1358 = vmatprep.subr.mxu0 %v1254
    %1359 = vmatpush1.msra.mxu0 %v1253
    %1360 = vmatprep.subr.mxu0 %v1258
    %1361 = vmatpush1.msra.mxu0 %v1257
    %1362 = vmatprep.subr.mxu0 0.0
    %1363 = vmatpush1.msra.mxu0 0.0
    %1364 = vmatprep.subr.mxu0 0.0
    %1365 = vmatpush1.msra.mxu0 0.0
    %1366 = vmatprep.subr.mxu0 0.0
    %1367 = vmatpush1.msra.mxu0 0.0
    %1368 = vmatprep.subr.mxu0 0.0
    %1369 = vmatpush1.msra.mxu0 0.0
    %1370 = vmatprep.subr.mxu0 0.0
    %1371 = vmatpush1.msra.mxu0 0.0
    %1372 = vmatprep.subr.mxu0 0.0
    %1373 = vmatpush1.msra.mxu0 0.0
    %1374 = vmatprep.subr.mxu0 0.0
    %1375 = vmatpush1.msra.mxu0 0.0
    %1376 = vmatprep.subr.mxu0 0.0
    %1377 = vmatpush1.msra.mxu0 0.0
    %1378 = vmatprep.subr.mxu0 0.0
    %1379 = vmatpush1.msra.mxu0 0.0
    %1380 = vmatprep.subr.mxu0 0.0
    %1381 = vmatpush1.msra.mxu0 0.0
    %1382 = vmatprep.subr.mxu0 0.0
    %1383 = vmatpush1.msra.mxu0 0.0
    %1384 = vmatprep.subr.mxu0 0.0
    %1385 = vmatpush1.msra.mxu0 0.0
    %1386 = vmatprep.subr.mxu0 0.0
    %1387 = vmatpush1.msra.mxu0 0.0
    %1388 = vmatprep.subr.mxu0 0.0
    %1389 = vmatpush1.msra.mxu0 0.0
    %1390 = vmatprep.subr.mxu0 0.0
    %1391 = vmatpush1.msra.mxu0 0.0
    %1392 = vmatprep.subr.mxu0 0.0
    %1393 = vmatpush1.msra.mxu0 0.0
    %1394 = vmatprep.mubr.f32.mxu0 0.0
    %1395 = vmatmul.mubr.f32.gmra.mrb[0].mxu0 %v1185
    %v1396 = vpop.f32.mrb[0].mxu0
    %v1397 = vadd.f32 0.0, %v1396
    %v1398 = vpop.f32.mrb[0].mxu0
    %v1399 = vadd.f32 0.0, %v1398
    %1400 = vdwg.mxu0
    %v1401 = vadd.f32 %v1191, %v1326
    %v1402 = vadd.f32 %v1192, %v1328
    %v1403 = vadd.f32 %v1193, %v1397
    %v1404 = vadd.f32 %v1194, %v1399
    %v1405 = vmul.f32 %v1402, 0.5
    %v1406 = vtanh.pop %v1405
    %v1407 = vadd.f32 %v1406, 1.0
    %v1408 = vmul.f32 %v1407, 0.5
    %v1409 = vmul.f32 %v1408, %v1179
    %v1410 = vmul.f32 %v1401, 0.5
    %v1411 = vtanh.pop %v1410
    %v1412 = vadd.f32 %v1411, 1.0
    %v1413 = vmul.f32 %v1412, 0.5
    %v1414 = vtanh.pop %v1403
    %v1415 = vmul.f32 %v1413, %v1414
    %v1416 = vadd.f32 %v1409, %v1415
    %v1417 = vmul.f32 %v1404, 0.5
    %v1418 = vtanh.pop %v1417
    %v1419 = vadd.f32 %v1418, 1.0
    %v1420 = vmul.f32 %v1419, 0.5
    %v1421 = vtanh.pop %v1416
    %v1422 = vmul.f32 %v1420, %v1421
    %s1423 = scalar_lea.vmem [#allocation17], 24
    %1424 = vst [vmem:[%s1423] sm:$0xff] %v1422
    %s1425 = smul.u32 4, 4
    %s1426 = smul.addr %s1425, 8
    %s1427 = scalar_lea.vmem [#allocation2], %s1426
    %v1428 = vld [vmem:[%s1427] sm:$0xff]
    %v1429 = vld [vmem:[%s1427 + $0x8] sm:$0xff]
    %v1430 = vld [vmem:[%s1427 + $0x10] sm:$0xff]
    %v1431 = vld [vmem:[%s1427 + $0x18] sm:$0xff]
    %v1432 = vld [vmem:[#allocation10] sm:$0xff]
    %v1433 = vld [vmem:[#allocation10 + $0x8] sm:$0xff]
    %v1434 = vld [vmem:[#allocation10 + $0x10] sm:$0xff]
    %v1435 = vld [vmem:[#allocation10 + $0x18] sm:$0xff]
    %v1436 = vld [vmem:[#allocation10 + $0x20] sm:$0xff]
    %v1437 = vld [vmem:[#allocation10 + $0x28] sm:$0xff]
    %v1438 = vld [vmem:[#allocation10 + $0x30] sm:$0xff]
    %v1439 = vld [vmem:[#allocation10 + $0x38] sm:$0xff]
    %v1440 = vld [vmem:[#allocation10 + $0x40] sm:$0xff]
    %v1441 = vld [vmem:[#allocation10 + $0x48] sm:$0xff]
    %v1442 = vld [vmem:[#allocation10 + $0x50] sm:$0xff]
    %v1443 = vld [vmem:[#allocation10 + $0x58] sm:$0xff]
    %v1444 = vld [vmem:[#allocation10 + $0x60] sm:$0xff]
    %v1445 = vld [vmem:[#allocation10 + $0x68] sm:$0xff]
    %v1446 = vld [vmem:[#allocation10 + $0x70] sm:$0xff]
    %v1447 = vld [vmem:[#allocation10 + $0x78] sm:$0xff]
    %v1448 = vld [vmem:[#allocation10 + $0x80] sm:$0xff]
    %v1449 = vld [vmem:[#allocation10 + $0x88] sm:$0xff]
    %v1450 = vld [vmem:[#allocation10 + $0x90] sm:$0xff]
    %v1451 = vld [vmem:[#allocation10 + $0x98] sm:$0xff]
    %v1452 = vld [vmem:[#allocation10 + $0xa0] sm:$0xff]
    %v1453 = vld [vmem:[#allocation10 + $0xa8] sm:$0xff]
    %v1454 = vld [vmem:[#allocation10 + $0xb0] sm:$0xff]
    %v1455 = vld [vmem:[#allocation10 + $0xb8] sm:$0xff]
    %v1456 = vld [vmem:[#allocation10 + $0xc0] sm:$0xff]
    %v1457 = vld [vmem:[#allocation10 + $0xc8] sm:$0xff]
    %v1458 = vld [vmem:[#allocation10 + $0xd0] sm:$0xff]
    %v1459 = vld [vmem:[#allocation10 + $0xd8] sm:$0xff]
    %v1460 = vld [vmem:[#allocation10 + $0xe0] sm:$0xff]
    %v1461 = vld [vmem:[#allocation10 + $0xe8] sm:$0xff]
    %v1462 = vld [vmem:[#allocation10 + $0xf0] sm:$0xff]
    %v1463 = vld [vmem:[#allocation10 + $0xf8] sm:$0xff]
    %v1464 = vld [vmem:[#allocation10 + $0x100] sm:$0xff]
    %v1465 = vld [vmem:[#allocation10 + $0x108] sm:$0xff]
    %v1466 = vld [vmem:[#allocation10 + $0x110] sm:$0xff]
    %v1467 = vld [vmem:[#allocation10 + $0x118] sm:$0xff]
    %v1468 = vld [vmem:[#allocation10 + $0x120] sm:$0xff]
    %v1469 = vld [vmem:[#allocation10 + $0x128] sm:$0xff]
    %v1470 = vld [vmem:[#allocation10 + $0x130] sm:$0xff]
    %v1471 = vld [vmem:[#allocation10 + $0x138] sm:$0xff]
    %v1472 = vld [vmem:[#allocation10 + $0x140] sm:$0xff]
    %v1473 = vld [vmem:[#allocation10 + $0x148] sm:$0xff]
    %v1474 = vld [vmem:[#allocation10 + $0x150] sm:$0xff]
    %v1475 = vld [vmem:[#allocation10 + $0x158] sm:$0xff]
    %v1476 = vld [vmem:[#allocation10 + $0x160] sm:$0xff]
    %v1477 = vld [vmem:[#allocation10 + $0x168] sm:$0xff]
    %v1478 = vld [vmem:[#allocation10 + $0x170] sm:$0xff]
    %v1479 = vld [vmem:[#allocation10 + $0x178] sm:$0xff]
    %v1480 = vld [vmem:[#allocation10 + $0x180] sm:$0xff]
    %v1481 = vld [vmem:[#allocation10 + $0x188] sm:$0xff]
    %v1482 = vld [vmem:[#allocation10 + $0x190] sm:$0xff]
    %v1483 = vld [vmem:[#allocation10 + $0x198] sm:$0xff]
    %v1484 = vld [vmem:[#allocation10 + $0x1a0] sm:$0xff]
    %v1485 = vld [vmem:[#allocation10 + $0x1a8] sm:$0xff]
    %v1486 = vld [vmem:[#allocation10 + $0x1b0] sm:$0xff]
    %v1487 = vld [vmem:[#allocation10 + $0x1b8] sm:$0xff]
    %v1488 = vld [vmem:[#allocation10 + $0x1c0] sm:$0xff]
    %v1489 = vld [vmem:[#allocation10 + $0x1c8] sm:$0xff]
    %v1490 = vld [vmem:[#allocation10 + $0x1d0] sm:$0xff]
    %v1491 = vld [vmem:[#allocation10 + $0x1d8] sm:$0xff]
    %v1492 = vld [vmem:[#allocation10 + $0x1e0] sm:$0xff]
    %v1493 = vld [vmem:[#allocation10 + $0x1e8] sm:$0xff]
    %v1494 = vld [vmem:[#allocation10 + $0x1f0] sm:$0xff]
    %v1495 = vld [vmem:[#allocation10 + $0x1f8] sm:$0xff]
    %1496 = vmatprep.subr.mxu0 %v1433
    %1497 = vmatpush1.msra.mxu0 %v1432
    %1498 = vmatprep.subr.mxu0 %v1437
    %1499 = vmatpush1.msra.mxu0 %v1436
    %1500 = vmatprep.subr.mxu0 %v1441
    %1501 = vmatpush1.msra.mxu0 %v1440
    %1502 = vmatprep.subr.mxu0 %v1445
    %1503 = vmatpush1.msra.mxu0 %v1444
    %1504 = vmatprep.subr.mxu0 %v1449
    %1505 = vmatpush1.msra.mxu0 %v1448
    %1506 = vmatprep.subr.mxu0 %v1453
    %1507 = vmatpush1.msra.mxu0 %v1452
    %1508 = vmatprep.subr.mxu0 %v1457
    %1509 = vmatpush1.msra.mxu0 %v1456
    %1510 = vmatprep.subr.mxu0 %v1461
    %1511 = vmatpush1.msra.mxu0 %v1460
    %1512 = vmatprep.subr.mxu0 %v1465
    %1513 = vmatpush1.msra.mxu0 %v1464
    %1514 = vmatprep.subr.mxu0 %v1469
    %1515 = vmatpush1.msra.mxu0 %v1468
    %1516 = vmatprep.subr.mxu0 %v1473
    %1517 = vmatpush1.msra.mxu0 %v1472
    %1518 = vmatprep.subr.mxu0 %v1477
    %1519 = vmatpush1.msra.mxu0 %v1476
    %1520 = vmatprep.subr.mxu0 %v1481
    %1521 = vmatpush1.msra.mxu0 %v1480
    %1522 = vmatprep.subr.mxu0 %v1485
    %1523 = vmatpush1.msra.mxu0 %v1484
    %1524 = vmatprep.subr.mxu0 %v1489
    %1525 = vmatpush1.msra.mxu0 %v1488
    %1526 = vmatprep.subr.mxu0 %v1493
    %1527 = vmatpush1.msra.mxu0 %v1492
    %1528 = vmatprep.subr.mxu0 0.0
    %1529 = vmatpush1.msra.mxu0 0.0
    %1530 = vmatprep.subr.mxu0 0.0
    %1531 = vmatpush1.msra.mxu0 0.0
    %1532 = vmatprep.subr.mxu0 0.0
    %1533 = vmatpush1.msra.mxu0 0.0
    %1534 = vmatprep.subr.mxu0 0.0
    %1535 = vmatpush1.msra.mxu0 0.0
    %1536 = vmatprep.subr.mxu0 0.0
    %1537 = vmatpush1.msra.mxu0 0.0
    %1538 = vmatprep.subr.mxu0 0.0
    %1539 = vmatpush1.msra.mxu0 0.0
    %1540 = vmatprep.subr.mxu0 0.0
    %1541 = vmatpush1.msra.mxu0 0.0
    %1542 = vmatprep.subr.mxu0 0.0
    %1543 = vmatpush1.msra.mxu0 0.0
    %1544 = vmatprep.subr.mxu0 0.0
    %1545 = vmatpush1.msra.mxu0 0.0
    %1546 = vmatprep.subr.mxu0 0.0
    %1547 = vmatpush1.msra.mxu0 0.0
    %1548 = vmatprep.subr.mxu0 0.0
    %1549 = vmatpush1.msra.mxu0 0.0
    %1550 = vmatprep.subr.mxu0 0.0
    %1551 = vmatpush1.msra.mxu0 0.0
    %1552 = vmatprep.subr.mxu0 0.0
    %1553 = vmatpush1.msra.mxu0 0.0
    %1554 = vmatprep.subr.mxu0 0.0
    %1555 = vmatpush1.msra.mxu0 0.0
    %1556 = vmatprep.subr.mxu0 0.0
    %1557 = vmatpush1.msra.mxu0 0.0
    %1558 = vmatprep.subr.mxu0 0.0
    %1559 = vmatpush1.msra.mxu0 0.0
    %1560 = vmatprep.mubr.f32.mxu0 0.0
    %1561 = vmatmul.mubr.f32.gmra.mrb[0].mxu0 %v1422
    %v1562 = vpop.f32.mrb[0].mxu0
    %v1563 = vadd.f32 0.0, %v1562
    %v1564 = vpop.f32.mrb[0].mxu0
    %v1565 = vadd.f32 0.0, %v1564
    %1566 = vdwg.mxu0
    %1567 = vmatprep.subr.mxu0 %v1435
    %1568 = vmatpush1.msra.mxu0 %v1434
    %1569 = vmatprep.subr.mxu0 %v1439
    %1570 = vmatpush1.msra.mxu0 %v1438
    %1571 = vmatprep.subr.mxu0 %v1443
    %1572 = vmatpush1.msra.mxu0 %v1442
    %1573 = vmatprep.subr.mxu0 %v1447
    %1574 = vmatpush1.msra.mxu0 %v1446
    %1575 = vmatprep.subr.mxu0 %v1451
    %1576 = vmatpush1.msra.mxu0 %v1450
    %1577 = vmatprep.subr.mxu0 %v1455
    %1578 = vmatpush1.msra.mxu0 %v1454
    %1579 = vmatprep.subr.mxu0 %v1459
    %1580 = vmatpush1.msra.mxu0 %v1458
    %1581 = vmatprep.subr.mxu0 %v1463
    %1582 = vmatpush1.msra.mxu0 %v1462
    %1583 = vmatprep.subr.mxu0 %v1467
    %1584 = vmatpush1.msra.mxu0 %v1466
    %1585 = vmatprep.subr.mxu0 %v1471
    %1586 = vmatpush1.msra.mxu0 %v1470
    %1587 = vmatprep.subr.mxu0 %v1475
    %1588 = vmatpush1.msra.mxu0 %v1474
    %1589 = vmatprep.subr.mxu0 %v1479
    %1590 = vmatpush1.msra.mxu0 %v1478
    %1591 = vmatprep.subr.mxu0 %v1483
    %1592 = vmatpush1.msra.mxu0 %v1482
    %1593 = vmatprep.subr.mxu0 %v1487
    %1594 = vmatpush1.msra.mxu0 %v1486
    %1595 = vmatprep.subr.mxu0 %v1491
    %1596 = vmatpush1.msra.mxu0 %v1490
    %1597 = vmatprep.subr.mxu0 %v1495
    %1598 = vmatpush1.msra.mxu0 %v1494
    %1599 = vmatprep.subr.mxu0 0.0
    %1600 = vmatpush1.msra.mxu0 0.0
    %1601 = vmatprep.subr.mxu0 0.0
    %1602 = vmatpush1.msra.mxu0 0.0
    %1603 = vmatprep.subr.mxu0 0.0
    %1604 = vmatpush1.msra.mxu0 0.0
    %1605 = vmatprep.subr.mxu0 0.0
    %1606 = vmatpush1.msra.mxu0 0.0
    %1607 = vmatprep.subr.mxu0 0.0
    %1608 = vmatpush1.msra.mxu0 0.0
    %1609 = vmatprep.subr.mxu0 0.0
    %1610 = vmatpush1.msra.mxu0 0.0
    %1611 = vmatprep.subr.mxu0 0.0
    %1612 = vmatpush1.msra.mxu0 0.0
    %1613 = vmatprep.subr.mxu0 0.0
    %1614 = vmatpush1.msra.mxu0 0.0
    %1615 = vmatprep.subr.mxu0 0.0
    %1616 = vmatpush1.msra.mxu0 0.0
    %1617 = vmatprep.subr.mxu0 0.0
    %1618 = vmatpush1.msra.mxu0 0.0
    %1619 = vmatprep.subr.mxu0 0.0
    %1620 = vmatpush1.msra.mxu0 0.0
    %1621 = vmatprep.subr.mxu0 0.0
    %1622 = vmatpush1.msra.mxu0 0.0
    %1623 = vmatprep.subr.mxu0 0.0
    %1624 = vmatpush1.msra.mxu0 0.0
    %1625 = vmatprep.subr.mxu0 0.0
    %1626 = vmatpush1.msra.mxu0 0.0
    %1627 = vmatprep.subr.mxu0 0.0
    %1628 = vmatpush1.msra.mxu0 0.0
    %1629 = vmatprep.subr.mxu0 0.0
    %1630 = vmatpush1.msra.mxu0 0.0
    %1631 = vmatprep.mubr.f32.mxu0 0.0
    %1632 = vmatmul.mubr.f32.gmra.mrb[0].mxu0 %v1422
    %v1633 = vpop.f32.mrb[0].mxu0
    %v1634 = vadd.f32 0.0, %v1633
    %v1635 = vpop.f32.mrb[0].mxu0
    %v1636 = vadd.f32 0.0, %v1635
    %1637 = vdwg.mxu0
    %v1638 = vadd.f32 %v1428, %v1563
    %v1639 = vadd.f32 %v1429, %v1565
    %v1640 = vadd.f32 %v1430, %v1634
    %v1641 = vadd.f32 %v1431, %v1636
    %v1642 = vmul.f32 %v1639, 0.5
    %v1643 = vtanh.pop %v1642
    %v1644 = vadd.f32 %v1643, 1.0
    %v1645 = vmul.f32 %v1644, 0.5
    %v1646 = vmul.f32 %v1645, %v1416
    %v1647 = vmul.f32 %v1638, 0.5
    %v1648 = vtanh.pop %v1647
    %v1649 = vadd.f32 %v1648, 1.0
    %v1650 = vmul.f32 %v1649, 0.5
    %v1651 = vtanh.pop %v1640
    %v1652 = vmul.f32 %v1650, %v1651
    %v1653 = vadd.f32 %v1646, %v1652
    %v1654 = vmul.f32 %v1641, 0.5
    %v1655 = vtanh.pop %v1654
    %v1656 = vadd.f32 %v1655, 1.0
    %v1657 = vmul.f32 %v1656, 0.5
    %v1658 = vtanh.pop %v1653
    %v1659 = vmul.f32 %v1657, %v1658
    %s1660 = scalar_lea.vmem [#allocation17], 32
    %1661 = vst [vmem:[%s1660] sm:$0xff] %v1659
    %s1662 = smul.u32 5, 4
    %s1663 = smul.addr %s1662, 8
    %s1664 = scalar_lea.vmem [#allocation2], %s1663
    %v1665 = vld [vmem:[%s1664] sm:$0xff]
    %v1666 = vld [vmem:[%s1664 + $0x8] sm:$0xff]
    %v1667 = vld [vmem:[%s1664 + $0x10] sm:$0xff]
    %v1668 = vld [vmem:[%s1664 + $0x18] sm:$0xff]
    %v1669 = vld [vmem:[#allocation10] sm:$0xff]
    %v1670 = vld [vmem:[#allocation10 + $0x8] sm:$0xff]
    %v1671 = vld [vmem:[#allocation10 + $0x10] sm:$0xff]
    %v1672 = vld [vmem:[#allocation10 + $0x18] sm:$0xff]
    %v1673 = vld [vmem:[#allocation10 + $0x20] sm:$0xff]
    %v1674 = vld [vmem:[#allocation10 + $0x28] sm:$0xff]
    %v1675 = vld [vmem:[#allocation10 + $0x30] sm:$0xff]
    %v1676 = vld [vmem:[#allocation10 + $0x38] sm:$0xff]
    %v1677 = vld [vmem:[#allocation10 + $0x40] sm:$0xff]
    %v1678 = vld [vmem:[#allocation10 + $0x48] sm:$0xff]
    %v1679 = vld [vmem:[#allocation10 + $0x50] sm:$0xff]
    %v1680 = vld [vmem:[#allocation10 + $0x58] sm:$0xff]
    %v1681 = vld [vmem:[#allocation10 + $0x60] sm:$0xff]
    %v1682 = vld [vmem:[#allocation10 + $0x68] sm:$0xff]
    %v1683 = vld [vmem:[#allocation10 + $0x70] sm:$0xff]
    %v1684 = vld [vmem:[#allocation10 + $0x78] sm:$0xff]
    %v1685 = vld [vmem:[#allocation10 + $0x80] sm:$0xff]
    %v1686 = vld [vmem:[#allocation10 + $0x88] sm:$0xff]
    %v1687 = vld [vmem:[#allocation10 + $0x90] sm:$0xff]
    %v1688 = vld [vmem:[#allocation10 + $0x98] sm:$0xff]
    %v1689 = vld [vmem:[#allocation10 + $0xa0] sm:$0xff]
    %v1690 = vld [vmem:[#allocation10 + $0xa8] sm:$0xff]
    %v1691 = vld [vmem:[#allocation10 + $0xb0] sm:$0xff]
    %v1692 = vld [vmem:[#allocation10 + $0xb8] sm:$0xff]
    %v1693 = vld [vmem:[#allocation10 + $0xc0] sm:$0xff]
    %v1694 = vld [vmem:[#allocation10 + $0xc8] sm:$0xff]
    %v1695 = vld [vmem:[#allocation10 + $0xd0] sm:$0xff]
    %v1696 = vld [vmem:[#allocation10 + $0xd8] sm:$0xff]
    %v1697 = vld [vmem:[#allocation10 + $0xe0] sm:$0xff]
    %v1698 = vld [vmem:[#allocation10 + $0xe8] sm:$0xff]
    %v1699 = vld [vmem:[#allocation10 + $0xf0] sm:$0xff]
    %v1700 = vld [vmem:[#allocation10 + $0xf8] sm:$0xff]
    %v1701 = vld [vmem:[#allocation10 + $0x100] sm:$0xff]
    %v1702 = vld [vmem:[#allocation10 + $0x108] sm:$0xff]
    %v1703 = vld [vmem:[#allocation10 + $0x110] sm:$0xff]
    %v1704 = vld [vmem:[#allocation10 + $0x118] sm:$0xff]
    %v1705 = vld [vmem:[#allocation10 + $0x120] sm:$0xff]
    %v1706 = vld [vmem:[#allocation10 + $0x128] sm:$0xff]
    %v1707 = vld [vmem:[#allocation10 + $0x130] sm:$0xff]
    %v1708 = vld [vmem:[#allocation10 + $0x138] sm:$0xff]
    %v1709 = vld [vmem:[#allocation10 + $0x140] sm:$0xff]
    %v1710 = vld [vmem:[#allocation10 + $0x148] sm:$0xff]
    %v1711 = vld [vmem:[#allocation10 + $0x150] sm:$0xff]
    %v1712 = vld [vmem:[#allocation10 + $0x158] sm:$0xff]
    %v1713 = vld [vmem:[#allocation10 + $0x160] sm:$0xff]
    %v1714 = vld [vmem:[#allocation10 + $0x168] sm:$0xff]
    %v1715 = vld [vmem:[#allocation10 + $0x170] sm:$0xff]
    %v1716 = vld [vmem:[#allocation10 + $0x178] sm:$0xff]
    %v1717 = vld [vmem:[#allocation10 + $0x180] sm:$0xff]
    %v1718 = vld [vmem:[#allocation10 + $0x188] sm:$0xff]
    %v1719 = vld [vmem:[#allocation10 + $0x190] sm:$0xff]
    %v1720 = vld [vmem:[#allocation10 + $0x198] sm:$0xff]
    %v1721 = vld [vmem:[#allocation10 + $0x1a0] sm:$0xff]
    %v1722 = vld [vmem:[#allocation10 + $0x1a8] sm:$0xff]
    %v1723 = vld [vmem:[#allocation10 + $0x1b0] sm:$0xff]
    %v1724 = vld [vmem:[#allocation10 + $0x1b8] sm:$0xff]
    %v1725 = vld [vmem:[#allocation10 + $0x1c0] sm:$0xff]
    %v1726 = vld [vmem:[#allocation10 + $0x1c8] sm:$0xff]
    %v1727 = vld [vmem:[#allocation10 + $0x1d0] sm:$0xff]
    %v1728 = vld [vmem:[#allocation10 + $0x1d8] sm:$0xff]
    %v1729 = vld [vmem:[#allocation10 + $0x1e0] sm:$0xff]
    %v1730 = vld [vmem:[#allocation10 + $0x1e8] sm:$0xff]
    %v1731 = vld [vmem:[#allocation10 + $0x1f0] sm:$0xff]
    %v1732 = vld [vmem:[#allocation10 + $0x1f8] sm:$0xff]
    %1733 = vmatprep.subr.mxu0 %v1670
    %1734 = vmatpush1.msra.mxu0 %v1669
    %1735 = vmatprep.subr.mxu0 %v1674
    %1736 = vmatpush1.msra.mxu0 %v1673
    %1737 = vmatprep.subr.mxu0 %v1678
    %1738 = vmatpush1.msra.mxu0 %v1677
    %1739 = vmatprep.subr.mxu0 %v1682
    %1740 = vmatpush1.msra.mxu0 %v1681
    %1741 = vmatprep.subr.mxu0 %v1686
    %1742 = vmatpush1.msra.mxu0 %v1685
    %1743 = vmatprep.subr.mxu0 %v1690
    %1744 = vmatpush1.msra.mxu0 %v1689
    %1745 = vmatprep.subr.mxu0 %v1694
    %1746 = vmatpush1.msra.mxu0 %v1693
    %1747 = vmatprep.subr.mxu0 %v1698
    %1748 = vmatpush1.msra.mxu0 %v1697
    %1749 = vmatprep.subr.mxu0 %v1702
    %1750 = vmatpush1.msra.mxu0 %v1701
    %1751 = vmatprep.subr.mxu0 %v1706
    %1752 = vmatpush1.msra.mxu0 %v1705
    %1753 = vmatprep.subr.mxu0 %v1710
    %1754 = vmatpush1.msra.mxu0 %v1709
    %1755 = vmatprep.subr.mxu0 %v1714
    %1756 = vmatpush1.msra.mxu0 %v1713
    %1757 = vmatprep.subr.mxu0 %v1718
    %1758 = vmatpush1.msra.mxu0 %v1717
    %1759 = vmatprep.subr.mxu0 %v1722
    %1760 = vmatpush1.msra.mxu0 %v1721
    %1761 = vmatprep.subr.mxu0 %v1726
    %1762 = vmatpush1.msra.mxu0 %v1725
    %1763 = vmatprep.subr.mxu0 %v1730
    %1764 = vmatpush1.msra.mxu0 %v1729
    %1765 = vmatprep.subr.mxu0 0.0
    %1766 = vmatpush1.msra.mxu0 0.0
    %1767 = vmatprep.subr.mxu0 0.0
    %1768 = vmatpush1.msra.mxu0 0.0
    %1769 = vmatprep.subr.mxu0 0.0
    %1770 = vmatpush1.msra.mxu0 0.0
    %1771 = vmatprep.subr.mxu0 0.0
    %1772 = vmatpush1.msra.mxu0 0.0
    %1773 = vmatprep.subr.mxu0 0.0
    %1774 = vmatpush1.msra.mxu0 0.0
    %1775 = vmatprep.subr.mxu0 0.0
    %1776 = vmatpush1.msra.mxu0 0.0
    %1777 = vmatprep.subr.mxu0 0.0
    %1778 = vmatpush1.msra.mxu0 0.0
    %1779 = vmatprep.subr.mxu0 0.0
    %1780 = vmatpush1.msra.mxu0 0.0
    %1781 = vmatprep.subr.mxu0 0.0
    %1782 = vmatpush1.msra.mxu0 0.0
    %1783 = vmatprep.subr.mxu0 0.0
    %1784 = vmatpush1.msra.mxu0 0.0
    %1785 = vmatprep.subr.mxu0 0.0
    %1786 = vmatpush1.msra.mxu0 0.0
    %1787 = vmatprep.subr.mxu0 0.0
    %1788 = vmatpush1.msra.mxu0 0.0
    %1789 = vmatprep.subr.mxu0 0.0
    %1790 = vmatpush1.msra.mxu0 0.0
    %1791 = vmatprep.subr.mxu0 0.0
    %1792 = vmatpush1.msra.mxu0 0.0
    %1793 = vmatprep.subr.mxu0 0.0
    %1794 = vmatpush1.msra.mxu0 0.0
    %1795 = vmatprep.subr.mxu0 0.0
    %1796 = vmatpush1.msra.mxu0 0.0
    %1797 = vmatprep.mubr.f32.mxu0 0.0
    %1798 = vmatmul.mubr.f32.gmra.mrb[0].mxu0 %v1659
    %v1799 = vpop.f32.mrb[0].mxu0
    %v1800 = vadd.f32 0.0, %v1799
    %v1801 = vpop.f32.mrb[0].mxu0
    %v1802 = vadd.f32 0.0, %v1801
    %1803 = vdwg.mxu0
    %1804 = vmatprep.subr.mxu0 %v1672
    %1805 = vmatpush1.msra.mxu0 %v1671
    %1806 = vmatprep.subr.mxu0 %v1676
    %1807 = vmatpush1.msra.mxu0 %v1675
    %1808 = vmatprep.subr.mxu0 %v1680
    %1809 = vmatpush1.msra.mxu0 %v1679
    %1810 = vmatprep.subr.mxu0 %v1684
    %1811 = vmatpush1.msra.mxu0 %v1683
    %1812 = vmatprep.subr.mxu0 %v1688
    %1813 = vmatpush1.msra.mxu0 %v1687
    %1814 = vmatprep.subr.mxu0 %v1692
    %1815 = vmatpush1.msra.mxu0 %v1691
    %1816 = vmatprep.subr.mxu0 %v1696
    %1817 = vmatpush1.msra.mxu0 %v1695
    %1818 = vmatprep.subr.mxu0 %v1700
    %1819 = vmatpush1.msra.mxu0 %v1699
    %1820 = vmatprep.subr.mxu0 %v1704
    %1821 = vmatpush1.msra.mxu0 %v1703
    %1822 = vmatprep.subr.mxu0 %v1708
    %1823 = vmatpush1.msra.mxu0 %v1707
    %1824 = vmatprep.subr.mxu0 %v1712
    %1825 = vmatpush1.msra.mxu0 %v1711
    %1826 = vmatprep.subr.mxu0 %v1716
    %1827 = vmatpush1.msra.mxu0 %v1715
    %1828 = vmatprep.subr.mxu0 %v1720
    %1829 = vmatpush1.msra.mxu0 %v1719
    %1830 = vmatprep.subr.mxu0 %v1724
    %1831 = vmatpush1.msra.mxu0 %v1723
    %1832 = vmatprep.subr.mxu0 %v1728
    %1833 = vmatpush1.msra.mxu0 %v1727
    %1834 = vmatprep.subr.mxu0 %v1732
    %1835 = vmatpush1.msra.mxu0 %v1731
    %1836 = vmatprep.subr.mxu0 0.0
    %1837 = vmatpush1.msra.mxu0 0.0
    %1838 = vmatprep.subr.mxu0 0.0
    %1839 = vmatpush1.msra.mxu0 0.0
    %1840 = vmatprep.subr.mxu0 0.0
    %1841 = vmatpush1.msra.mxu0 0.0
    %1842 = vmatprep.subr.mxu0 0.0
    %1843 = vmatpush1.msra.mxu0 0.0
    %1844 = vmatprep.subr.mxu0 0.0
    %1845 = vmatpush1.msra.mxu0 0.0
    %1846 = vmatprep.subr.mxu0 0.0
    %1847 = vmatpush1.msra.mxu0 0.0
    %1848 = vmatprep.subr.mxu0 0.0
    %1849 = vmatpush1.msra.mxu0 0.0
    %1850 = vmatprep.subr.mxu0 0.0
    %1851 = vmatpush1.msra.mxu0 0.0
    %1852 = vmatprep.subr.mxu0 0.0
    %1853 = vmatpush1.msra.mxu0 0.0
    %1854 = vmatprep.subr.mxu0 0.0
    %1855 = vmatpush1.msra.mxu0 0.0
    %1856 = vmatprep.subr.mxu0 0.0
    %1857 = vmatpush1.msra.mxu0 0.0
    %1858 = vmatprep.subr.mxu0 0.0
    %1859 = vmatpush1.msra.mxu0 0.0
    %1860 = vmatprep.subr.mxu0 0.0
    %1861 = vmatpush1.msra.mxu0 0.0
    %1862 = vmatprep.subr.mxu0 0.0
    %1863 = vmatpush1.msra.mxu0 0.0
    %1864 = vmatprep.subr.mxu0 0.0
    %1865 = vmatpush1.msra.mxu0 0.0
    %1866 = vmatprep.subr.mxu0 0.0
    %1867 = vmatpush1.msra.mxu0 0.0
    %1868 = vmatprep.mubr.f32.mxu0 0.0
    %1869 = vmatmul.mubr.f32.gmra.mrb[0].mxu0 %v1659
    %v1870 = vpop.f32.mrb[0].mxu0
    %v1871 = vadd.f32 0.0, %v1870
    %v1872 = vpop.f32.mrb[0].mxu0
    %v1873 = vadd.f32 0.0, %v1872
    %1874 = vdwg.mxu0
    %v1875 = vadd.f32 %v1665, %v1800
    %v1876 = vadd.f32 %v1666, %v1802
    %v1877 = vadd.f32 %v1667, %v1871
    %v1878 = vadd.f32 %v1668, %v1873
    %v1879 = vmul.f32 %v1876, 0.5
    %v1880 = vtanh.pop %v1879
    %v1881 = vadd.f32 %v1880, 1.0
    %v1882 = vmul.f32 %v1881, 0.5
    %v1883 = vmul.f32 %v1882, %v1653
    %v1884 = vmul.f32 %v1875, 0.5
    %v1885 = vtanh.pop %v1884
    %v1886 = vadd.f32 %v1885, 1.0
    %v1887 = vmul.f32 %v1886, 0.5
    %v1888 = vtanh.pop %v1877
    %v1889 = vmul.f32 %v1887, %v1888
    %v1890 = vadd.f32 %v1883, %v1889
    %v1891 = vmul.f32 %v1878, 0.5
    %v1892 = vtanh.pop %v1891
    %v1893 = vadd.f32 %v1892, 1.0
    %v1894 = vmul.f32 %v1893, 0.5
    %v1895 = vtanh.pop %v1890
    %v1896 = vmul.f32 %v1894, %v1895
    %s1897 = scalar_lea.vmem [#allocation17], 40
    %1898 = vst [vmem:[%s1897] sm:$0xff] %v1896
    %s1899 = smul.u32 6, 4
    %s1900 = smul.addr %s1899, 8
    %s1901 = scalar_lea.vmem [#allocation2], %s1900
    %v1902 = vld [vmem:[%s1901] sm:$0xff]
    %v1903 = vld [vmem:[%s1901 + $0x8] sm:$0xff]
    %v1904 = vld [vmem:[%s1901 + $0x10] sm:$0xff]
    %v1905 = vld [vmem:[%s1901 + $0x18] sm:$0xff]
    %v1906 = vld [vmem:[#allocation10] sm:$0xff]
    %v1907 = vld [vmem:[#allocation10 + $0x8] sm:$0xff]
    %v1908 = vld [vmem:[#allocation10 + $0x10] sm:$0xff]
    %v1909 = vld [vmem:[#allocation10 + $0x18] sm:$0xff]
    %v1910 = vld [vmem:[#allocation10 + $0x20] sm:$0xff]
    %v1911 = vld [vmem:[#allocation10 + $0x28] sm:$0xff]
    %v1912 = vld [vmem:[#allocation10 + $0x30] sm:$0xff]
    %v1913 = vld [vmem:[#allocation10 + $0x38] sm:$0xff]
    %v1914 = vld [vmem:[#allocation10 + $0x40] sm:$0xff]
    %v1915 = vld [vmem:[#allocation10 + $0x48] sm:$0xff]
    %v1916 = vld [vmem:[#allocation10 + $0x50] sm:$0xff]
    %v1917 = vld [vmem:[#allocation10 + $0x58] sm:$0xff]
    %v1918 = vld [vmem:[#allocation10 + $0x60] sm:$0xff]
    %v1919 = vld [vmem:[#allocation10 + $0x68] sm:$0xff]
    %v1920 = vld [vmem:[#allocation10 + $0x70] sm:$0xff]
    %v1921 = vld [vmem:[#allocation10 + $0x78] sm:$0xff]
    %v1922 = vld [vmem:[#allocation10 + $0x80] sm:$0xff]
    %v1923 = vld [vmem:[#allocation10 + $0x88] sm:$0xff]
    %v1924 = vld [vmem:[#allocation10 + $0x90] sm:$0xff]
    %v1925 = vld [vmem:[#allocation10 + $0x98] sm:$0xff]
    %v1926 = vld [vmem:[#allocation10 + $0xa0] sm:$0xff]
    %v1927 = vld [vmem:[#allocation10 + $0xa8] sm:$0xff]
    %v1928 = vld [vmem:[#allocation10 + $0xb0] sm:$0xff]
    %v1929 = vld [vmem:[#allocation10 + $0xb8] sm:$0xff]
    %v1930 = vld [vmem:[#allocation10 + $0xc0] sm:$0xff]
    %v1931 = vld [vmem:[#allocation10 + $0xc8] sm:$0xff]
    %v1932 = vld [vmem:[#allocation10 + $0xd0] sm:$0xff]
    %v1933 = vld [vmem:[#allocation10 + $0xd8] sm:$0xff]
    %v1934 = vld [vmem:[#allocation10 + $0xe0] sm:$0xff]
    %v1935 = vld [vmem:[#allocation10 + $0xe8] sm:$0xff]
    %v1936 = vld [vmem:[#allocation10 + $0xf0] sm:$0xff]
    %v1937 = vld [vmem:[#allocation10 + $0xf8] sm:$0xff]
    %v1938 = vld [vmem:[#allocation10 + $0x100] sm:$0xff]
    %v1939 = vld [vmem:[#allocation10 + $0x108] sm:$0xff]
    %v1940 = vld [vmem:[#allocation10 + $0x110] sm:$0xff]
    %v1941 = vld [vmem:[#allocation10 + $0x118] sm:$0xff]
    %v1942 = vld [vmem:[#allocation10 + $0x120] sm:$0xff]
    %v1943 = vld [vmem:[#allocation10 + $0x128] sm:$0xff]
    %v1944 = vld [vmem:[#allocation10 + $0x130] sm:$0xff]
    %v1945 = vld [vmem:[#allocation10 + $0x138] sm:$0xff]
    %v1946 = vld [vmem:[#allocation10 + $0x140] sm:$0xff]
    %v1947 = vld [vmem:[#allocation10 + $0x148] sm:$0xff]
    %v1948 = vld [vmem:[#allocation10 + $0x150] sm:$0xff]
    %v1949 = vld [vmem:[#allocation10 + $0x158] sm:$0xff]
    %v1950 = vld [vmem:[#allocation10 + $0x160] sm:$0xff]
    %v1951 = vld [vmem:[#allocation10 + $0x168] sm:$0xff]
    %v1952 = vld [vmem:[#allocation10 + $0x170] sm:$0xff]
    %v1953 = vld [vmem:[#allocation10 + $0x178] sm:$0xff]
    %v1954 = vld [vmem:[#allocation10 + $0x180] sm:$0xff]
    %v1955 = vld [vmem:[#allocation10 + $0x188] sm:$0xff]
    %v1956 = vld [vmem:[#allocation10 + $0x190] sm:$0xff]
    %v1957 = vld [vmem:[#allocation10 + $0x198] sm:$0xff]
    %v1958 = vld [vmem:[#allocation10 + $0x1a0] sm:$0xff]
    %v1959 = vld [vmem:[#allocation10 + $0x1a8] sm:$0xff]
    %v1960 = vld [vmem:[#allocation10 + $0x1b0] sm:$0xff]
    %v1961 = vld [vmem:[#allocation10 + $0x1b8] sm:$0xff]
    %v1962 = vld [vmem:[#allocation10 + $0x1c0] sm:$0xff]
    %v1963 = vld [vmem:[#allocation10 + $0x1c8] sm:$0xff]
    %v1964 = vld [vmem:[#allocation10 + $0x1d0] sm:$0xff]
    %v1965 = vld [vmem:[#allocation10 + $0x1d8] sm:$0xff]
    %v1966 = vld [vmem:[#allocation10 + $0x1e0] sm:$0xff]
    %v1967 = vld [vmem:[#allocation10 + $0x1e8] sm:$0xff]
    %v1968 = vld [vmem:[#allocation10 + $0x1f0] sm:$0xff]
    %v1969 = vld [vmem:[#allocation10 + $0x1f8] sm:$0xff]
    %1970 = vmatprep.subr.mxu0 %v1907
    %1971 = vmatpush1.msra.mxu0 %v1906
    %1972 = vmatprep.subr.mxu0 %v1911
    %1973 = vmatpush1.msra.mxu0 %v1910
    %1974 = vmatprep.subr.mxu0 %v1915
    %1975 = vmatpush1.msra.mxu0 %v1914
    %1976 = vmatprep.subr.mxu0 %v1919
    %1977 = vmatpush1.msra.mxu0 %v1918
    %1978 = vmatprep.subr.mxu0 %v1923
    %1979 = vmatpush1.msra.mxu0 %v1922
    %1980 = vmatprep.subr.mxu0 %v1927
    %1981 = vmatpush1.msra.mxu0 %v1926
    %1982 = vmatprep.subr.mxu0 %v1931
    %1983 = vmatpush1.msra.mxu0 %v1930
    %1984 = vmatprep.subr.mxu0 %v1935
    %1985 = vmatpush1.msra.mxu0 %v1934
    %1986 = vmatprep.subr.mxu0 %v1939
    %1987 = vmatpush1.msra.mxu0 %v1938
    %1988 = vmatprep.subr.mxu0 %v1943
    %1989 = vmatpush1.msra.mxu0 %v1942
    %1990 = vmatprep.subr.mxu0 %v1947
    %1991 = vmatpush1.msra.mxu0 %v1946
    %1992 = vmatprep.subr.mxu0 %v1951
    %1993 = vmatpush1.msra.mxu0 %v1950
    %1994 = vmatprep.subr.mxu0 %v1955
    %1995 = vmatpush1.msra.mxu0 %v1954
    %1996 = vmatprep.subr.mxu0 %v1959
    %1997 = vmatpush1.msra.mxu0 %v1958
    %1998 = vmatprep.subr.mxu0 %v1963
    %1999 = vmatpush1.msra.mxu0 %v1962
    %2000 = vmatprep.subr.mxu0 %v1967
    %2001 = vmatpush1.msra.mxu0 %v1966
    %2002 = vmatprep.subr.mxu0 0.0
    %2003 = vmatpush1.msra.mxu0 0.0
    %2004 = vmatprep.subr.mxu0 0.0
    %2005 = vmatpush1.msra.mxu0 0.0
    %2006 = vmatprep.subr.mxu0 0.0
    %2007 = vmatpush1.msra.mxu0 0.0
    %2008 = vmatprep.subr.mxu0 0.0
    %2009 = vmatpush1.msra.mxu0 0.0
    %2010 = vmatprep.subr.mxu0 0.0
    %2011 = vmatpush1.msra.mxu0 0.0
    %2012 = vmatprep.subr.mxu0 0.0
    %2013 = vmatpush1.msra.mxu0 0.0
    %2014 = vmatprep.subr.mxu0 0.0
    %2015 = vmatpush1.msra.mxu0 0.0
    %2016 = vmatprep.subr.mxu0 0.0
    %2017 = vmatpush1.msra.mxu0 0.0
    %2018 = vmatprep.subr.mxu0 0.0
    %2019 = vmatpush1.msra.mxu0 0.0
    %2020 = vmatprep.subr.mxu0 0.0
    %2021 = vmatpush1.msra.mxu0 0.0
    %2022 = vmatprep.subr.mxu0 0.0
    %2023 = vmatpush1.msra.mxu0 0.0
    %2024 = vmatprep.subr.mxu0 0.0
    %2025 = vmatpush1.msra.mxu0 0.0
    %2026 = vmatprep.subr.mxu0 0.0
    %2027 = vmatpush1.msra.mxu0 0.0
    %2028 = vmatprep.subr.mxu0 0.0
    %2029 = vmatpush1.msra.mxu0 0.0
    %2030 = vmatprep.subr.mxu0 0.0
    %2031 = vmatpush1.msra.mxu0 0.0
    %2032 = vmatprep.subr.mxu0 0.0
    %2033 = vmatpush1.msra.mxu0 0.0
    %2034 = vmatprep.mubr.f32.mxu0 0.0
    %2035 = vmatmul.mubr.f32.gmra.mrb[0].mxu0 %v1896
    %v2036 = vpop.f32.mrb[0].mxu0
    %v2037 = vadd.f32 0.0, %v2036
    %v2038 = vpop.f32.mrb[0].mxu0
    %v2039 = vadd.f32 0.0, %v2038
    %2040 = vdwg.mxu0
    %2041 = vmatprep.subr.mxu0 %v1909
    %2042 = vmatpush1.msra.mxu0 %v1908
    %2043 = vmatprep.subr.mxu0 %v1913
    %2044 = vmatpush1.msra.mxu0 %v1912
    %2045 = vmatprep.subr.mxu0 %v1917
    %2046 = vmatpush1.msra.mxu0 %v1916
    %2047 = vmatprep.subr.mxu0 %v1921
    %2048 = vmatpush1.msra.mxu0 %v1920
    %2049 = vmatprep.subr.mxu0 %v1925
    %2050 = vmatpush1.msra.mxu0 %v1924
    %2051 = vmatprep.subr.mxu0 %v1929
    %2052 = vmatpush1.msra.mxu0 %v1928
    %2053 = vmatprep.subr.mxu0 %v1933
    %2054 = vmatpush1.msra.mxu0 %v1932
    %2055 = vmatprep.subr.mxu0 %v1937
    %2056 = vmatpush1.msra.mxu0 %v1936
    %2057 = vmatprep.subr.mxu0 %v1941
    %2058 = vmatpush1.msra.mxu0 %v1940
    %2059 = vmatprep.subr.mxu0 %v1945
    %2060 = vmatpush1.msra.mxu0 %v1944
    %2061 = vmatprep.subr.mxu0 %v1949
    %2062 = vmatpush1.msra.mxu0 %v1948
    %2063 = vmatprep.subr.mxu0 %v1953
    %2064 = vmatpush1.msra.mxu0 %v1952
    %2065 = vmatprep.subr.mxu0 %v1957
    %2066 = vmatpush1.msra.mxu0 %v1956
    %2067 = vmatprep.subr.mxu0 %v1961
    %2068 = vmatpush1.msra.mxu0 %v1960
    %2069 = vmatprep.subr.mxu0 %v1965
    %2070 = vmatpush1.msra.mxu0 %v1964
    %2071 = vmatprep.subr.mxu0 %v1969
    %2072 = vmatpush1.msra.mxu0 %v1968
    %2073 = vmatprep.subr.mxu0 0.0
    %2074 = vmatpush1.msra.mxu0 0.0
    %2075 = vmatprep.subr.mxu0 0.0
    %2076 = vmatpush1.msra.mxu0 0.0
    %2077 = vmatprep.subr.mxu0 0.0
    %2078 = vmatpush1.msra.mxu0 0.0
    %2079 = vmatprep.subr.mxu0 0.0
    %2080 = vmatpush1.msra.mxu0 0.0
    %2081 = vmatprep.subr.mxu0 0.0
    %2082 = vmatpush1.msra.mxu0 0.0
    %2083 = vmatprep.subr.mxu0 0.0
    %2084 = vmatpush1.msra.mxu0 0.0
    %2085 = vmatprep.subr.mxu0 0.0
    %2086 = vmatpush1.msra.mxu0 0.0
    %2087 = vmatprep.subr.mxu0 0.0
    %2088 = vmatpush1.msra.mxu0 0.0
    %2089 = vmatprep.subr.mxu0 0.0
    %2090 = vmatpush1.msra.mxu0 0.0
    %2091 = vmatprep.subr.mxu0 0.0
    %2092 = vmatpush1.msra.mxu0 0.0
    %2093 = vmatprep.subr.mxu0 0.0
    %2094 = vmatpush1.msra.mxu0 0.0
    %2095 = vmatprep.subr.mxu0 0.0
    %2096 = vmatpush1.msra.mxu0 0.0
    %2097 = vmatprep.subr.mxu0 0.0
    %2098 = vmatpush1.msra.mxu0 0.0
    %2099 = vmatprep.subr.mxu0 0.0
    %2100 = vmatpush1.msra.mxu0 0.0
    %2101 = vmatprep.subr.mxu0 0.0
    %2102 = vmatpush1.msra.mxu0 0.0
    %2103 = vmatprep.subr.mxu0 0.0
    %2104 = vmatpush1.msra.mxu0 0.0
    %2105 = vmatprep.mubr.f32.mxu0 0.0
    %2106 = vmatmul.mubr.f32.gmra.mrb[0].mxu0 %v1896
    %v2107 = vpop.f32.mrb[0].mxu0
    %v2108 = vadd.f32 0.0, %v2107
    %v2109 = vpop.f32.mrb[0].mxu0
    %v2110 = vadd.f32 0.0, %v2109
    %2111 = vdwg.mxu0
    %v2112 = vadd.f32 %v1902, %v2037
    %v2113 = vadd.f32 %v1903, %v2039
    %v2114 = vadd.f32 %v1904, %v2108
    %v2115 = vadd.f32 %v1905, %v2110
    %v2116 = vmul.f32 %v2113, 0.5
    %v2117 = vtanh.pop %v2116
    %v2118 = vadd.f32 %v2117, 1.0
    %v2119 = vmul.f32 %v2118, 0.5
    %v2120 = vmul.f32 %v2119, %v1890
    %v2121 = vmul.f32 %v2112, 0.5
    %v2122 = vtanh.pop %v2121
    %v2123 = vadd.f32 %v2122, 1.0
    %v2124 = vmul.f32 %v2123, 0.5
    %v2125 = vtanh.pop %v2114
    %v2126 = vmul.f32 %v2124, %v2125
    %v2127 = vadd.f32 %v2120, %v2126
    %v2128 = vmul.f32 %v2115, 0.5
    %v2129 = vtanh.pop %v2128
    %v2130 = vadd.f32 %v2129, 1.0
    %v2131 = vmul.f32 %v2130, 0.5
    %v2132 = vtanh.pop %v2127
    %v2133 = vmul.f32 %v2131, %v2132
    %s2134 = scalar_lea.vmem [#allocation17], 48
    %2135 = vst [vmem:[%s2134] sm:$0xff] %v2133
    %s2136 = smul.u32 7, 4
    %s2137 = smul.addr %s2136, 8
    %s2138 = scalar_lea.vmem [#allocation2], %s2137
    %v2139 = vld [vmem:[%s2138] sm:$0xff]
    %v2140 = vld [vmem:[%s2138 + $0x8] sm:$0xff]
    %v2141 = vld [vmem:[%s2138 + $0x10] sm:$0xff]
    %v2142 = vld [vmem:[%s2138 + $0x18] sm:$0xff]
    %v2143 = vld [vmem:[#allocation10] sm:$0xff]
    %v2144 = vld [vmem:[#allocation10 + $0x8] sm:$0xff]
    %v2145 = vld [vmem:[#allocation10 + $0x10] sm:$0xff]
    %v2146 = vld [vmem:[#allocation10 + $0x18] sm:$0xff]
    %v2147 = vld [vmem:[#allocation10 + $0x20] sm:$0xff]
    %v2148 = vld [vmem:[#allocation10 + $0x28] sm:$0xff]
    %v2149 = vld [vmem:[#allocation10 + $0x30] sm:$0xff]
    %v2150 = vld [vmem:[#allocation10 + $0x38] sm:$0xff]
    %v2151 = vld [vmem:[#allocation10 + $0x40] sm:$0xff]
    %v2152 = vld [vmem:[#allocation10 + $0x48] sm:$0xff]
    %v2153 = vld [vmem:[#allocation10 + $0x50] sm:$0xff]
    %v2154 = vld [vmem:[#allocation10 + $0x58] sm:$0xff]
    %v2155 = vld [vmem:[#allocation10 + $0x60] sm:$0xff]
    %v2156 = vld [vmem:[#allocation10 + $0x68] sm:$0xff]
    %v2157 = vld [vmem:[#allocation10 + $0x70] sm:$0xff]
    %v2158 = vld [vmem:[#allocation10 + $0x78] sm:$0xff]
    %v2159 = vld [vmem:[#allocation10 + $0x80] sm:$0xff]
    %v2160 = vld [vmem:[#allocation10 + $0x88] sm:$0xff]
    %v2161 = vld [vmem:[#allocation10 + $0x90] sm:$0xff]
    %v2162 = vld [vmem:[#allocation10 + $0x98] sm:$0xff]
    %v2163 = vld [vmem:[#allocation10 + $0xa0] sm:$0xff]
    %v2164 = vld [vmem:[#allocation10 + $0xa8] sm:$0xff]
    %v2165 = vld [vmem:[#allocation10 + $0xb0] sm:$0xff]
    %v2166 = vld [vmem:[#allocation10 + $0xb8] sm:$0xff]
    %v2167 = vld [vmem:[#allocation10 + $0xc0] sm:$0xff]
    %v2168 = vld [vmem:[#allocation10 + $0xc8] sm:$0xff]
    %v2169 = vld [vmem:[#allocation10 + $0xd0] sm:$0xff]
    %v2170 = vld [vmem:[#allocation10 + $0xd8] sm:$0xff]
    %v2171 = vld [vmem:[#allocation10 + $0xe0] sm:$0xff]
    %v2172 = vld [vmem:[#allocation10 + $0xe8] sm:$0xff]
    %v2173 = vld [vmem:[#allocation10 + $0xf0] sm:$0xff]
    %v2174 = vld [vmem:[#allocation10 + $0xf8] sm:$0xff]
    %v2175 = vld [vmem:[#allocation10 + $0x100] sm:$0xff]
    %v2176 = vld [vmem:[#allocation10 + $0x108] sm:$0xff]
    %v2177 = vld [vmem:[#allocation10 + $0x110] sm:$0xff]
    %v2178 = vld [vmem:[#allocation10 + $0x118] sm:$0xff]
    %v2179 = vld [vmem:[#allocation10 + $0x120] sm:$0xff]
    %v2180 = vld [vmem:[#allocation10 + $0x128] sm:$0xff]
    %v2181 = vld [vmem:[#allocation10 + $0x130] sm:$0xff]
    %v2182 = vld [vmem:[#allocation10 + $0x138] sm:$0xff]
    %v2183 = vld [vmem:[#allocation10 + $0x140] sm:$0xff]
    %v2184 = vld [vmem:[#allocation10 + $0x148] sm:$0xff]
    %v2185 = vld [vmem:[#allocation10 + $0x150] sm:$0xff]
    %v2186 = vld [vmem:[#allocation10 + $0x158] sm:$0xff]
    %v2187 = vld [vmem:[#allocation10 + $0x160] sm:$0xff]
    %v2188 = vld [vmem:[#allocation10 + $0x168] sm:$0xff]
    %v2189 = vld [vmem:[#allocation10 + $0x170] sm:$0xff]
    %v2190 = vld [vmem:[#allocation10 + $0x178] sm:$0xff]
    %v2191 = vld [vmem:[#allocation10 + $0x180] sm:$0xff]
    %v2192 = vld [vmem:[#allocation10 + $0x188] sm:$0xff]
    %v2193 = vld [vmem:[#allocation10 + $0x190] sm:$0xff]
    %v2194 = vld [vmem:[#allocation10 + $0x198] sm:$0xff]
    %v2195 = vld [vmem:[#allocation10 + $0x1a0] sm:$0xff]
    %v2196 = vld [vmem:[#allocation10 + $0x1a8] sm:$0xff]
    %v2197 = vld [vmem:[#allocation10 + $0x1b0] sm:$0xff]
    %v2198 = vld [vmem:[#allocation10 + $0x1b8] sm:$0xff]
    %v2199 = vld [vmem:[#allocation10 + $0x1c0] sm:$0xff]
    %v2200 = vld [vmem:[#allocation10 + $0x1c8] sm:$0xff]
    %v2201 = vld [vmem:[#allocation10 + $0x1d0] sm:$0xff]
    %v2202 = vld [vmem:[#allocation10 + $0x1d8] sm:$0xff]
    %v2203 = vld [vmem:[#allocation10 + $0x1e0] sm:$0xff]
    %v2204 = vld [vmem:[#allocation10 + $0x1e8] sm:$0xff]
    %v2205 = vld [vmem:[#allocation10 + $0x1f0] sm:$0xff]
    %v2206 = vld [vmem:[#allocation10 + $0x1f8] sm:$0xff]
    %2207 = vmatprep.subr.mxu0 %v2144
    %2208 = vmatpush1.msra.mxu0 %v2143
    %2209 = vmatprep.subr.mxu0 %v2148
    %2210 = vmatpush1.msra.mxu0 %v2147
    %2211 = vmatprep.subr.mxu0 %v2152
    %2212 = vmatpush1.msra.mxu0 %v2151
    %2213 = vmatprep.subr.mxu0 %v2156
    %2214 = vmatpush1.msra.mxu0 %v2155
    %2215 = vmatprep.subr.mxu0 %v2160
    %2216 = vmatpush1.msra.mxu0 %v2159
    %2217 = vmatprep.subr.mxu0 %v2164
    %2218 = vmatpush1.msra.mxu0 %v2163
    %2219 = vmatprep.subr.mxu0 %v2168
    %2220 = vmatpush1.msra.mxu0 %v2167
    %2221 = vmatprep.subr.mxu0 %v2172
    %2222 = vmatpush1.msra.mxu0 %v2171
    %2223 = vmatprep.subr.mxu0 %v2176
    %2224 = vmatpush1.msra.mxu0 %v2175
    %2225 = vmatprep.subr.mxu0 %v2180
    %2226 = vmatpush1.msra.mxu0 %v2179
    %2227 = vmatprep.subr.mxu0 %v2184
    %2228 = vmatpush1.msra.mxu0 %v2183
    %2229 = vmatprep.subr.mxu0 %v2188
    %2230 = vmatpush1.msra.mxu0 %v2187
    %2231 = vmatprep.subr.mxu0 %v2192
    %2232 = vmatpush1.msra.mxu0 %v2191
    %2233 = vmatprep.subr.mxu0 %v2196
    %2234 = vmatpush1.msra.mxu0 %v2195
    %2235 = vmatprep.subr.mxu0 %v2200
    %2236 = vmatpush1.msra.mxu0 %v2199
    %2237 = vmatprep.subr.mxu0 %v2204
    %2238 = vmatpush1.msra.mxu0 %v2203
    %2239 = vmatprep.subr.mxu0 0.0
    %2240 = vmatpush1.msra.mxu0 0.0
    %2241 = vmatprep.subr.mxu0 0.0
    %2242 = vmatpush1.msra.mxu0 0.0
    %2243 = vmatprep.subr.mxu0 0.0
    %2244 = vmatpush1.msra.mxu0 0.0
    %2245 = vmatprep.subr.mxu0 0.0
    %2246 = vmatpush1.msra.mxu0 0.0
    %2247 = vmatprep.subr.mxu0 0.0
    %2248 = vmatpush1.msra.mxu0 0.0
    %2249 = vmatprep.subr.mxu0 0.0
    %2250 = vmatpush1.msra.mxu0 0.0
    %2251 = vmatprep.subr.mxu0 0.0
    %2252 = vmatpush1.msra.mxu0 0.0
    %2253 = vmatprep.subr.mxu0 0.0
    %2254 = vmatpush1.msra.mxu0 0.0
    %2255 = vmatprep.subr.mxu0 0.0
    %2256 = vmatpush1.msra.mxu0 0.0
    %2257 = vmatprep.subr.mxu0 0.0
    %2258 = vmatpush1.msra.mxu0 0.0
    %2259 = vmatprep.subr.mxu0 0.0
    %2260 = vmatpush1.msra.mxu0 0.0
    %2261 = vmatprep.subr.mxu0 0.0
    %2262 = vmatpush1.msra.mxu0 0.0
    %2263 = vmatprep.subr.mxu0 0.0
    %2264 = vmatpush1.msra.mxu0 0.0
    %2265 = vmatprep.subr.mxu0 0.0
    %2266 = vmatpush1.msra.mxu0 0.0
    %2267 = vmatprep.subr.mxu0 0.0
    %2268 = vmatpush1.msra.mxu0 0.0
    %2269 = vmatprep.subr.mxu0 0.0
    %2270 = vmatpush1.msra.mxu0 0.0
    %2271 = vmatprep.mubr.f32.mxu0 0.0
    %2272 = vmatmul.mubr.f32.gmra.mrb[0].mxu0 %v2133
    %v2273 = vpop.f32.mrb[0].mxu0
    %v2274 = vadd.f32 0.0, %v2273
    %v2275 = vpop.f32.mrb[0].mxu0
    %v2276 = vadd.f32 0.0, %v2275
    %2277 = vdwg.mxu0
    %2278 = vmatprep.subr.mxu0 %v2146
    %2279 = vmatpush1.msra.mxu0 %v2145
    %2280 = vmatprep.subr.mxu0 %v2150
    %2281 = vmatpush1.msra.mxu0 %v2149
    %2282 = vmatprep.subr.mxu0 %v2154
    %2283 = vmatpush1.msra.mxu0 %v2153
    %2284 = vmatprep.subr.mxu0 %v2158
    %2285 = vmatpush1.msra.mxu0 %v2157
    %2286 = vmatprep.subr.mxu0 %v2162
    %2287 = vmatpush1.msra.mxu0 %v2161
    %2288 = vmatprep.subr.mxu0 %v2166
    %2289 = vmatpush1.msra.mxu0 %v2165
    %2290 = vmatprep.subr.mxu0 %v2170
    %2291 = vmatpush1.msra.mxu0 %v2169
    %2292 = vmatprep.subr.mxu0 %v2174
    %2293 = vmatpush1.msra.mxu0 %v2173
    %2294 = vmatprep.subr.mxu0 %v2178
    %2295 = vmatpush1.msra.mxu0 %v2177
    %2296 = vmatprep.subr.mxu0 %v2182
    %2297 = vmatpush1.msra.mxu0 %v2181
    %2298 = vmatprep.subr.mxu0 %v2186
    %2299 = vmatpush1.msra.mxu0 %v2185
    %2300 = vmatprep.subr.mxu0 %v2190
    %2301 = vmatpush1.msra.mxu0 %v2189
    %2302 = vmatprep.subr.mxu0 %v2194
    %2303 = vmatpush1.msra.mxu0 %v2193
    %2304 = vmatprep.subr.mxu0 %v2198
    %2305 = vmatpush1.msra.mxu0 %v2197
    %2306 = vmatprep.subr.mxu0 %v2202
    %2307 = vmatpush1.msra.mxu0 %v2201
    %2308 = vmatprep.subr.mxu0 %v2206
    %2309 = vmatpush1.msra.mxu0 %v2205
    %2310 = vmatprep.subr.mxu0 0.0
    %2311 = vmatpush1.msra.mxu0 0.0
    %2312 = vmatprep.subr.mxu0 0.0
    %2313 = vmatpush1.msra.mxu0 0.0
    %2314 = vmatprep.subr.mxu0 0.0
    %2315 = vmatpush1.msra.mxu0 0.0
    %2316 = vmatprep.subr.mxu0 0.0
    %2317 = vmatpush1.msra.mxu0 0.0
    %2318 = vmatprep.subr.mxu0 0.0
    %2319 = vmatpush1.msra.mxu0 0.0
    %2320 = vmatprep.subr.mxu0 0.0
    %2321 = vmatpush1.msra.mxu0 0.0
    %2322 = vmatprep.subr.mxu0 0.0
    %2323 = vmatpush1.msra.mxu0 0.0
    %2324 = vmatprep.subr.mxu0 0.0
    %2325 = vmatpush1.msra.mxu0 0.0
    %2326 = vmatprep.subr.mxu0 0.0
    %2327 = vmatpush1.msra.mxu0 0.0
    %2328 = vmatprep.subr.mxu0 0.0
    %2329 = vmatpush1.msra.mxu0 0.0
    %2330 = vmatprep.subr.mxu0 0.0
    %2331 = vmatpush1.msra.mxu0 0.0
    %2332 = vmatprep.subr.mxu0 0.0
    %2333 = vmatpush1.msra.mxu0 0.0
    %2334 = vmatprep.subr.mxu0 0.0
    %2335 = vmatpush1.msra.mxu0 0.0
    %2336 = vmatprep.subr.mxu0 0.0
    %2337 = vmatpush1.msra.mxu0 0.0
    %2338 = vmatprep.subr.mxu0 0.0
    %2339 = vmatpush1.msra.mxu0 0.0
    %2340 = vmatprep.subr.mxu0 0.0
    %2341 = vmatpush1.msra.mxu0 0.0
    %2342 = vmatprep.mubr.f32.mxu0 0.0
    %2343 = vmatmul.mubr.f32.gmra.mrb[0].mxu0 %v2133
    %v2344 = vpop.f32.mrb[0].mxu0
    %v2345 = vadd.f32 0.0, %v2344
    %v2346 = vpop.f32.mrb[0].mxu0
    %v2347 = vadd.f32 0.0, %v2346
    %2348 = vdwg.mxu0
    %v2349 = vadd.f32 %v2139, %v2274
    %v2350 = vadd.f32 %v2140, %v2276
    %v2351 = vadd.f32 %v2141, %v2345
    %v2352 = vadd.f32 %v2142, %v2347
    %v2353 = vmul.f32 %v2350, 0.5
    %v2354 = vtanh.pop %v2353
    %v2355 = vadd.f32 %v2354, 1.0
    %v2356 = vmul.f32 %v2355, 0.5
    %v2357 = vmul.f32 %v2356, %v2127
    %v2358 = vmul.f32 %v2349, 0.5
    %v2359 = vtanh.pop %v2358
    %v2360 = vadd.f32 %v2359, 1.0
    %v2361 = vmul.f32 %v2360, 0.5
    %v2362 = vtanh.pop %v2351
    %v2363 = vmul.f32 %v2361, %v2362
    %v2364 = vadd.f32 %v2357, %v2363
    %v2365 = vmul.f32 %v2352, 0.5
    %v2366 = vtanh.pop %v2365
    %v2367 = vadd.f32 %v2366, 1.0
    %v2368 = vmul.f32 %v2367, 0.5
    %v2369 = vtanh.pop %v2364
    %v2370 = vmul.f32 %v2368, %v2369
    %s2371 = scalar_lea.vmem [#allocation17], 56
    %2372 = vst [vmem:[%s2371] sm:$0xff] %v2370
    %2373 = vst [vmem:[#allocation3] sm:$0xff] %v2364
    %2374 = vst [vmem:[#allocation4] sm:$0xff] %v2370
    // Predicated region
    $region62: #{tpu_custom_call.1} parent=1 // pred_check
      %p2375 = pneg %p118
    $region63: #{tpu_custom_call.1} parent=1 // pred_check_branch
      %2377 = sbr.rel (%p2375) target = $region65
    $region64: #{tpu_custom_call.1} parent=1 // pred_region
      %v2378 = vld [vmem:[#allocation3] sm:$0xff]
      %2379 = vst [vmem:[#allocation18] sm:$0xff] %v2378
      %v2380 = vld [vmem:[#allocation4] sm:$0xff]
      %2381 = vst [vmem:[#allocation20] sm:$0xff] %v2380
    $region65: #{tpu_custom_call.1} parent=1 // pred_fallthru
      _
    // Predicated region
    $region66: #{tpu_custom_call.1} parent=1 // pred_check
      _
    $region67: #{tpu_custom_call.1} parent=1 // pred_check_branch
      %2383 = sbr.rel (0) target = $region69
    $region68: #{tpu_custom_call.1} parent=1 // pred_region
      %s2385 = ssub.s32 1024, 1024
      %2386 = vsyncadd [#allocation7], %s2385
      %s2387 = sshll.u32 [#allocation17], 4
      %s2388 = int_to_ptr.vmem [resolvable:$true] %s2387
      %2393 = dma.vmem_to_hbm [thread:$0]  %s2388, 1024, %s7, [#allocation7], 128, 128, 8
    $region69: #{tpu_custom_call.1} parent=1 // pred_fallthru
      _
    // Predicated region
    $region70: #{tpu_custom_call.1} parent=1 // pred_check
      _
    $region71: #{tpu_custom_call.1} parent=1 // pred_check_branch
      %2395 = sbr.rel (0) target = $region73
    $region72: #{tpu_custom_call.1} parent=1 // pred_region
      %s2397 = ssub.s32 128, 128
      %2398 = vsyncadd [#allocation19], %s2397
      %s2400 = sshll.u32 [#allocation18], 4
      %s2401 = int_to_ptr.vmem [resolvable:$true] %s2400
      %2403 = dma.vmem_to_hbm [thread:$0]  %s2401, 128, %s8, [#allocation19]
    $region73: #{tpu_custom_call.1} parent=1 // pred_fallthru
      _
    // Predicated region
    $region74: #{tpu_custom_call.1} parent=1 // pred_check
      _
    $region75: #{tpu_custom_call.1} parent=1 // pred_check_branch
      %2405 = sbr.rel (0) target = $region77
    $region76: #{tpu_custom_call.1} parent=1 // pred_region
      %s2407 = ssub.s32 128, 128
      %2408 = vsyncadd [#allocation19], %s2407
      %s2410 = sshll.u32 [#allocation20], 4
      %s2411 = int_to_ptr.vmem [resolvable:$true] %s2410
      %2413 = dma.vmem_to_hbm [thread:$0]  %s2411, 128, %s9, [#allocation19]
    $region77: #{tpu_custom_call.1} parent=1 // pred_fallthru
      _
    // Predicated region
    $region78: #{tpu_custom_call.1} parent=1 // pred_check
      _
    $region79: #{tpu_custom_call.1} parent=1 // pred_check_branch
      %2415 = sbr.rel (0) target = $region81
    $region80: #{tpu_custom_call.1} parent=1 // pred_region
      %2416 = dma.done [#allocation7], 1024
    $region81: #{tpu_custom_call.1} parent=1 // pred_fallthru
      _
    // Predicated region
    $region82: #{tpu_custom_call.1} parent=1 // pred_check
      _
    $region83: #{tpu_custom_call.1} parent=1 // pred_check_branch
      %2418 = sbr.rel (0) target = $region85
    $region84: #{tpu_custom_call.1} parent=1 // pred_region
      %2419 = dma.done [#allocation19], 128
    $region85: #{tpu_custom_call.1} parent=1 // pred_fallthru
      _
    // Predicated region
    $region86: #{tpu_custom_call.1} parent=1 // pred_check
      _
    $region87: #{tpu_custom_call.1} parent=1 // pred_check_branch
      %2421 = sbr.rel (0) target = $region89
    $region88: #{tpu_custom_call.1} parent=1 // pred_region
      %2422 = dma.done [#allocation19], 128
    $region89: #{tpu_custom_call.1} parent=1 // pred_fallthru
      _
    %2423 = vsyncpa [#allocation6], 1
    %2424 = vsyncpa [#allocation9], 1
    %2425 = vsyncpa [#allocation12], 1
    %2426 = vsyncpa [#allocation15], 1
    %2427 = vsyncpa [#allocation7], 1
    %2428 = vsyncpa [#allocation19], 1

</llo_original>
